<compile_context>
chip_gen: v6e
topology: v6e:2x2x1
jax: 0.10.0
libtpu: 0.0.40
codegen_flags: <defaults>
</compile_context>

<pallas_src>
import jax
import jax.numpy as jnp
from jax.experimental import pallas as pl
from jax.experimental.pallas import tpu as pltpu

IN_FEATURES = 11325   # Conv1d in_channels
H1 = 512              # Conv1d(11325 -> 512)
H2 = 64               # Conv1d(512 -> 64)
OUT = 2               # Linear(64 -> 2)
BN_EPS = 1e-5

TILE_K = 3840                                   # K tile of the W1 stream (bf16)
K_PAD = pl.cdiv(IN_FEATURES, TILE_K) * TILE_K   # 11520
H1_BLK = 256                                    # lane-dense N block (multiple of 128)
N_J = H1 // H1_BLK                              # 2 -> one block per v7x TensorCore


# --------------------------------------------------------------------------
# Kernel 1: layer-1 matmul (the only HBM-heavy op), BN pre-folded into W1/b1,
# fused bias + ReLU epilogue.
# grid = (j over H1 blocks [parallel], k over K tiles [reduction])
# --------------------------------------------------------------------------
def layer1_kernel(x_ref, w1_ref, b1_ref, h1_ref, acc_ref):
    k = pl.program_id(1)

    @pl.when(k == 0)
    def _():
        acc_ref[...] = jnp.zeros_like(acc_ref)

    # (B, tk) bf16 @ (tk, H1_BLK) bf16 -> f32 accumulate on the MXU.
    acc_ref[...] += jnp.dot(x_ref[...], w1_ref[...],
                            preferred_element_type=jnp.float32)

    @pl.when(k == pl.num_programs(1) - 1)
    def _():
        pre = acc_ref[...] + b1_ref[...]          # conv bias + folded BN shift
        h1_ref[...] = jnp.maximum(pre, 0.0).astype(h1_ref.dtype)


# --------------------------------------------------------------------------
# Kernel 2: tiny tail — Conv1d(512->64) (BN2 folded in), then Linear(64->2).
# One grid cell; everything resident.
# --------------------------------------------------------------------------
def tail_kernel(h1_ref, w2_ref, b2_ref, w3_ref, b3_ref, o_ref):
    h1 = h1_ref[...]
    h2 = jnp.dot(h1, w2_ref[...], preferred_element_type=jnp.float32) + b2_ref[...]
    y = jnp.dot(h2, w3_ref[...], preferred_element_type=jnp.float32) + b3_ref[...]
    o_ref[...] = y.astype(o_ref.dtype)


# --------------------------------------------------------------------------
# Forward wrapper
# --------------------------------------------------------------------------
@jax.jit
def cnn_forward(x, params):
    """x: (B, 11325, 1) f32.  params: output of prepare_params()."""
    w1p, b1f, w2f, b2f, w3t, b3r = params
    B = x.shape[0]

    # The 1x1 conv over length-1 sequences is a per-sample linear map: flatten.
    x2 = x.reshape(B, IN_FEATURES).astype(jnp.float32)
    # Only the tiny activation is padded/cast per call (~45 KB); W1 was prepped once.
    x_p = jnp.pad(x2, ((0, 0), (0, K_PAD - IN_FEATURES))).astype(jnp.bfloat16)

    nk = K_PAD // TILE_K

    h1 = pl.pallas_call(
        layer1_kernel,
        out_shape=jax.ShapeDtypeStruct((B, H1), jnp.float32),
        grid_spec=pltpu.PrefetchScalarGridSpec(
            num_scalar_prefetch=0,
            grid=(N_J, nk),
            in_specs=[
                pl.BlockSpec((B, TILE_K), lambda j, k: (0, k)),       # x tile (bf16)
                pl.BlockSpec((TILE_K, H1_BLK), lambda j, k: (k, j)),  # W1 tile (bf16 stream)
                pl.BlockSpec((1, H1_BLK), lambda j, k: (0, j)),       # folded bias
            ],
            out_specs=pl.BlockSpec((B, H1_BLK), lambda j, k: (0, j)),
            scratch_shapes=[pltpu.VMEM((B, H1_BLK), jnp.float32)],    # f32 accumulator
        ),
        compiler_params=pltpu.CompilerParams(
            # j is independent (megacore-shardable on v7x); k is the reduction.
            dimension_semantics=("parallel", "arbitrary"),
        ),
    )(x_p, w1p, b1f)

    out = pl.pallas_call(
        tail_kernel,
        out_shape=jax.ShapeDtypeStruct((B, OUT), jnp.float32),
        grid_spec=pltpu.PrefetchScalarGridSpec(
            num_scalar_prefetch=0,
            grid=(1,),
            in_specs=[
                pl.BlockSpec((B, H1), lambda i: (0, 0)),
                pl.BlockSpec((H1, H2), lambda i: (0, 0)),
                pl.BlockSpec((1, H2), lambda i: (0, 0)),
                pl.BlockSpec((H2, OUT), lambda i: (0, 0)),
                pl.BlockSpec((1, OUT), lambda i: (0, 0)),
            ],
            out_specs=pl.BlockSpec((B, OUT), lambda i: (0, 0)),
        ),
        compiler_params=pltpu.CompilerParams(
            dimension_semantics=("arbitrary",),
        ),
    )(h1, w2f, b2f, w3t, b3r)

    return out


# --------------------------------------------------------------------------
# Parameter construction (deterministic) and one-time device prep
# --------------------------------------------------------------------------
def init_raw_params(key):
    """Raw parameters in PyTorch layout: conv weights (out, in), BN affine + stats."""
    ks = jax.random.split(key, 14)

    def uni(k, shape, bound):
        return jax.random.uniform(k, shape, jnp.float32, -bound, bound)

    b1_bound = 1.0 / (IN_FEATURES ** 0.5)
    w1 = uni(ks[0], (H1, IN_FEATURES), b1_bound)      # Conv1d weight, squeezed k=1
    b1 = uni(ks[1], (H1,), b1_bound)
    g1 = 1.0 + 0.1 * jax.random.normal(ks[2], (H1,), jnp.float32)
    be1 = 0.1 * jax.random.normal(ks[3], (H1,), jnp.float32)
    m1 = 0.1 * jax.random.normal(ks[4], (H1,), jnp.float32)
    v1 = jnp.abs(jax.random.normal(ks[5], (H1,), jnp.float32)) + 0.5

    b2_bound = 1.0 / (H1 ** 0.5)
    w2 = uni(ks[6], (H2, H1), b2_bound)
    b2 = uni(ks[7], (H2,), b2_bound)
    g2 = 1.0 + 0.1 * jax.random.normal(ks[8], (H2,), jnp.float32)
    be2 = 0.1 * jax.random.normal(ks[9], (H2,), jnp.float32)
    m2 = 0.1 * jax.random.normal(ks[10], (H2,), jnp.float32)
    v2 = jnp.abs(jax.random.normal(ks[11], (H2,), jnp.float32)) + 0.5

    b3_bound = 1.0 / (H2 ** 0.5)
    w3 = uni(ks[12], (OUT, H2), b3_bound)             # Linear weight (out, in)
    b3 = uni(ks[13], (OUT,), b3_bound)

    return (w1, b1, g1, be1, m1, v1, w2, b2, g2, be2, m2, v2, w3, b3)


def _fold_bn(gamma, beta, mean, var, eps=BN_EPS):
    s = gamma / jnp.sqrt(var + eps)
    return s, beta - mean * s


def prepare_params(raw):
    """One-time prep: transpose to (in, out), fold BN into W/b, pad + bf16 W1.

    BN(conv(x)) = (x@W + b) * s + t  =  x@(W*s) + (b*s + t)   (exact fold).
    """
    (w1, b1, g1, be1, m1, v1, w2, b2, g2, be2, m2, v2, w3, b3) = raw
    s1, t1 = _fold_bn(g1, be1, m1, v1)
    s2, t2 = _fold_bn(g2, be2, m2, v2)

    w1f = jnp.transpose(w1) * s1[None, :]                          # (11325, 512), BN folded
    w1p = jnp.pad(w1f, ((0, K_PAD - IN_FEATURES), (0, 0)))         # zero rows -> no-op in dot
    w1p = w1p.astype(jnp.bfloat16)                                 # bf16 weight stream
    b1f = (b1 * s1 + t1).reshape(1, -1)

    w2f = jnp.transpose(w2) * s2[None, :]                          # (512, 64), BN folded
    b2f = (b2 * s2 + t2).reshape(1, -1)

    return (w1p, b1f, w2f, b2f, jnp.transpose(w3), b3.reshape(1, -1))


def reference_forward(x, prepared):
    """Plain-JAX reference using the same prepared (BN-folded, bf16 W1) parameters."""
    w1p, b1f, w2f, b2f, w3t, b3r = prepared
    B = x.shape[0]
    x2 = x.reshape(B, IN_FEATURES).astype(jnp.float32)
    x_p = jnp.pad(x2, ((0, 0), (0, K_PAD - IN_FEATURES))).astype(jnp.bfloat16)
    h1 = jnp.maximum(jnp.dot(x_p, w1p, preferred_element_type=jnp.float32) + b1f, 0.0)
    h2 = jnp.dot(h1, w2f, preferred_element_type=jnp.float32) + b2f
    return jnp.dot(h2, w3t, preferred_element_type=jnp.float32) + b3r


if __name__ == "__main__":
    root = jax.random.PRNGKey(0)
    k_params, k_x = jax.random.split(root)

    raw = init_raw_params(k_params)
    params = prepare_params(raw)   # BN fold + W1 pad/bf16 happen ONCE, not per call

    B = 2  # small demo batch; larger B amortizes the W1 stream essentially for free
    x = jax.random.normal(k_x, (B, IN_FEATURES, 1), jnp.float32)

    out = cnn_forward(x, params)
    out = jax.block_until_ready(out)
    assert out.shape == (B, OUT), out.shape

    ref = reference_forward(x, params)
    max_err = float(jnp.max(jnp.abs(out - ref)))
    assert jnp.allclose(out, ref, rtol=2e-3, atol=2e-3), max_err

    print("KERNEL_OK")
</pallas_src>

<mosaic_0001>
module attributes {stable_mosaic.version = 11 : i64} {
  func.func @layer1_kernel(%arg0: i32, %arg1: i32, %arg2: memref<2x3840xbf16, #tpu.memory_space<vmem>>, %arg3: memref<3840x256xbf16, #tpu.memory_space<vmem>>, %arg4: memref<1x256xf32, #tpu.memory_space<vmem>>, %arg5: memref<2x256xf32, #tpu.memory_space<vmem>>, %arg6: memref<2x256xf32, #tpu.memory_space<vmem>>) attributes {dimension_semantics = [#tpu.dimension_semantics<parallel>, #tpu.dimension_semantics<arbitrary>], iteration_bounds = array<i64: 2, 3>, scalar_prefetch = 0 : i64, scratch_operands = 1 : i64, tpu.core_type = #tpu.core_type<tc>, window_params = [{transform_indices = @transform_0, window_bounds = array<i64: 2, 3840>}, {transform_indices = @transform_1, window_bounds = array<i64: 3840, 256>}, {transform_indices = @transform_2, window_bounds = array<i64: 1, 256>}, {transform_indices = @transform_3, window_bounds = array<i64: 2, 256>}]} {
    %c0_i32 = arith.constant 0 : i32
    %0 = arith.cmpi eq, %arg1, %c0_i32 : i32
    %1 = arith.extui %0 : i1 to i32
    %c0_i32_0 = arith.constant 0 : i32
    %2 = arith.cmpi ne, %1, %c0_i32_0 : i32
    scf.if %2 {
      %cst_9 = arith.constant 0.000000e+00 : f32
      %12 = vector.broadcast %cst_9 : f32 to vector<2x256xf32>
      %c0_10 = arith.constant 0 : index
      %c0_11 = arith.constant 0 : index
      %13 = vector.load %arg6[%c0_10, %c0_11] : memref<2x256xf32, #tpu.memory_space<vmem>>, vector<2x256xf32>
      tpu.vector_store %arg6[%c0_10, %c0_11], %12 {strides = array<i32>} : memref<2x256xf32, #tpu.memory_space<vmem>>, vector<2x256xf32>,
    } else {
    }
    %c0 = arith.constant 0 : index
    %c0_1 = arith.constant 0 : index
    %3 = vector.load %arg6[%c0, %c0_1] : memref<2x256xf32, #tpu.memory_space<vmem>>, vector<2x256xf32>
    %c0_2 = arith.constant 0 : index
    %c0_3 = arith.constant 0 : index
    %4 = vector.load %arg2[%c0_2, %c0_3] : memref<2x3840xbf16, #tpu.memory_space<vmem>>, vector<2x3840xbf16>
    %c0_4 = arith.constant 0 : index
    %c0_5 = arith.constant 0 : index
    %5 = vector.load %arg3[%c0_4, %c0_5] : memref<3840x256xbf16, #tpu.memory_space<vmem>>, vector<3840x256xbf16>
    %cst = arith.constant dense<0.000000e+00> : vector<2x256xf32>
    %6 = tpu.matmul %4, %5, %cst {dimension_numbers = #tpu.dot_dimension_numbers<[1], [0], [0], [1], [0, 0, 1, 1], [], []>} : vector<2x3840xbf16>, vector<3840x256xbf16>, vector<2x256xf32> -> vector<2x256xf32>
    %7 = arith.addf %3, %6 : vector<2x256xf32>
    %c0_6 = arith.constant 0 : index
    %c0_7 = arith.constant 0 : index
    %8 = vector.load %arg6[%c0_6, %c0_7] : memref<2x256xf32, #tpu.memory_space<vmem>>, vector<2x256xf32>
    tpu.vector_store %arg6[%c0_6, %c0_7], %7 {strides = array<i32>} : memref<2x256xf32, #tpu.memory_space<vmem>>, vector<2x256xf32>,
    %c2_i32 = arith.constant 2 : i32
    %9 = arith.cmpi eq, %arg1, %c2_i32 : i32
    %10 = arith.extui %9 : i1 to i32
    %c0_i32_8 = arith.constant 0 : i32
    %11 = arith.cmpi ne, %10, %c0_i32_8 : i32
    scf.if %11 {
      %c0_9 = arith.constant 0 : index
      %c0_10 = arith.constant 0 : index
      %12 = vector.load %arg6[%c0_9, %c0_10] : memref<2x256xf32, #tpu.memory_space<vmem>>, vector<2x256xf32>
      %c0_11 = arith.constant 0 : index
      %c0_12 = arith.constant 0 : index
      %13 = vector.load %arg4[%c0_11, %c0_12] : memref<1x256xf32, #tpu.memory_space<vmem>>, vector<1x256xf32>
      %14 = vector.broadcast %13 : vector<1x256xf32> to vector<2x256xf32>
      %15 = arith.addf %12, %14 : vector<2x256xf32>
      %cst_13 = arith.constant 0.000000e+00 : f32
      %16 = vector.broadcast %cst_13 : f32 to vector<2x256xf32>
      %17 = arith.maximumf %15, %16 : vector<2x256xf32>
      %c0_14 = arith.constant 0 : index
      %c0_15 = arith.constant 0 : index
      %18 = vector.load %arg5[%c0_14, %c0_15] : memref<2x256xf32, #tpu.memory_space<vmem>>, vector<2x256xf32>
      tpu.vector_store %arg5[%c0_14, %c0_15], %17 {strides = array<i32>} : memref<2x256xf32, #tpu.memory_space<vmem>>, vector<2x256xf32>,
    } else {
    }
    return
  }
  func.func @transform_0(%arg0: i32, %arg1: i32) -> (i32, i32) {
    %c0_i32 = arith.constant 0 : i32
    %c0_i32_0 = arith.constant 0 : i32
    return %c0_i32, %arg1 : i32, i32
  }
  func.func @transform_1(%arg0: i32, %arg1: i32) -> (i32, i32) {
    %c0_i32 = arith.constant 0 : i32
    return %arg1, %arg0 : i32, i32
  }
  func.func @transform_2(%arg0: i32, %arg1: i32) -> (i32, i32) {
    %c0_i32 = arith.constant 0 : i32
    %c0_i32_0 = arith.constant 0 : i32
    return %c0_i32, %arg0 : i32, i32
  }
  func.func @transform_3(%arg0: i32, %arg1: i32) -> (i32, i32) {
    %c0_i32 = arith.constant 0 : i32
    %c0_i32_0 = arith.constant 0 : i32
    return %c0_i32, %arg0 : i32, i32
  }
}

module attributes {stable_mosaic.version = 11 : i64} {
  func.func @tail_kernel(%arg0: i32, %arg1: memref<2x512xf32, #tpu.memory_space<vmem>>, %arg2: memref<512x64xf32, #tpu.memory_space<vmem>>, %arg3: memref<1x64xf32, #tpu.memory_space<vmem>>, %arg4: memref<64x2xf32, #tpu.memory_space<vmem>>, %arg5: memref<1x2xf32, #tpu.memory_space<vmem>>, %arg6: memref<2x2xf32, #tpu.memory_space<vmem>>) attributes {dimension_semantics = [#tpu.dimension_semantics<arbitrary>], iteration_bounds = array<i64: 1>, scalar_prefetch = 0 : i64, scratch_operands = 0 : i64, tpu.core_type = #tpu.core_type<tc>, window_params = [{pipeline_mode = #tpu.pipeline_mode<synchronous>, transform_indices = @transform_0, window_bounds = array<i64: 2, 512>}, {pipeline_mode = #tpu.pipeline_mode<synchronous>, transform_indices = @transform_1, window_bounds = array<i64: 512, 64>}, {pipeline_mode = #tpu.pipeline_mode<synchronous>, transform_indices = @transform_2, window_bounds = array<i64: 1, 64>}, {pipeline_mode = #tpu.pipeline_mode<synchronous>, transform_indices = @transform_3, window_bounds = array<i64: 64, 2>}, {pipeline_mode = #tpu.pipeline_mode<synchronous>, transform_indices = @transform_4, window_bounds = array<i64: 1, 2>}, {pipeline_mode = #tpu.pipeline_mode<synchronous>, transform_indices = @transform_5, window_bounds = array<i64: 2, 2>}]} {
    %c0 = arith.constant 0 : index
    %c0_0 = arith.constant 0 : index
    %0 = vector.load %arg1[%c0, %c0_0] : memref<2x512xf32, #tpu.memory_space<vmem>>, vector<2x512xf32>
    %c0_1 = arith.constant 0 : index
    %c0_2 = arith.constant 0 : index
    %1 = vector.load %arg2[%c0_1, %c0_2] : memref<512x64xf32, #tpu.memory_space<vmem>>, vector<512x64xf32>
    %cst = arith.constant dense<0.000000e+00> : vector<2x64xf32>
    %2 = tpu.matmul %0, %1, %cst {dimension_numbers = #tpu.dot_dimension_numbers<[1], [0], [0], [1], [0, 0, 1, 1], [], []>} : vector<2x512xf32>, vector<512x64xf32>, vector<2x64xf32> -> vector<2x64xf32>
    %c0_3 = arith.constant 0 : index
    %c0_4 = arith.constant 0 : index
    %3 = vector.load %arg3[%c0_3, %c0_4] : memref<1x64xf32, #tpu.memory_space<vmem>>, vector<1x64xf32>
    %4 = vector.broadcast %3 : vector<1x64xf32> to vector<2x64xf32>
    %5 = arith.addf %2, %4 : vector<2x64xf32>
    %c0_5 = arith.constant 0 : index
    %c0_6 = arith.constant 0 : index
    %6 = vector.load %arg4[%c0_5, %c0_6] : memref<64x2xf32, #tpu.memory_space<vmem>>, vector<64x2xf32>
    %cst_7 = arith.constant dense<0.000000e+00> : vector<2x2xf32>
    %7 = tpu.matmul %5, %6, %cst_7 {dimension_numbers = #tpu.dot_dimension_numbers<[1], [0], [0], [1], [0, 0, 1, 1], [], []>} : vector<2x64xf32>, vector<64x2xf32>, vector<2x2xf32> -> vector<2x2xf32>
    %c0_8 = arith.constant 0 : index
    %c0_9 = arith.constant 0 : index
    %8 = vector.load %arg5[%c0_8, %c0_9] : memref<1x2xf32, #tpu.memory_space<vmem>>, vector<1x2xf32>
    %9 = vector.broadcast %8 : vector<1x2xf32> to vector<2x2xf32>
    %10 = arith.addf %7, %9 : vector<2x2xf32>
    %c0_10 = arith.constant 0 : index
    %c0_11 = arith.constant 0 : index
    %11 = vector.load %arg6[%c0_10, %c0_11] : memref<2x2xf32, #tpu.memory_space<vmem>>, vector<2x2xf32>
    tpu.vector_store %arg6[%c0_10, %c0_11], %10 {strides = array<i32>} : memref<2x2xf32, #tpu.memory_space<vmem>>, vector<2x2xf32>,
    return
  }
  func.func @transform_0(%arg0: i32) -> (i32, i32) {
    %c0_i32 = arith.constant 0 : i32
    %c0_i32_0 = arith.constant 0 : i32
    %c0_i32_1 = arith.constant 0 : i32
    return %c0_i32, %c0_i32_0 : i32, i32
  }
  func.func @transform_1(%arg0: i32) -> (i32, i32) {
    %c0_i32 = arith.constant 0 : i32
    %c0_i32_0 = arith.constant 0 : i32
    %c0_i32_1 = arith.constant 0 : i32
    return %c0_i32, %c0_i32_0 : i32, i32
  }
  func.func @transform_2(%arg0: i32) -> (i32, i32) {
    %c0_i32 = arith.constant 0 : i32
    %c0_i32_0 = arith.constant 0 : i32
    %c0_i32_1 = arith.constant 0 : i32
    return %c0_i32, %c0_i32_0 : i32, i32
  }
  func.func @transform_3(%arg0: i32) -> (i32, i32) {
    %c0_i32 = arith.constant 0 : i32
    %c0_i32_0 = arith.constant 0 : i32
    %c0_i32_1 = arith.constant 0 : i32
    return %c0_i32, %c0_i32_0 : i32, i32
  }
  func.func @transform_4(%arg0: i32) -> (i32, i32) {
    %c0_i32 = arith.constant 0 : i32
    %c0_i32_0 = arith.constant 0 : i32
    %c0_i32_1 = arith.constant 0 : i32
    return %c0_i32, %c0_i32_0 : i32, i32
  }
  func.func @transform_5(%arg0: i32) -> (i32, i32) {
    %c0_i32 = arith.constant 0 : i32
    %c0_i32_0 = arith.constant 0 : i32
    %c0_i32_1 = arith.constant 0 : i32
    return %c0_i32, %c0_i32_0 : i32, i32
  }
}

</mosaic_0001>

<llo_original>
// kernel: cnn_forward.3
$region0: #{cnn_forward.3}
  #allocation0 [shape = 'u32[]', space=smem, size = 0x4, offset = 0x4, fixed_abs, tag = 'smem constant byte address 0x4 - core index']
  #allocation1 [shape = 'u32[144,128]{1,0:T(1,128)}', space=vmem, size = 0x12000, scoped, tag = 'internal scratch']
  %s0 = inlined_call_operand.vmem [shape: f32[2,512], index: 0, kind: input, shape index: {}]
  %s1 = inlined_call_operand.vmem [shape: f32[512,64], index: 1, kind: input, shape index: {}]
  %s2 = inlined_call_operand.vmem [shape: f32[1,64], index: 2, kind: input, shape index: {}]
  %s3 = inlined_call_operand.vmem [shape: f32[64,2], index: 3, kind: input, shape index: {}]
  %s4 = inlined_call_operand.vmem [shape: f32[1,2], index: 4, kind: input, shape index: {}]
  %s5 = inlined_call_operand.hbm [shape: f32[2,2], index: 5, kind: output, shape index: {}]
  %s6 = sld [smem:[#allocation0]]
  $region30: #{cnn_forward.3} parent=0
    _
  %s8 = ssub.s32 1, %s6
  %s9 = scalar_select 0, %s8, %s6
  $region1: #{cnn_forward.3} parent=0
    #allocation2 [shape = 'u8[1024]{0}', space=vmem, size = 0x400, scoped, tag = 'output window, operand 0, single buffered']
    #allocation3 [shape = 's32[1]{0}', space=sflag, size = 0x4, scoped, tag = 'scoped memory for cnn_forward.3']
    %10 = vsyncpa [#allocation3], 0
    // Predicated region
    $region2: #{cnn_forward.3} parent=1 // pred_check
      _
    $region3: #{cnn_forward.3} parent=1 // pred_check_branch
      %12 = sbr.rel (0) target = $region5
    $region4: #{cnn_forward.3} parent=1 // pred_region
      _
    $region5: #{cnn_forward.3} parent=1 // pred_fallthru
      _
    // Predicated region
    $region6: #{cnn_forward.3} parent=1 // pred_check
      _
    $region7: #{cnn_forward.3} parent=1 // pred_check_branch
      %14 = sbr.rel (0) target = $region9
    $region8: #{cnn_forward.3} parent=1 // pred_region
      _
    $region9: #{cnn_forward.3} parent=1 // pred_fallthru
      _
    // Predicated region
    $region10: #{cnn_forward.3} parent=1 // pred_check
      _
    $region11: #{cnn_forward.3} parent=1 // pred_check_branch
      %16 = sbr.rel (0) target = $region13
    $region12: #{cnn_forward.3} parent=1 // pred_region
      _
    $region13: #{cnn_forward.3} parent=1 // pred_fallthru
      _
    // Predicated region
    $region14: #{cnn_forward.3} parent=1 // pred_check
      _
    $region15: #{cnn_forward.3} parent=1 // pred_check_branch
      %18 = sbr.rel (0) target = $region17
    $region16: #{cnn_forward.3} parent=1 // pred_region
      _
    $region17: #{cnn_forward.3} parent=1 // pred_fallthru
      _
    // Predicated region
    $region18: #{cnn_forward.3} parent=1 // pred_check
      _
    $region19: #{cnn_forward.3} parent=1 // pred_check_branch
      %20 = sbr.rel (0) target = $region21
    $region20: #{cnn_forward.3} parent=1 // pred_region
      _
    $region21: #{cnn_forward.3} parent=1 // pred_fallthru
      _
    %v21 = vld [vmem:[%s0] sm:$0xff]
    %v22 = vld [vmem:[%s1] sm:$0xff]
    %v23 = vld [vmem:[%s1 + $0x8] sm:$0xff]
    %v24 = vld [vmem:[%s1 + $0x10] sm:$0xff]
    %v25 = vld [vmem:[%s1 + $0x18] sm:$0xff]
    %v26 = vld [vmem:[%s1 + $0x20] sm:$0xff]
    %v27 = vld [vmem:[%s1 + $0x28] sm:$0xff]
    %v28 = vld [vmem:[%s1 + $0x30] sm:$0xff]
    %v29 = vld [vmem:[%s1 + $0x38] sm:$0xff]
    %v30 = vld [vmem:[%s1 + $0x40] sm:$0xff]
    %v31 = vld [vmem:[%s1 + $0x48] sm:$0xff]
    %v32 = vld [vmem:[%s1 + $0x50] sm:$0xff]
    %v33 = vld [vmem:[%s1 + $0x58] sm:$0xff]
    %v34 = vld [vmem:[%s1 + $0x60] sm:$0xff]
    %v35 = vld [vmem:[%s1 + $0x68] sm:$0xff]
    %v36 = vld [vmem:[%s1 + $0x70] sm:$0xff]
    %v37 = vld [vmem:[%s1 + $0x78] sm:$0xff]
    %v38 = vld [vmem:[%s1 + $0x80] sm:$0xff]
    %v39 = vld [vmem:[%s1 + $0x88] sm:$0xff]
    %v40 = vld [vmem:[%s1 + $0x90] sm:$0xff]
    %v41 = vld [vmem:[%s1 + $0x98] sm:$0xff]
    %v42 = vld [vmem:[%s1 + $0xa0] sm:$0xff]
    %v43 = vld [vmem:[%s1 + $0xa8] sm:$0xff]
    %v44 = vld [vmem:[%s1 + $0xb0] sm:$0xff]
    %v45 = vld [vmem:[%s1 + $0xb8] sm:$0xff]
    %v46 = vld [vmem:[%s1 + $0xc0] sm:$0xff]
    %v47 = vld [vmem:[%s1 + $0xc8] sm:$0xff]
    %v48 = vld [vmem:[%s1 + $0xd0] sm:$0xff]
    %v49 = vld [vmem:[%s1 + $0xd8] sm:$0xff]
    %v50 = vld [vmem:[%s1 + $0xe0] sm:$0xff]
    %v51 = vld [vmem:[%s1 + $0xe8] sm:$0xff]
    %v52 = vld [vmem:[%s1 + $0xf0] sm:$0xff]
    %v53 = vld [vmem:[%s1 + $0xf8] sm:$0xff]
    %v54 = vld [vmem:[%s1 + $0x100] sm:$0xff]
    %v55 = vld [vmem:[%s1 + $0x108] sm:$0xff]
    %v56 = vld [vmem:[%s1 + $0x110] sm:$0xff]
    %v57 = vld [vmem:[%s1 + $0x118] sm:$0xff]
    %v58 = vld [vmem:[%s1 + $0x120] sm:$0xff]
    %v59 = vld [vmem:[%s1 + $0x128] sm:$0xff]
    %v60 = vld [vmem:[%s1 + $0x130] sm:$0xff]
    %v61 = vld [vmem:[%s1 + $0x138] sm:$0xff]
    %v62 = vld [vmem:[%s1 + $0x140] sm:$0xff]
    %v63 = vld [vmem:[%s1 + $0x148] sm:$0xff]
    %v64 = vld [vmem:[%s1 + $0x150] sm:$0xff]
    %v65 = vld [vmem:[%s1 + $0x158] sm:$0xff]
    %v66 = vld [vmem:[%s1 + $0x160] sm:$0xff]
    %v67 = vld [vmem:[%s1 + $0x168] sm:$0xff]
    %v68 = vld [vmem:[%s1 + $0x170] sm:$0xff]
    %v69 = vld [vmem:[%s1 + $0x178] sm:$0xff]
    %v70 = vld [vmem:[%s1 + $0x180] sm:$0xff]
    %v71 = vld [vmem:[%s1 + $0x188] sm:$0xff]
    %v72 = vld [vmem:[%s1 + $0x190] sm:$0xff]
    %v73 = vld [vmem:[%s1 + $0x198] sm:$0xff]
    %v74 = vld [vmem:[%s1 + $0x1a0] sm:$0xff]
    %v75 = vld [vmem:[%s1 + $0x1a8] sm:$0xff]
    %v76 = vld [vmem:[%s1 + $0x1b0] sm:$0xff]
    %v77 = vld [vmem:[%s1 + $0x1b8] sm:$0xff]
    %v78 = vld [vmem:[%s1 + $0x1c0] sm:$0xff]
    %v79 = vld [vmem:[%s1 + $0x1c8] sm:$0xff]
    %v80 = vld [vmem:[%s1 + $0x1d0] sm:$0xff]
    %v81 = vld [vmem:[%s1 + $0x1d8] sm:$0xff]
    %v82 = vld [vmem:[%s1 + $0x1e0] sm:$0xff]
    %v83 = vld [vmem:[%s1 + $0x1e8] sm:$0xff]
    %v84 = vld [vmem:[%s1 + $0x1f0] sm:$0xff]
    %v85 = vld [vmem:[%s1 + $0x1f8] sm:$0xff]
    %v86 = vld [vmem:[%s2] sm:$0x1]
    %v88 = vlaneseq
    %v89 = vshrl.u32 %v88, 7
    %v90 = vsub.s32 0, %v89
    %v91 = vrot.slane %v86, %v90
    %v94 = vcombine.high %v21, %v21
    %v96 = vunpack.c.l.s4 1983009808
    %v97 = vunpack.c.0.s8 %v96
    %v98 = vlaneseq
    %v99 = vshrl.u32 %v98, 7
    %v100 = vsub.s32 %v97, %v99
    %v101 = vrot.slane %v21, %v100
    %v103 = vunpack.c.l.s4 1983009808
    %v104 = vunpack.c.0.s8 %v103
    %v105 = vlaneseq
    %v106 = vshrl.u32 %v105, 7
    %v107 = vsub.s32 %v104, %v106
    %v108 = vrot.slane %v94, %v107
    %v109 = vcombine.high %v101, %v101
    %v110 = vcombine.high %v108, %v108
    %115 = vmatprep.subr.mxu0 0.0
    %116 = vmatpush1.msra.mxu0 %v37
    %117 = vmatprep.subr.mxu0 0.0
    %118 = vmatpush1.msra.mxu0 %v36
    %119 = vmatprep.subr.mxu0 0.0
    %120 = vmatpush1.msra.mxu0 %v35
    %121 = vmatprep.subr.mxu0 0.0
    %122 = vmatpush1.msra.mxu0 %v34
    %123 = vmatprep.subr.mxu0 0.0
    %124 = vmatpush1.msra.mxu0 %v33
    %125 = vmatprep.subr.mxu0 0.0
    %126 = vmatpush1.msra.mxu0 %v32
    %127 = vmatprep.subr.mxu0 0.0
    %128 = vmatpush1.msra.mxu0 %v31
    %129 = vmatprep.subr.mxu0 0.0
    %130 = vmatpush1.msra.mxu0 %v30
    %131 = vmatprep.subr.mxu0 0.0
    %132 = vmatpush1.msra.mxu0 %v29
    %133 = vmatprep.subr.mxu0 0.0
    %134 = vmatpush1.msra.mxu0 %v28
    %135 = vmatprep.subr.mxu0 0.0
    %136 = vmatpush1.msra.mxu0 %v27
    %137 = vmatprep.subr.mxu0 0.0
    %138 = vmatpush1.msra.mxu0 %v26
    %139 = vmatprep.subr.mxu0 0.0
    %140 = vmatpush1.msra.mxu0 %v25
    %141 = vmatprep.subr.mxu0 0.0
    %142 = vmatpush1.msra.mxu0 %v24
    %143 = vmatprep.subr.mxu0 0.0
    %144 = vmatpush1.msra.mxu0 %v23
    %145 = vmatprep.subr.mxu0 0.0
    %146 = vmatpush1.msra.mxu0 %v22
    %147 = vmatprep.subr.mxu0 0.0
    %148 = vmatpush2.msra.mxu0 %v53
    %149 = vmatprep.subr.mxu0 0.0
    %150 = vmatpush2.msra.mxu0 %v52
    %151 = vmatprep.subr.mxu0 0.0
    %152 = vmatpush2.msra.mxu0 %v51
    %153 = vmatprep.subr.mxu0 0.0
    %154 = vmatpush2.msra.mxu0 %v50
    %155 = vmatprep.subr.mxu0 0.0
    %156 = vmatpush2.msra.mxu0 %v49
    %157 = vmatprep.subr.mxu0 0.0
    %158 = vmatpush2.msra.mxu0 %v48
    %159 = vmatprep.subr.mxu0 0.0
    %160 = vmatpush2.msra.mxu0 %v47
    %161 = vmatprep.subr.mxu0 0.0
    %162 = vmatpush2.msra.mxu0 %v46
    %163 = vmatprep.subr.mxu0 0.0
    %164 = vmatpush2.msra.mxu0 %v45
    %165 = vmatprep.subr.mxu0 0.0
    %166 = vmatpush2.msra.mxu0 %v44
    %167 = vmatprep.subr.mxu0 0.0
    %168 = vmatpush2.msra.mxu0 %v43
    %169 = vmatprep.subr.mxu0 0.0
    %170 = vmatpush2.msra.mxu0 %v42
    %171 = vmatprep.subr.mxu0 0.0
    %172 = vmatpush2.msra.mxu0 %v41
    %173 = vmatprep.subr.mxu0 0.0
    %174 = vmatpush2.msra.mxu0 %v40
    %175 = vmatprep.subr.mxu0 0.0
    %176 = vmatpush2.msra.mxu0 %v39
    %177 = vmatprep.subr.mxu0 0.0
    %178 = vmatpush2.msra.mxu0 %v38
    %179 = vmatprep.mubr.f32.mxu0 %v109
    %180 = vmatmul.mubr.f32.gmra.mxu0 %v101
    %v181 = vpop.f32.mrf.mxu0
    %v182 = vadd.f32 %v91, %v181
    %v183 = vpop.f32.mrf.mxu0
    %184 = vdwg.mxu0
    %185 = vmatprep.subr.mxu0 0.0
    %186 = vmatpush1.msra.mxu0 %v69
    %187 = vmatprep.subr.mxu0 0.0
    %188 = vmatpush1.msra.mxu0 %v68
    %189 = vmatprep.subr.mxu0 0.0
    %190 = vmatpush1.msra.mxu0 %v67
    %191 = vmatprep.subr.mxu0 0.0
    %192 = vmatpush1.msra.mxu0 %v66
    %193 = vmatprep.subr.mxu0 0.0
    %194 = vmatpush1.msra.mxu0 %v65
    %195 = vmatprep.subr.mxu0 0.0
    %196 = vmatpush1.msra.mxu0 %v64
    %197 = vmatprep.subr.mxu0 0.0
    %198 = vmatpush1.msra.mxu0 %v63
    %199 = vmatprep.subr.mxu0 0.0
    %200 = vmatpush1.msra.mxu0 %v62
    %201 = vmatprep.subr.mxu0 0.0
    %202 = vmatpush1.msra.mxu0 %v61
    %203 = vmatprep.subr.mxu0 0.0
    %204 = vmatpush1.msra.mxu0 %v60
    %205 = vmatprep.subr.mxu0 0.0
    %206 = vmatpush1.msra.mxu0 %v59
    %207 = vmatprep.subr.mxu0 0.0
    %208 = vmatpush1.msra.mxu0 %v58
    %209 = vmatprep.subr.mxu0 0.0
    %210 = vmatpush1.msra.mxu0 %v57
    %211 = vmatprep.subr.mxu0 0.0
    %212 = vmatpush1.msra.mxu0 %v56
    %213 = vmatprep.subr.mxu0 0.0
    %214 = vmatpush1.msra.mxu0 %v55
    %215 = vmatprep.subr.mxu0 0.0
    %216 = vmatpush1.msra.mxu0 %v54
    %217 = vmatprep.subr.mxu0 0.0
    %218 = vmatpush2.msra.mxu0 %v85
    %219 = vmatprep.subr.mxu0 0.0
    %220 = vmatpush2.msra.mxu0 %v84
    %221 = vmatprep.subr.mxu0 0.0
    %222 = vmatpush2.msra.mxu0 %v83
    %223 = vmatprep.subr.mxu0 0.0
    %224 = vmatpush2.msra.mxu0 %v82
    %225 = vmatprep.subr.mxu0 0.0
    %226 = vmatpush2.msra.mxu0 %v81
    %227 = vmatprep.subr.mxu0 0.0
    %228 = vmatpush2.msra.mxu0 %v80
    %229 = vmatprep.subr.mxu0 0.0
    %230 = vmatpush2.msra.mxu0 %v79
    %231 = vmatprep.subr.mxu0 0.0
    %232 = vmatpush2.msra.mxu0 %v78
    %233 = vmatprep.subr.mxu0 0.0
    %234 = vmatpush2.msra.mxu0 %v77
    %235 = vmatprep.subr.mxu0 0.0
    %236 = vmatpush2.msra.mxu0 %v76
    %237 = vmatprep.subr.mxu0 0.0
    %238 = vmatpush2.msra.mxu0 %v75
    %239 = vmatprep.subr.mxu0 0.0
    %240 = vmatpush2.msra.mxu0 %v74
    %241 = vmatprep.subr.mxu0 0.0
    %242 = vmatpush2.msra.mxu0 %v73
    %243 = vmatprep.subr.mxu0 0.0
    %244 = vmatpush2.msra.mxu0 %v72
    %245 = vmatprep.subr.mxu0 0.0
    %246 = vmatpush2.msra.mxu0 %v71
    %247 = vmatprep.subr.mxu0 0.0
    %248 = vmatpush2.msra.mxu0 %v70
    %249 = vmatprep.mubr.f32.mxu0 %v110
    %250 = vmatmul.mubr.f32.gmra.mxu0 %v108
    %v251 = vpop.f32.mrf.mxu0
    %v252 = vadd.f32 %v182, %v251
    %v253 = vpop.f32.mrf.mxu0
    %254 = vdwg.mxu0
    %v255 = vld [vmem:[%s3] sm:$0xff]
    %v256 = vld [vmem:[%s3 + $0x8] sm:$0xff]
    %v257 = vld [vmem:[%s3 + $0x10] sm:$0xff]
    %v258 = vld [vmem:[%s3 + $0x18] sm:$0xff]
    %v259 = vld [vmem:[%s3 + $0x20] sm:$0xff]
    %v260 = vld [vmem:[%s3 + $0x28] sm:$0xff]
    %v261 = vld [vmem:[%s3 + $0x30] sm:$0xff]
    %v262 = vld [vmem:[%s3 + $0x38] sm:$0xff]
    %v263 = vld [vmem:[%s4] sm:$0x1]
    %v265 = vlaneseq
    %v266 = vshrl.u32 %v265, 7
    %v267 = vsub.s32 0, %v266
    %v268 = vrot.slane %v263, %v267
    %vm270 = vcmask 523264
    %v272 = vsel %vm270, %v252, 0
    %274 = vmatprep.subr.mxu0 0.0
    %275 = vmatpush1.msra.mxu0 0.0
    %276 = vmatprep.subr.mxu0 0.0
    %277 = vmatpush1.msra.mxu0 0.0
    %278 = vmatprep.subr.mxu0 0.0
    %279 = vmatpush1.msra.mxu0 0.0
    %280 = vmatprep.subr.mxu0 0.0
    %281 = vmatpush1.msra.mxu0 0.0
    %282 = vmatprep.subr.mxu0 0.0
    %283 = vmatpush1.msra.mxu0 0.0
    %284 = vmatprep.subr.mxu0 0.0
    %285 = vmatpush1.msra.mxu0 0.0
    %286 = vmatprep.subr.mxu0 0.0
    %287 = vmatpush1.msra.mxu0 0.0
    %288 = vmatprep.subr.mxu0 0.0
    %289 = vmatpush1.msra.mxu0 0.0
    %290 = vmatprep.subr.mxu0 0.0
    %291 = vmatpush1.msra.mxu0 %v262
    %292 = vmatprep.subr.mxu0 0.0
    %293 = vmatpush1.msra.mxu0 %v261
    %294 = vmatprep.subr.mxu0 0.0
    %295 = vmatpush1.msra.mxu0 %v260
    %296 = vmatprep.subr.mxu0 0.0
    %297 = vmatpush1.msra.mxu0 %v259
    %298 = vmatprep.subr.mxu0 0.0
    %299 = vmatpush1.msra.mxu0 %v258
    %300 = vmatprep.subr.mxu0 0.0
    %301 = vmatpush1.msra.mxu0 %v257
    %302 = vmatprep.subr.mxu0 0.0
    %303 = vmatpush1.msra.mxu0 %v256
    %304 = vmatprep.subr.mxu0 0.0
    %305 = vmatpush1.msra.mxu0 %v255
    %306 = vmatprep.subr.mxu0 0.0
    %307 = vmatpush2.msra.mxu0 0.0
    %308 = vmatprep.subr.mxu0 0.0
    %309 = vmatpush2.msra.mxu0 0.0
    %310 = vmatprep.subr.mxu0 0.0
    %311 = vmatpush2.msra.mxu0 0.0
    %312 = vmatprep.subr.mxu0 0.0
    %313 = vmatpush2.msra.mxu0 0.0
    %314 = vmatprep.subr.mxu0 0.0
    %315 = vmatpush2.msra.mxu0 0.0
    %316 = vmatprep.subr.mxu0 0.0
    %317 = vmatpush2.msra.mxu0 0.0
    %318 = vmatprep.subr.mxu0 0.0
    %319 = vmatpush2.msra.mxu0 0.0
    %320 = vmatprep.subr.mxu0 0.0
    %321 = vmatpush2.msra.mxu0 0.0
    %322 = vmatprep.subr.mxu0 0.0
    %323 = vmatpush2.msra.mxu0 0.0
    %324 = vmatprep.subr.mxu0 0.0
    %325 = vmatpush2.msra.mxu0 0.0
    %326 = vmatprep.subr.mxu0 0.0
    %327 = vmatpush2.msra.mxu0 0.0
    %328 = vmatprep.subr.mxu0 0.0
    %329 = vmatpush2.msra.mxu0 0.0
    %330 = vmatprep.subr.mxu0 0.0
    %331 = vmatpush2.msra.mxu0 0.0
    %332 = vmatprep.subr.mxu0 0.0
    %333 = vmatpush2.msra.mxu0 0.0
    %334 = vmatprep.subr.mxu0 0.0
    %335 = vmatpush2.msra.mxu0 0.0
    %336 = vmatprep.subr.mxu0 0.0
    %337 = vmatpush2.msra.mxu0 0.0
    %338 = vmatprep.mubr.f32.mxu0 0.0
    %339 = vmatmul.mubr.f32.gmra.mxu0 %v272
    %v340 = vpop.f32.mrf.mxu0
    %v341 = vadd.f32 %v268, %v340
    %v342 = vpop.f32.mrf.mxu0
    %343 = vdwg.mxu0
    %vm344 = vcmask 9216
    %345 = vst.msk [vmem:[#allocation2] sm:$0x3] %vm344, %v341
    // Predicated region
    $region22: #{cnn_forward.3} parent=1 // pred_check
      _
    $region23: #{cnn_forward.3} parent=1 // pred_check_branch
      %347 = sbr.rel (0) target = $region25
    $region24: #{cnn_forward.3} parent=1 // pred_region
      %s349 = ssub.s32 32, 32
      %350 = vsyncadd [#allocation3], %s349
      %s352 = sshll.u32 [#allocation2], 4
      %s353 = int_to_ptr.vmem [resolvable:$true] %s352
      %355 = dma.vmem_to_hbm [thread:$0]  %s353, 32, %s5, [#allocation3]
    $region25: #{cnn_forward.3} parent=1 // pred_fallthru
      _
    // Predicated region
    $region26: #{cnn_forward.3} parent=1 // pred_check
      _
    $region27: #{cnn_forward.3} parent=1 // pred_check_branch
      %357 = sbr.rel (0) target = $region29
    $region28: #{cnn_forward.3} parent=1 // pred_region
      %358 = dma.done [#allocation3], 32
    $region29: #{cnn_forward.3} parent=1 // pred_fallthru
      _
    %359 = vsyncpa [#allocation3], 1

// kernel: cnn_forward.2
$region0: #{cnn_forward.2}
  #allocation0 [shape = 'u32[]', space=smem, size = 0x4, offset = 0x4, fixed_abs, tag = 'smem constant byte address 0x4 - core index']
  #allocation1 [shape = 'u32[144,128]{1,0:T(1,128)}', space=vmem, size = 0x12000, scoped, tag = 'internal scratch']
  #allocation2 [shape = 'f32[2,256]{1,0:T(2,128)}', space=vmem, size = 0x800, scoped, tag = 'scratch operand']
  %s0 = inlined_call_operand.vmem [shape: bf16[2,11520], index: 0, kind: input, shape index: {}]
  %s1 = inlined_call_operand.hbm [shape: bf16[11520,512], index: 1, kind: input, shape index: {}]
  %s2 = inlined_call_operand.hbm [shape: f32[1,512], index: 2, kind: input, shape index: {}]
  %s3 = inlined_call_operand.vmem [shape: f32[2,512], index: 3, kind: output, shape index: {}]
  %s4 = sld [smem:[#allocation0]]
  $region61: #{cnn_forward.2} parent=0
    _
  %s6 = ssub.s32 1, %s4
  %s7 = scalar_select 0, %s6, %s4
  $region1: #{cnn_forward.2} parent=0
    #allocation3 [shape = 'u8[3932160]{0}', space=vmem, size = 0x3c0000, scoped, tag = 'input window, operand 1']
    #allocation4 [shape = 's32[2]{0}', space=sflag, size = 0x8, scoped, tag = 'scoped memory for cnn_forward.2']
    #allocation5 [shape = 'u8[2048]{0}', space=vmem, size = 0x800, scoped, tag = 'input window, operand 2']
    #allocation6 [shape = 's32[2]{0}', space=sflag, size = 0x8, scoped, tag = 'scoped memory for cnn_forward.2']
    %8 = vsyncpa [#allocation4], 0
    %s9 = scalar_lea.sflag [#allocation4], 1
    %10 = vsyncpa %s9, 0
    %11 = vsyncpa [#allocation6], 0
    %s12 = scalar_lea.sflag [#allocation6], 1
    %13 = vsyncpa %s12, 0
    loop: start=0, step=1, limit=8
    $region2: #{cnn_forward.2} parent=1 // loop_pre_header
      _
    $region3: #{cnn_forward.2} parent=1 // loop_header
      %s15 = sphi 0, %s19
      %p16 = scmp.ge.s32.totalorder %s15, 8
      %s22 = sphi 0, %s34
      %s23 = sphi 0, %s30
      %s24 = sphi 0, %s22
      %s25 = sphi 0, %s23
      %s26 = sphi 0, %s24
      %s27 = sphi 0, %s25
      %s37 = sphi 0, %s39
      %s40 = sphi 0, %s37
      %s41 = sphi 0, %s40
      %s57 = sphi 0, %s41
      %s65 = sphi 0, %s67
      %s68 = sphi 0, %s65
      %s69 = sphi 0, %s68
      %s85 = sphi 0, %s69
      %s91 = sphi 0, %s93
      %s94 = sphi 0, %s91
      %s95 = sphi 0, %s94
      %s111 = sphi 0, %s95
      %s117 = sphi 0, %s119
      %s120 = sphi 0, %s117
      %s121 = sphi 0, %s120
      %s137 = sphi 0, %s121
    $region4: #{cnn_forward.2} parent=1 // loop_header_branch
      %18 = sbr.rel (%p16) target = $region8
    $region5: #{cnn_forward.2} parent=1 // loop_body
      %s20 = ssub.s32 %s15, 1
      %s21 = ssub.s32 %s15, 2
      %s28 = sadd.s32 1, %s23
      %p29 = scmp.ge.s32.totalorder %s28, 3
      %s30 = scalar_select %p29, 0, %s28
      %s31 = sadd.s32 1, %s22
      %s32 = scalar_select %p29, %s31, %s22
      %p33 = scmp.ge.s32.totalorder %s32, 2
      %s34 = scalar_select %p33, 0, %s32
      %s35 = ssub.s32 %s23, %s30
      %p36 = scmp.eq.s32.totalorder %s35, 0
      %s38 = sadd.s32 %s37, 1
      %s39 = scalar_select %p36, %s37, %s38
      %p42 = pneg %p36
      %p43 = scmp.eq.s32.totalorder %s15, 5
      %p44 = por %p42, %p43
      %p45 = scmp.ne.s32.totalorder %s37, %s40
      %p46 = scmp.eq.s32.totalorder %s15, 0
      %p47 = por %p45, %p46
      %p48 = scmp.ne.s32.totalorder %s37, %s40
      %p49 = scmp.eq.s32.totalorder %s20, 5
      %p50 = por %p48, %p49
      %p51 = scmp.ne.s32.totalorder %s40, %s41
      %p52 = scmp.eq.s32.totalorder %s20, 0
      %p53 = por %p51, %p52
      %p54 = scmp.ne.s32.totalorder %s40, %s41
      %p55 = scmp.eq.s32.totalorder %s21, 5
      %p56 = por %p54, %p55
      %p58 = scmp.ne.s32.totalorder %s41, %s57
      %p59 = scmp.eq.s32.totalorder %s21, 0
      %p60 = por %p58, %p59
      %s61 = ssub.s32 %s23, %s30
      %s62 = ssub.s32 %s22, %s34
      %s63 = sor.u32 %s61, %s62
      %p64 = scmp.eq.s32.totalorder %s63, 0
      %s66 = sadd.s32 %s65, 1
      %s67 = scalar_select %p64, %s65, %s66
      %p70 = pneg %p64
      %p71 = scmp.eq.s32.totalorder %s15, 5
      %p72 = por %p70, %p71
      %p73 = scmp.ne.s32.totalorder %s65, %s68
      %p74 = scmp.eq.s32.totalorder %s15, 0
      %p75 = por %p73, %p74
      %p76 = scmp.ne.s32.totalorder %s65, %s68
      %p77 = scmp.eq.s32.totalorder %s20, 5
      %p78 = por %p76, %p77
      %p79 = scmp.ne.s32.totalorder %s68, %s69
      %p80 = scmp.eq.s32.totalorder %s20, 0
      %p81 = por %p79, %p80
      %p82 = scmp.ne.s32.totalorder %s68, %s69
      %p83 = scmp.eq.s32.totalorder %s21, 5
      %p84 = por %p82, %p83
      %p86 = scmp.ne.s32.totalorder %s69, %s85
      %p87 = scmp.eq.s32.totalorder %s21, 0
      %p88 = por %p86, %p87
      %s89 = ssub.s32 %s22, %s34
      %p90 = scmp.eq.s32.totalorder %s89, 0
      %s92 = sadd.s32 %s91, 1
      %s93 = scalar_select %p90, %s91, %s92
      %p96 = pneg %p90
      %p97 = scmp.eq.s32.totalorder %s15, 5
      %p98 = por %p96, %p97
      %p99 = scmp.ne.s32.totalorder %s91, %s94
      %p100 = scmp.eq.s32.totalorder %s15, 0
      %p101 = por %p99, %p100
      %p102 = scmp.ne.s32.totalorder %s91, %s94
      %p103 = scmp.eq.s32.totalorder %s20, 5
      %p104 = por %p102, %p103
      %p105 = scmp.ne.s32.totalorder %s94, %s95
      %p106 = scmp.eq.s32.totalorder %s20, 0
      %p107 = por %p105, %p106
      %p108 = scmp.ne.s32.totalorder %s94, %s95
      %p109 = scmp.eq.s32.totalorder %s21, 5
      %p110 = por %p108, %p109
      %p112 = scmp.ne.s32.totalorder %s95, %s111
      %p113 = scmp.eq.s32.totalorder %s21, 0
      %p114 = por %p112, %p113
      %s115 = ssub.s32 %s22, %s34
      %p116 = scmp.eq.s32.totalorder %s115, 0
      %s118 = sadd.s32 %s117, 1
      %s119 = scalar_select %p116, %s117, %s118
      %p122 = pneg %p116
      %p123 = scmp.eq.s32.totalorder %s15, 5
      %p124 = por %p122, %p123
      %p125 = scmp.ne.s32.totalorder %s117, %s120
      %p126 = scmp.eq.s32.totalorder %s15, 0
      %p127 = por %p125, %p126
      %p128 = scmp.ne.s32.totalorder %s117, %s120
      %p129 = scmp.eq.s32.totalorder %s20, 5
      %p130 = por %p128, %p129
      %p131 = scmp.ne.s32.totalorder %s120, %s121
      %p132 = scmp.eq.s32.totalorder %s20, 0
      %p133 = por %p131, %p132
      %p134 = scmp.ne.s32.totalorder %s120, %s121
      %p135 = scmp.eq.s32.totalorder %s21, 5
      %p136 = por %p134, %p135
      %p138 = scmp.ne.s32.totalorder %s121, %s137
      %p139 = scmp.eq.s32.totalorder %s21, 0
      %p140 = por %p138, %p139
      %p141 = scmp.le.s32.totalorder 1, %s15
      %p142 = scmp.lt.s32.totalorder %s15, 7
      %p143 = pnand %p141, %p142
      %p144 = pneg %p143
      // Predicated region
      $region9: #{cnn_forward.2} parent=5 // pred_check
        _
      $region10: #{cnn_forward.2} parent=5 // pred_check_branch
        %146 = sbr.rel (%p143) target = $region12
      $region11: #{cnn_forward.2} parent=5 // pred_region
        %s147 = ssub.s32 %s15, 1
      $region12: #{cnn_forward.2} parent=5 // pred_fallthru
        _
      %p148 = scmp.lt.s32.totalorder %s15, 6
      // Predicated region
      $region13: #{cnn_forward.2} parent=5 // pred_check
        %p149 = pneg %p148
      $region14: #{cnn_forward.2} parent=5 // pred_check_branch
        %151 = sbr.rel (%p149) target = $region16
      $region15: #{cnn_forward.2} parent=5 // pred_region
        // Predicated region
        $region17: #{cnn_forward.2} parent=15 // pred_check
          %p152 = pneg %p47
        $region18: #{cnn_forward.2} parent=15 // pred_check_branch
          %154 = sbr.rel (%p152) target = $region20
        $region19: #{cnn_forward.2} parent=15 // pred_region
          %s155 = smul.u32 30, %s23
          %p156 = scmp.lt.s32.totalorder %s155, 89
          %s157 = scalar_select %p156, %s155, 89
          %s158 = scalar_lea.vmem %s0, %s157
          %s159 = smul.u32 30, %s23
        $region20: #{cnn_forward.2} parent=15 // pred_fallthru
          _
        // Predicated region
        $region21: #{cnn_forward.2} parent=15 // pred_check
          %p160 = pneg %p75
        $region22: #{cnn_forward.2} parent=15 // pred_check_branch
          %162 = sbr.rel (%p160) target = $region24
        $region23: #{cnn_forward.2} parent=15 // pred_region
          %s163 = sand.u32 %s65, 1
          %s164 = scalar_lea.sflag [#allocation4], %s163
          %s165 = sand.u32 %s65, 1
          %s166 = smul.addr %s165, 3840
          %s167 = scalar_lea.vmem [#allocation3], %s166
          %s168 = smul.u32 480, %s23
          %s169 = smul.u32 2, %s22
          %s171 = ssub.s32 61440, 61440
          %172 = vsyncadd %s164, %s171
          %s173 = smul.addr %s168, 4
          %s174 = sadd.s32 %s169, %s173
          %s175 = smul.addr %s174, 64
          %s176 = scalar_lea.hbm %s1, %s175
          %s177 = sshll.u32 %s167, 4
          %s178 = int_to_ptr.vmem [resolvable:$true] %s177
          %183 = dma.hbm_to_vmem [thread:$0]  %s176, 61440, %s178, %s164, 256, 128, 8
        $region24: #{cnn_forward.2} parent=15 // pred_fallthru
          _
        // Predicated region
        $region25: #{cnn_forward.2} parent=15 // pred_check
          %p184 = pneg %p101
        $region26: #{cnn_forward.2} parent=15 // pred_check_branch
          %186 = sbr.rel (%p184) target = $region28
        $region27: #{cnn_forward.2} parent=15 // pred_region
          %s187 = sand.u32 %s91, 1
          %s188 = scalar_lea.sflag [#allocation6], %s187
          %s189 = sand.u32 %s91, 1
          %s190 = smul.addr %s189, 2
          %s191 = scalar_lea.vmem [#allocation5], %s190
          %s192 = smul.u32 2, %s22
          %s194 = ssub.s32 32, 32
          %195 = vsyncadd %s188, %s194
          %s196 = smul.addr %s192, 16
          %s197 = scalar_lea.hbm %s2, %s196
          %s199 = sshll.u32 %s191, 4
          %s200 = int_to_ptr.vmem [resolvable:$true] %s199
          %202 = dma.hbm_to_vmem [thread:$0]  %s197, 32, %s200, %s188
        $region28: #{cnn_forward.2} parent=15 // pred_fallthru
          _
      $region16: #{cnn_forward.2} parent=5 // pred_fallthru
        _
      %p203 = scmp.le.s32.totalorder 1, %s15
      %p204 = scmp.lt.s32.totalorder %s15, 7
      %p205 = pnand %p203, %p204
      %p206 = pneg %p205
      // Predicated region
      $region29: #{cnn_forward.2} parent=5 // pred_check
        _
      $region30: #{cnn_forward.2} parent=5 // pred_check_branch
        %208 = sbr.rel (%p205) target = $region32
      $region31: #{cnn_forward.2} parent=5 // pred_region
        %s209 = ssub.s32 %s15, 1
        %s210 = sand.u32 %s68, 1
        %s211 = scalar_lea.sflag [#allocation4], %s210
        %s212 = sand.u32 %s68, 1
        %s213 = smul.addr %s212, 3840
        %s214 = scalar_lea.vmem [#allocation3], %s213
        // Predicated region
        $region33: #{cnn_forward.2} parent=31 // pred_check
          %p215 = pneg %p81
        $region34: #{cnn_forward.2} parent=31 // pred_check_branch
          %217 = sbr.rel (%p215) target = $region36
        $region35: #{cnn_forward.2} parent=31 // pred_region
          %218 = dma.done %s211, 61440
        $region36: #{cnn_forward.2} parent=31 // pred_fallthru
          _
        %s219 = sand.u32 %s94, 1
        %s220 = scalar_lea.sflag [#allocation6], %s219
        %s221 = sand.u32 %s94, 1
        %s222 = smul.addr %s221, 2
        %s223 = scalar_lea.vmem [#allocation5], %s222
        // Predicated region
        $region37: #{cnn_forward.2} parent=31 // pred_check
          %p224 = pneg %p107
        $region38: #{cnn_forward.2} parent=31 // pred_check_branch
          %226 = sbr.rel (%p224) target = $region40
        $region39: #{cnn_forward.2} parent=31 // pred_region
          %227 = dma.done %s220, 32
        $region40: #{cnn_forward.2} parent=31 // pred_fallthru
          _
        %s228 = smul.u32 30, %s25
        %p229 = scmp.lt.s32.totalorder %s228, 89
        %s230 = scalar_select %p229, %s228, 89
        %s231 = scalar_lea.vmem %s0, %s230
        %p232 = pneg %p53
        %p233 = pneg %p50
        %s234 = sand.u32 %s68, 1
        %s235 = scalar_lea.sflag [#allocation4], %s234
        %s236 = sand.u32 %s68, 1
        %s237 = smul.addr %s236, 3840
        %s238 = scalar_lea.vmem [#allocation3], %s237
        %p239 = pneg %p81
        %p240 = pneg %p78
        %s241 = sand.u32 %s94, 1
        %s242 = scalar_lea.sflag [#allocation6], %s241
        %s243 = sand.u32 %s94, 1
        %s244 = smul.addr %s243, 2
        %s245 = scalar_lea.vmem [#allocation5], %s244
        %p246 = pneg %p107
        %p247 = pneg %p104
        %p248 = pneg %p133
        %p249 = pneg %p130
        %s250 = smul.u32 2, %s24
        %p251 = scmp.lt.s32.totalorder %s250, 3
        %s252 = scalar_select %p251, %s250, 3
        %s253 = smul.addr %s252, 2
        %s254 = scalar_lea.vmem %s3, %s253
        %s255 = smul.u32 30, %s25
        %p256 = scmp.lt.s32.totalorder %s255, 89
        %s257 = scalar_select %p256, %s255, 89
        %s258 = scalar_lea.vmem %s0, %s257
        %s259 = smul.u32 30, %s25
        %s260 = smul.u32 480, %s25
        %s261 = smul.u32 2, %s24
        %s262 = smul.u32 2, %s24
        %s263 = smul.u32 2, %s24
        %p264 = scmp.lt.s32.totalorder %s263, 3
        %s265 = scalar_select %p264, %s263, 3
        %s266 = smul.addr %s265, 2
        %s267 = scalar_lea.vmem %s3, %s266
        %s268 = smul.u32 2, %s24
        %p269 = scmp.eq.s32.totalorder %s25, 0
        // Predicated region
        $region41: #{cnn_forward.2} parent=31 // pred_check
          %p270 = pneg %p269
        $region42: #{cnn_forward.2} parent=31 // pred_check_branch
          %272 = sbr.rel (%p270) target = $region44
        $region43: #{cnn_forward.2} parent=31 // pred_region
          %273 = vst [vmem:[#allocation2] sm:$0xf] 0.0
        $region44: #{cnn_forward.2} parent=31 // pred_fallthru
          _
        %v274 = vld [vmem:[#allocation2] sm:$0xf]
        %v275 = vld [vmem:[%s258] sm:$0xff]
        %v276 = vld [vmem:[%s258 + $0x8] sm:$0xff]
        %v277 = vld [vmem:[%s258 + $0x10] sm:$0xff]
        %v278 = vld [vmem:[%s258 + $0x18] sm:$0x3f]
        %v279 = vld [vmem:[%s214] sm:$0xff]
        %v280 = vld [vmem:[%s214 + $0x8] sm:$0xff]
        %v281 = vld [vmem:[%s214 + $0x10] sm:$0xff]
        %v282 = vld [vmem:[%s214 + $0x18] sm:$0xff]
        %v283 = vld [vmem:[%s214 + $0x20] sm:$0xff]
        %v284 = vld [vmem:[%s214 + $0x28] sm:$0xff]
        %v285 = vld [vmem:[%s214 + $0x30] sm:$0xff]
        %v286 = vld [vmem:[%s214 + $0x38] sm:$0xff]
        %v287 = vld [vmem:[%s214 + $0x40] sm:$0xff]
        %v288 = vld [vmem:[%s214 + $0x48] sm:$0xff]
        %v289 = vld [vmem:[%s214 + $0x50] sm:$0xff]
        %v290 = vld [vmem:[%s214 + $0x58] sm:$0xff]
        %v291 = vld [vmem:[%s214 + $0x60] sm:$0xff]
        %v292 = vld [vmem:[%s214 + $0x68] sm:$0xff]
        %v293 = vld [vmem:[%s214 + $0x70] sm:$0xff]
        %v294 = vld [vmem:[%s214 + $0x78] sm:$0xff]
        %v295 = vld [vmem:[%s214 + $0x80] sm:$0xff]
        %v296 = vld [vmem:[%s214 + $0x88] sm:$0xff]
        %v297 = vld [vmem:[%s214 + $0x90] sm:$0xff]
        %v298 = vld [vmem:[%s214 + $0x98] sm:$0xff]
        %v299 = vld [vmem:[%s214 + $0xa0] sm:$0xff]
        %v300 = vld [vmem:[%s214 + $0xa8] sm:$0xff]
        %v301 = vld [vmem:[%s214 + $0xb0] sm:$0xff]
        %v302 = vld [vmem:[%s214 + $0xb8] sm:$0xff]
        %v303 = vld [vmem:[%s214 + $0xc0] sm:$0xff]
        %v304 = vld [vmem:[%s214 + $0xc8] sm:$0xff]
        %v305 = vld [vmem:[%s214 + $0xd0] sm:$0xff]
        %v306 = vld [vmem:[%s214 + $0xd8] sm:$0xff]
        %v307 = vld [vmem:[%s214 + $0xe0] sm:$0xff]
        %v308 = vld [vmem:[%s214 + $0xe8] sm:$0xff]
        %v309 = vld [vmem:[%s214 + $0xf0] sm:$0xff]
        %v310 = vld [vmem:[%s214 + $0xf8] sm:$0xff]
        %v311 = vld [vmem:[%s214 + $0x100] sm:$0xff]
        %v312 = vld [vmem:[%s214 + $0x108] sm:$0xff]
        %v313 = vld [vmem:[%s214 + $0x110] sm:$0xff]
        %v314 = vld [vmem:[%s214 + $0x118] sm:$0xff]
        %v315 = vld [vmem:[%s214 + $0x120] sm:$0xff]
        %v316 = vld [vmem:[%s214 + $0x128] sm:$0xff]
        %v317 = vld [vmem:[%s214 + $0x130] sm:$0xff]
        %v318 = vld [vmem:[%s214 + $0x138] sm:$0xff]
        %v319 = vld [vmem:[%s214 + $0x140] sm:$0xff]
        %v320 = vld [vmem:[%s214 + $0x148] sm:$0xff]
        %v321 = vld [vmem:[%s214 + $0x150] sm:$0xff]
        %v322 = vld [vmem:[%s214 + $0x158] sm:$0xff]
        %v323 = vld [vmem:[%s214 + $0x160] sm:$0xff]
        %v324 = vld [vmem:[%s214 + $0x168] sm:$0xff]
        %v325 = vld [vmem:[%s214 + $0x170] sm:$0xff]
        %v326 = vld [vmem:[%s214 + $0x178] sm:$0xff]
        %v327 = vld [vmem:[%s214 + $0x180] sm:$0xff]
        %v328 = vld [vmem:[%s214 + $0x188] sm:$0xff]
        %v329 = vld [vmem:[%s214 + $0x190] sm:$0xff]
        %v330 = vld [vmem:[%s214 + $0x198] sm:$0xff]
        %v331 = vld [vmem:[%s214 + $0x1a0] sm:$0xff]
        %v332 = vld [vmem:[%s214 + $0x1a8] sm:$0xff]
        %v333 = vld [vmem:[%s214 + $0x1b0] sm:$0xff]
        %v334 = vld [vmem:[%s214 + $0x1b8] sm:$0xff]
        %v335 = vld [vmem:[%s214 + $0x1c0] sm:$0xff]
        %v336 = vld [vmem:[%s214 + $0x1c8] sm:$0xff]
        %v337 = vld [vmem:[%s214 + $0x1d0] sm:$0xff]
        %v338 = vld [vmem:[%s214 + $0x1d8] sm:$0xff]
        %v339 = vld [vmem:[%s214 + $0x1e0] sm:$0xff]
        %v340 = vld [vmem:[%s214 + $0x1e8] sm:$0xff]
        %v341 = vld [vmem:[%s214 + $0x1f0] sm:$0xff]
        %v342 = vld [vmem:[%s214 + $0x1f8] sm:$0xff]
        %v343 = vld [vmem:[%s214 + $0x200] sm:$0xff]
        %v344 = vld [vmem:[%s214 + $0x208] sm:$0xff]
        %v345 = vld [vmem:[%s214 + $0x210] sm:$0xff]
        %v346 = vld [vmem:[%s214 + $0x218] sm:$0xff]
        %v347 = vld [vmem:[%s214 + $0x220] sm:$0xff]
        %v348 = vld [vmem:[%s214 + $0x228] sm:$0xff]
        %v349 = vld [vmem:[%s214 + $0x230] sm:$0xff]
        %v350 = vld [vmem:[%s214 + $0x238] sm:$0xff]
        %v351 = vld [vmem:[%s214 + $0x240] sm:$0xff]
        %v352 = vld [vmem:[%s214 + $0x248] sm:$0xff]
        %v353 = vld [vmem:[%s214 + $0x250] sm:$0xff]
        %v354 = vld [vmem:[%s214 + $0x258] sm:$0xff]
        %v355 = vld [vmem:[%s214 + $0x260] sm:$0xff]
        %v356 = vld [vmem:[%s214 + $0x268] sm:$0xff]
        %v357 = vld [vmem:[%s214 + $0x270] sm:$0xff]
        %v358 = vld [vmem:[%s214 + $0x278] sm:$0xff]
        %v359 = vld [vmem:[%s214 + $0x280] sm:$0xff]
        %v360 = vld [vmem:[%s214 + $0x288] sm:$0xff]
        %v361 = vld [vmem:[%s214 + $0x290] sm:$0xff]
        %v362 = vld [vmem:[%s214 + $0x298] sm:$0xff]
        %v363 = vld [vmem:[%s214 + $0x2a0] sm:$0xff]
        %v364 = vld [vmem:[%s214 + $0x2a8] sm:$0xff]
        %v365 = vld [vmem:[%s214 + $0x2b0] sm:$0xff]
        %v366 = vld [vmem:[%s214 + $0x2b8] sm:$0xff]
        %v367 = vld [vmem:[%s214 + $0x2c0] sm:$0xff]
        %v368 = vld [vmem:[%s214 + $0x2c8] sm:$0xff]
        %v369 = vld [vmem:[%s214 + $0x2d0] sm:$0xff]
        %v370 = vld [vmem:[%s214 + $0x2d8] sm:$0xff]
        %v371 = vld [vmem:[%s214 + $0x2e0] sm:$0xff]
        %v372 = vld [vmem:[%s214 + $0x2e8] sm:$0xff]
        %v373 = vld [vmem:[%s214 + $0x2f0] sm:$0xff]
        %v374 = vld [vmem:[%s214 + $0x2f8] sm:$0xff]
        %v375 = vld [vmem:[%s214 + $0x300] sm:$0xff]
        %v376 = vld [vmem:[%s214 + $0x308] sm:$0xff]
        %v377 = vld [vmem:[%s214 + $0x310] sm:$0xff]
        %v378 = vld [vmem:[%s214 + $0x318] sm:$0xff]
        %v379 = vld [vmem:[%s214 + $0x320] sm:$0xff]
        %v380 = vld [vmem:[%s214 + $0x328] sm:$0xff]
        %v381 = vld [vmem:[%s214 + $0x330] sm:$0xff]
        %v382 = vld [vmem:[%s214 + $0x338] sm:$0xff]
        %v383 = vld [vmem:[%s214 + $0x340] sm:$0xff]
        %v384 = vld [vmem:[%s214 + $0x348] sm:$0xff]
        %v385 = vld [vmem:[%s214 + $0x350] sm:$0xff]
        %v386 = vld [vmem:[%s214 + $0x358] sm:$0xff]
        %v387 = vld [vmem:[%s214 + $0x360] sm:$0xff]
        %v388 = vld [vmem:[%s214 + $0x368] sm:$0xff]
        %v389 = vld [vmem:[%s214 + $0x370] sm:$0xff]
        %v390 = vld [vmem:[%s214 + $0x378] sm:$0xff]
        %v391 = vld [vmem:[%s214 + $0x380] sm:$0xff]
        %v392 = vld [vmem:[%s214 + $0x388] sm:$0xff]
        %v393 = vld [vmem:[%s214 + $0x390] sm:$0xff]
        %v394 = vld [vmem:[%s214 + $0x398] sm:$0xff]
        %v395 = vld [vmem:[%s214 + $0x3a0] sm:$0xff]
        %v396 = vld [vmem:[%s214 + $0x3a8] sm:$0xff]
        %v397 = vld [vmem:[%s214 + $0x3b0] sm:$0xff]
        %v398 = vld [vmem:[%s214 + $0x3b8] sm:$0xff]
        %v399 = vld [vmem:[%s214 + $0x3c0] sm:$0xff]
        %v400 = vld [vmem:[%s214 + $0x3c8] sm:$0xff]
        %v401 = vld [vmem:[%s214 + $0x3d0] sm:$0xff]
        %v402 = vld [vmem:[%s214 + $0x3d8] sm:$0xff]
        %v403 = vld [vmem:[%s214 + $0x3e0] sm:$0xff]
        %v404 = vld [vmem:[%s214 + $0x3e8] sm:$0xff]
        %v405 = vld [vmem:[%s214 + $0x3f0] sm:$0xff]
        %v406 = vld [vmem:[%s214 + $0x3f8] sm:$0xff]
        %v407 = vld [vmem:[%s214 + $0x400] sm:$0xff]
        %v408 = vld [vmem:[%s214 + $0x408] sm:$0xff]
        %v409 = vld [vmem:[%s214 + $0x410] sm:$0xff]
        %v410 = vld [vmem:[%s214 + $0x418] sm:$0xff]
        %v411 = vld [vmem:[%s214 + $0x420] sm:$0xff]
        %v412 = vld [vmem:[%s214 + $0x428] sm:$0xff]
        %v413 = vld [vmem:[%s214 + $0x430] sm:$0xff]
        %v414 = vld [vmem:[%s214 + $0x438] sm:$0xff]
        %v415 = vld [vmem:[%s214 + $0x440] sm:$0xff]
        %v416 = vld [vmem:[%s214 + $0x448] sm:$0xff]
        %v417 = vld [vmem:[%s214 + $0x450] sm:$0xff]
        %v418 = vld [vmem:[%s214 + $0x458] sm:$0xff]
        %v419 = vld [vmem:[%s214 + $0x460] sm:$0xff]
        %v420 = vld [vmem:[%s214 + $0x468] sm:$0xff]
        %v421 = vld [vmem:[%s214 + $0x470] sm:$0xff]
        %v422 = vld [vmem:[%s214 + $0x478] sm:$0xff]
        %v423 = vld [vmem:[%s214 + $0x480] sm:$0xff]
        %v424 = vld [vmem:[%s214 + $0x488] sm:$0xff]
        %v425 = vld [vmem:[%s214 + $0x490] sm:$0xff]
        %v426 = vld [vmem:[%s214 + $0x498] sm:$0xff]
        %v427 = vld [vmem:[%s214 + $0x4a0] sm:$0xff]
        %v428 = vld [vmem:[%s214 + $0x4a8] sm:$0xff]
        %v429 = vld [vmem:[%s214 + $0x4b0] sm:$0xff]
        %v430 = vld [vmem:[%s214 + $0x4b8] sm:$0xff]
        %v431 = vld [vmem:[%s214 + $0x4c0] sm:$0xff]
        %v432 = vld [vmem:[%s214 + $0x4c8] sm:$0xff]
        %v433 = vld [vmem:[%s214 + $0x4d0] sm:$0xff]
        %v434 = vld [vmem:[%s214 + $0x4d8] sm:$0xff]
        %v435 = vld [vmem:[%s214 + $0x4e0] sm:$0xff]
        %v436 = vld [vmem:[%s214 + $0x4e8] sm:$0xff]
        %v437 = vld [vmem:[%s214 + $0x4f0] sm:$0xff]
        %v438 = vld [vmem:[%s214 + $0x4f8] sm:$0xff]
        %v439 = vld [vmem:[%s214 + $0x500] sm:$0xff]
        %v440 = vld [vmem:[%s214 + $0x508] sm:$0xff]
        %v441 = vld [vmem:[%s214 + $0x510] sm:$0xff]
        %v442 = vld [vmem:[%s214 + $0x518] sm:$0xff]
        %v443 = vld [vmem:[%s214 + $0x520] sm:$0xff]
        %v444 = vld [vmem:[%s214 + $0x528] sm:$0xff]
        %v445 = vld [vmem:[%s214 + $0x530] sm:$0xff]
        %v446 = vld [vmem:[%s214 + $0x538] sm:$0xff]
        %v447 = vld [vmem:[%s214 + $0x540] sm:$0xff]
        %v448 = vld [vmem:[%s214 + $0x548] sm:$0xff]
        %v449 = vld [vmem:[%s214 + $0x550] sm:$0xff]
        %v450 = vld [vmem:[%s214 + $0x558] sm:$0xff]
        %v451 = vld [vmem:[%s214 + $0x560] sm:$0xff]
        %v452 = vld [vmem:[%s214 + $0x568] sm:$0xff]
        %v453 = vld [vmem:[%s214 + $0x570] sm:$0xff]
        %v454 = vld [vmem:[%s214 + $0x578] sm:$0xff]
        %v455 = vld [vmem:[%s214 + $0x580] sm:$0xff]
        %v456 = vld [vmem:[%s214 + $0x588] sm:$0xff]
        %v457 = vld [vmem:[%s214 + $0x590] sm:$0xff]
        %v458 = vld [vmem:[%s214 + $0x598] sm:$0xff]
        %v459 = vld [vmem:[%s214 + $0x5a0] sm:$0xff]
        %v460 = vld [vmem:[%s214 + $0x5a8] sm:$0xff]
        %v461 = vld [vmem:[%s214 + $0x5b0] sm:$0xff]
        %v462 = vld [vmem:[%s214 + $0x5b8] sm:$0xff]
        %v463 = vld [vmem:[%s214 + $0x5c0] sm:$0xff]
        %v464 = vld [vmem:[%s214 + $0x5c8] sm:$0xff]
        %v465 = vld [vmem:[%s214 + $0x5d0] sm:$0xff]
        %v466 = vld [vmem:[%s214 + $0x5d8] sm:$0xff]
        %v467 = vld [vmem:[%s214 + $0x5e0] sm:$0xff]
        %v468 = vld [vmem:[%s214 + $0x5e8] sm:$0xff]
        %v469 = vld [vmem:[%s214 + $0x5f0] sm:$0xff]
        %v470 = vld [vmem:[%s214 + $0x5f8] sm:$0xff]
        %v471 = vld [vmem:[%s214 + $0x600] sm:$0xff]
        %v472 = vld [vmem:[%s214 + $0x608] sm:$0xff]
        %v473 = vld [vmem:[%s214 + $0x610] sm:$0xff]
        %v474 = vld [vmem:[%s214 + $0x618] sm:$0xff]
        %v475 = vld [vmem:[%s214 + $0x620] sm:$0xff]
        %v476 = vld [vmem:[%s214 + $0x628] sm:$0xff]
        %v477 = vld [vmem:[%s214 + $0x630] sm:$0xff]
        %v478 = vld [vmem:[%s214 + $0x638] sm:$0xff]
        %v479 = vld [vmem:[%s214 + $0x640] sm:$0xff]
        %v480 = vld [vmem:[%s214 + $0x648] sm:$0xff]
        %v481 = vld [vmem:[%s214 + $0x650] sm:$0xff]
        %v482 = vld [vmem:[%s214 + $0x658] sm:$0xff]
        %v483 = vld [vmem:[%s214 + $0x660] sm:$0xff]
        %v484 = vld [vmem:[%s214 + $0x668] sm:$0xff]
        %v485 = vld [vmem:[%s214 + $0x670] sm:$0xff]
        %v486 = vld [vmem:[%s214 + $0x678] sm:$0xff]
        %v487 = vld [vmem:[%s214 + $0x680] sm:$0xff]
        %v488 = vld [vmem:[%s214 + $0x688] sm:$0xff]
        %v489 = vld [vmem:[%s214 + $0x690] sm:$0xff]
        %v490 = vld [vmem:[%s214 + $0x698] sm:$0xff]
        %v491 = vld [vmem:[%s214 + $0x6a0] sm:$0xff]
        %v492 = vld [vmem:[%s214 + $0x6a8] sm:$0xff]
        %v493 = vld [vmem:[%s214 + $0x6b0] sm:$0xff]
        %v494 = vld [vmem:[%s214 + $0x6b8] sm:$0xff]
        %v495 = vld [vmem:[%s214 + $0x6c0] sm:$0xff]
        %v496 = vld [vmem:[%s214 + $0x6c8] sm:$0xff]
        %v497 = vld [vmem:[%s214 + $0x6d0] sm:$0xff]
        %v498 = vld [vmem:[%s214 + $0x6d8] sm:$0xff]
        %v499 = vld [vmem:[%s214 + $0x6e0] sm:$0xff]
        %v500 = vld [vmem:[%s214 + $0x6e8] sm:$0xff]
        %v501 = vld [vmem:[%s214 + $0x6f0] sm:$0xff]
        %v502 = vld [vmem:[%s214 + $0x6f8] sm:$0xff]
        %v503 = vld [vmem:[%s214 + $0x700] sm:$0xff]
        %v504 = vld [vmem:[%s214 + $0x708] sm:$0xff]
        %v505 = vld [vmem:[%s214 + $0x710] sm:$0xff]
        %v506 = vld [vmem:[%s214 + $0x718] sm:$0xff]
        %v507 = vld [vmem:[%s214 + $0x720] sm:$0xff]
        %v508 = vld [vmem:[%s214 + $0x728] sm:$0xff]
        %v509 = vld [vmem:[%s214 + $0x730] sm:$0xff]
        %v510 = vld [vmem:[%s214 + $0x738] sm:$0xff]
        %v511 = vld [vmem:[%s214 + $0x740] sm:$0xff]
        %v512 = vld [vmem:[%s214 + $0x748] sm:$0xff]
        %v513 = vld [vmem:[%s214 + $0x750] sm:$0xff]
        %v514 = vld [vmem:[%s214 + $0x758] sm:$0xff]
        %v515 = vld [vmem:[%s214 + $0x760] sm:$0xff]
        %v516 = vld [vmem:[%s214 + $0x768] sm:$0xff]
        %v517 = vld [vmem:[%s214 + $0x770] sm:$0xff]
        %v518 = vld [vmem:[%s214 + $0x778] sm:$0xff]
        %v519 = vld [vmem:[%s214 + $0x780] sm:$0xff]
        %v520 = vld [vmem:[%s214 + $0x788] sm:$0xff]
        %v521 = vld [vmem:[%s214 + $0x790] sm:$0xff]
        %v522 = vld [vmem:[%s214 + $0x798] sm:$0xff]
        %v523 = vld [vmem:[%s214 + $0x7a0] sm:$0xff]
        %v524 = vld [vmem:[%s214 + $0x7a8] sm:$0xff]
        %v525 = vld [vmem:[%s214 + $0x7b0] sm:$0xff]
        %v526 = vld [vmem:[%s214 + $0x7b8] sm:$0xff]
        %v527 = vld [vmem:[%s214 + $0x7c0] sm:$0xff]
        %v528 = vld [vmem:[%s214 + $0x7c8] sm:$0xff]
        %v529 = vld [vmem:[%s214 + $0x7d0] sm:$0xff]
        %v530 = vld [vmem:[%s214 + $0x7d8] sm:$0xff]
        %v531 = vld [vmem:[%s214 + $0x7e0] sm:$0xff]
        %v532 = vld [vmem:[%s214 + $0x7e8] sm:$0xff]
        %v533 = vld [vmem:[%s214 + $0x7f0] sm:$0xff]
        %v534 = vld [vmem:[%s214 + $0x7f8] sm:$0xff]
        %v535 = vld [vmem:[%s214 + $0x800] sm:$0xff]
        %v536 = vld [vmem:[%s214 + $0x808] sm:$0xff]
        %v537 = vld [vmem:[%s214 + $0x810] sm:$0xff]
        %v538 = vld [vmem:[%s214 + $0x818] sm:$0xff]
        %v539 = vld [vmem:[%s214 + $0x820] sm:$0xff]
        %v540 = vld [vmem:[%s214 + $0x828] sm:$0xff]
        %v541 = vld [vmem:[%s214 + $0x830] sm:$0xff]
        %v542 = vld [vmem:[%s214 + $0x838] sm:$0xff]
        %v543 = vld [vmem:[%s214 + $0x840] sm:$0xff]
        %v544 = vld [vmem:[%s214 + $0x848] sm:$0xff]
        %v545 = vld [vmem:[%s214 + $0x850] sm:$0xff]
        %v546 = vld [vmem:[%s214 + $0x858] sm:$0xff]
        %v547 = vld [vmem:[%s214 + $0x860] sm:$0xff]
        %v548 = vld [vmem:[%s214 + $0x868] sm:$0xff]
        %v549 = vld [vmem:[%s214 + $0x870] sm:$0xff]
        %v550 = vld [vmem:[%s214 + $0x878] sm:$0xff]
        %v551 = vld [vmem:[%s214 + $0x880] sm:$0xff]
        %v552 = vld [vmem:[%s214 + $0x888] sm:$0xff]
        %v553 = vld [vmem:[%s214 + $0x890] sm:$0xff]
        %v554 = vld [vmem:[%s214 + $0x898] sm:$0xff]
        %v555 = vld [vmem:[%s214 + $0x8a0] sm:$0xff]
        %v556 = vld [vmem:[%s214 + $0x8a8] sm:$0xff]
        %v557 = vld [vmem:[%s214 + $0x8b0] sm:$0xff]
        %v558 = vld [vmem:[%s214 + $0x8b8] sm:$0xff]
        %v559 = vld [vmem:[%s214 + $0x8c0] sm:$0xff]
        %v560 = vld [vmem:[%s214 + $0x8c8] sm:$0xff]
        %v561 = vld [vmem:[%s214 + $0x8d0] sm:$0xff]
        %v562 = vld [vmem:[%s214 + $0x8d8] sm:$0xff]
        %v563 = vld [vmem:[%s214 + $0x8e0] sm:$0xff]
        %v564 = vld [vmem:[%s214 + $0x8e8] sm:$0xff]
        %v565 = vld [vmem:[%s214 + $0x8f0] sm:$0xff]
        %v566 = vld [vmem:[%s214 + $0x8f8] sm:$0xff]
        %v567 = vld [vmem:[%s214 + $0x900] sm:$0xff]
        %v568 = vld [vmem:[%s214 + $0x908] sm:$0xff]
        %v569 = vld [vmem:[%s214 + $0x910] sm:$0xff]
        %v570 = vld [vmem:[%s214 + $0x918] sm:$0xff]
        %v571 = vld [vmem:[%s214 + $0x920] sm:$0xff]
        %v572 = vld [vmem:[%s214 + $0x928] sm:$0xff]
        %v573 = vld [vmem:[%s214 + $0x930] sm:$0xff]
        %v574 = vld [vmem:[%s214 + $0x938] sm:$0xff]
        %v575 = vld [vmem:[%s214 + $0x940] sm:$0xff]
        %v576 = vld [vmem:[%s214 + $0x948] sm:$0xff]
        %v577 = vld [vmem:[%s214 + $0x950] sm:$0xff]
        %v578 = vld [vmem:[%s214 + $0x958] sm:$0xff]
        %v579 = vld [vmem:[%s214 + $0x960] sm:$0xff]
        %v580 = vld [vmem:[%s214 + $0x968] sm:$0xff]
        %v581 = vld [vmem:[%s214 + $0x970] sm:$0xff]
        %v582 = vld [vmem:[%s214 + $0x978] sm:$0xff]
        %v583 = vld [vmem:[%s214 + $0x980] sm:$0xff]
        %v584 = vld [vmem:[%s214 + $0x988] sm:$0xff]
        %v585 = vld [vmem:[%s214 + $0x990] sm:$0xff]
        %v586 = vld [vmem:[%s214 + $0x998] sm:$0xff]
        %v587 = vld [vmem:[%s214 + $0x9a0] sm:$0xff]
        %v588 = vld [vmem:[%s214 + $0x9a8] sm:$0xff]
        %v589 = vld [vmem:[%s214 + $0x9b0] sm:$0xff]
        %v590 = vld [vmem:[%s214 + $0x9b8] sm:$0xff]
        %v591 = vld [vmem:[%s214 + $0x9c0] sm:$0xff]
        %v592 = vld [vmem:[%s214 + $0x9c8] sm:$0xff]
        %v593 = vld [vmem:[%s214 + $0x9d0] sm:$0xff]
        %v594 = vld [vmem:[%s214 + $0x9d8] sm:$0xff]
        %v595 = vld [vmem:[%s214 + $0x9e0] sm:$0xff]
        %v596 = vld [vmem:[%s214 + $0x9e8] sm:$0xff]
        %v597 = vld [vmem:[%s214 + $0x9f0] sm:$0xff]
        %v598 = vld [vmem:[%s214 + $0x9f8] sm:$0xff]
        %v599 = vld [vmem:[%s214 + $0xa00] sm:$0xff]
        %v600 = vld [vmem:[%s214 + $0xa08] sm:$0xff]
        %v601 = vld [vmem:[%s214 + $0xa10] sm:$0xff]
        %v602 = vld [vmem:[%s214 + $0xa18] sm:$0xff]
        %v603 = vld [vmem:[%s214 + $0xa20] sm:$0xff]
        %v604 = vld [vmem:[%s214 + $0xa28] sm:$0xff]
        %v605 = vld [vmem:[%s214 + $0xa30] sm:$0xff]
        %v606 = vld [vmem:[%s214 + $0xa38] sm:$0xff]
        %v607 = vld [vmem:[%s214 + $0xa40] sm:$0xff]
        %v608 = vld [vmem:[%s214 + $0xa48] sm:$0xff]
        %v609 = vld [vmem:[%s214 + $0xa50] sm:$0xff]
        %v610 = vld [vmem:[%s214 + $0xa58] sm:$0xff]
        %v611 = vld [vmem:[%s214 + $0xa60] sm:$0xff]
        %v612 = vld [vmem:[%s214 + $0xa68] sm:$0xff]
        %v613 = vld [vmem:[%s214 + $0xa70] sm:$0xff]
        %v614 = vld [vmem:[%s214 + $0xa78] sm:$0xff]
        %v615 = vld [vmem:[%s214 + $0xa80] sm:$0xff]
        %v616 = vld [vmem:[%s214 + $0xa88] sm:$0xff]
        %v617 = vld [vmem:[%s214 + $0xa90] sm:$0xff]
        %v618 = vld [vmem:[%s214 + $0xa98] sm:$0xff]
        %v619 = vld [vmem:[%s214 + $0xaa0] sm:$0xff]
        %v620 = vld [vmem:[%s214 + $0xaa8] sm:$0xff]
        %v621 = vld [vmem:[%s214 + $0xab0] sm:$0xff]
        %v622 = vld [vmem:[%s214 + $0xab8] sm:$0xff]
        %v623 = vld [vmem:[%s214 + $0xac0] sm:$0xff]
        %v624 = vld [vmem:[%s214 + $0xac8] sm:$0xff]
        %v625 = vld [vmem:[%s214 + $0xad0] sm:$0xff]
        %v626 = vld [vmem:[%s214 + $0xad8] sm:$0xff]
        %v627 = vld [vmem:[%s214 + $0xae0] sm:$0xff]
        %v628 = vld [vmem:[%s214 + $0xae8] sm:$0xff]
        %v629 = vld [vmem:[%s214 + $0xaf0] sm:$0xff]
        %v630 = vld [vmem:[%s214 + $0xaf8] sm:$0xff]
        %v631 = vld [vmem:[%s214 + $0xb00] sm:$0xff]
        %v632 = vld [vmem:[%s214 + $0xb08] sm:$0xff]
        %v633 = vld [vmem:[%s214 + $0xb10] sm:$0xff]
        %v634 = vld [vmem:[%s214 + $0xb18] sm:$0xff]
        %v635 = vld [vmem:[%s214 + $0xb20] sm:$0xff]
        %v636 = vld [vmem:[%s214 + $0xb28] sm:$0xff]
        %v637 = vld [vmem:[%s214 + $0xb30] sm:$0xff]
        %v638 = vld [vmem:[%s214 + $0xb38] sm:$0xff]
        %v639 = vld [vmem:[%s214 + $0xb40] sm:$0xff]
        %v640 = vld [vmem:[%s214 + $0xb48] sm:$0xff]
        %v641 = vld [vmem:[%s214 + $0xb50] sm:$0xff]
        %v642 = vld [vmem:[%s214 + $0xb58] sm:$0xff]
        %v643 = vld [vmem:[%s214 + $0xb60] sm:$0xff]
        %v644 = vld [vmem:[%s214 + $0xb68] sm:$0xff]
        %v645 = vld [vmem:[%s214 + $0xb70] sm:$0xff]
        %v646 = vld [vmem:[%s214 + $0xb78] sm:$0xff]
        %v647 = vld [vmem:[%s214 + $0xb80] sm:$0xff]
        %v648 = vld [vmem:[%s214 + $0xb88] sm:$0xff]
        %v649 = vld [vmem:[%s214 + $0xb90] sm:$0xff]
        %v650 = vld [vmem:[%s214 + $0xb98] sm:$0xff]
        %v651 = vld [vmem:[%s214 + $0xba0] sm:$0xff]
        %v652 = vld [vmem:[%s214 + $0xba8] sm:$0xff]
        %v653 = vld [vmem:[%s214 + $0xbb0] sm:$0xff]
        %v654 = vld [vmem:[%s214 + $0xbb8] sm:$0xff]
        %v655 = vld [vmem:[%s214 + $0xbc0] sm:$0xff]
        %v656 = vld [vmem:[%s214 + $0xbc8] sm:$0xff]
        %v657 = vld [vmem:[%s214 + $0xbd0] sm:$0xff]
        %v658 = vld [vmem:[%s214 + $0xbd8] sm:$0xff]
        %v659 = vld [vmem:[%s214 + $0xbe0] sm:$0xff]
        %v660 = vld [vmem:[%s214 + $0xbe8] sm:$0xff]
        %v661 = vld [vmem:[%s214 + $0xbf0] sm:$0xff]
        %v662 = vld [vmem:[%s214 + $0xbf8] sm:$0xff]
        %v663 = vld [vmem:[%s214 + $0xc00] sm:$0xff]
        %v664 = vld [vmem:[%s214 + $0xc08] sm:$0xff]
        %v665 = vld [vmem:[%s214 + $0xc10] sm:$0xff]
        %v666 = vld [vmem:[%s214 + $0xc18] sm:$0xff]
        %v667 = vld [vmem:[%s214 + $0xc20] sm:$0xff]
        %v668 = vld [vmem:[%s214 + $0xc28] sm:$0xff]
        %v669 = vld [vmem:[%s214 + $0xc30] sm:$0xff]
        %v670 = vld [vmem:[%s214 + $0xc38] sm:$0xff]
        %v671 = vld [vmem:[%s214 + $0xc40] sm:$0xff]
        %v672 = vld [vmem:[%s214 + $0xc48] sm:$0xff]
        %v673 = vld [vmem:[%s214 + $0xc50] sm:$0xff]
        %v674 = vld [vmem:[%s214 + $0xc58] sm:$0xff]
        %v675 = vld [vmem:[%s214 + $0xc60] sm:$0xff]
        %v676 = vld [vmem:[%s214 + $0xc68] sm:$0xff]
        %v677 = vld [vmem:[%s214 + $0xc70] sm:$0xff]
        %v678 = vld [vmem:[%s214 + $0xc78] sm:$0xff]
        %v679 = vld [vmem:[%s214 + $0xc80] sm:$0xff]
        %v680 = vld [vmem:[%s214 + $0xc88] sm:$0xff]
        %v681 = vld [vmem:[%s214 + $0xc90] sm:$0xff]
        %v682 = vld [vmem:[%s214 + $0xc98] sm:$0xff]
        %v683 = vld [vmem:[%s214 + $0xca0] sm:$0xff]
        %v684 = vld [vmem:[%s214 + $0xca8] sm:$0xff]
        %v685 = vld [vmem:[%s214 + $0xcb0] sm:$0xff]
        %v686 = vld [vmem:[%s214 + $0xcb8] sm:$0xff]
        %v687 = vld [vmem:[%s214 + $0xcc0] sm:$0xff]
        %v688 = vld [vmem:[%s214 + $0xcc8] sm:$0xff]
        %v689 = vld [vmem:[%s214 + $0xcd0] sm:$0xff]
        %v690 = vld [vmem:[%s214 + $0xcd8] sm:$0xff]
        %v691 = vld [vmem:[%s214 + $0xce0] sm:$0xff]
        %v692 = vld [vmem:[%s214 + $0xce8] sm:$0xff]
        %v693 = vld [vmem:[%s214 + $0xcf0] sm:$0xff]
        %v694 = vld [vmem:[%s214 + $0xcf8] sm:$0xff]
        %v695 = vld [vmem:[%s214 + $0xd00] sm:$0xff]
        %v696 = vld [vmem:[%s214 + $0xd08] sm:$0xff]
        %v697 = vld [vmem:[%s214 + $0xd10] sm:$0xff]
        %v698 = vld [vmem:[%s214 + $0xd18] sm:$0xff]
        %v699 = vld [vmem:[%s214 + $0xd20] sm:$0xff]
        %v700 = vld [vmem:[%s214 + $0xd28] sm:$0xff]
        %v701 = vld [vmem:[%s214 + $0xd30] sm:$0xff]
        %v702 = vld [vmem:[%s214 + $0xd38] sm:$0xff]
        %v703 = vld [vmem:[%s214 + $0xd40] sm:$0xff]
        %v704 = vld [vmem:[%s214 + $0xd48] sm:$0xff]
        %v705 = vld [vmem:[%s214 + $0xd50] sm:$0xff]
        %v706 = vld [vmem:[%s214 + $0xd58] sm:$0xff]
        %v707 = vld [vmem:[%s214 + $0xd60] sm:$0xff]
        %v708 = vld [vmem:[%s214 + $0xd68] sm:$0xff]
        %v709 = vld [vmem:[%s214 + $0xd70] sm:$0xff]
        %v710 = vld [vmem:[%s214 + $0xd78] sm:$0xff]
        %v711 = vld [vmem:[%s214 + $0xd80] sm:$0xff]
        %v712 = vld [vmem:[%s214 + $0xd88] sm:$0xff]
        %v713 = vld [vmem:[%s214 + $0xd90] sm:$0xff]
        %v714 = vld [vmem:[%s214 + $0xd98] sm:$0xff]
        %v715 = vld [vmem:[%s214 + $0xda0] sm:$0xff]
        %v716 = vld [vmem:[%s214 + $0xda8] sm:$0xff]
        %v717 = vld [vmem:[%s214 + $0xdb0] sm:$0xff]
        %v718 = vld [vmem:[%s214 + $0xdb8] sm:$0xff]
        %v719 = vld [vmem:[%s214 + $0xdc0] sm:$0xff]
        %v720 = vld [vmem:[%s214 + $0xdc8] sm:$0xff]
        %v721 = vld [vmem:[%s214 + $0xdd0] sm:$0xff]
        %v722 = vld [vmem:[%s214 + $0xdd8] sm:$0xff]
        %v723 = vld [vmem:[%s214 + $0xde0] sm:$0xff]
        %v724 = vld [vmem:[%s214 + $0xde8] sm:$0xff]
        %v725 = vld [vmem:[%s214 + $0xdf0] sm:$0xff]
        %v726 = vld [vmem:[%s214 + $0xdf8] sm:$0xff]
        %v727 = vld [vmem:[%s214 + $0xe00] sm:$0xff]
        %v728 = vld [vmem:[%s214 + $0xe08] sm:$0xff]
        %v729 = vld [vmem:[%s214 + $0xe10] sm:$0xff]
        %v730 = vld [vmem:[%s214 + $0xe18] sm:$0xff]
        %v731 = vld [vmem:[%s214 + $0xe20] sm:$0xff]
        %v732 = vld [vmem:[%s214 + $0xe28] sm:$0xff]
        %v733 = vld [vmem:[%s214 + $0xe30] sm:$0xff]
        %v734 = vld [vmem:[%s214 + $0xe38] sm:$0xff]
        %v735 = vld [vmem:[%s214 + $0xe40] sm:$0xff]
        %v736 = vld [vmem:[%s214 + $0xe48] sm:$0xff]
        %v737 = vld [vmem:[%s214 + $0xe50] sm:$0xff]
        %v738 = vld [vmem:[%s214 + $0xe58] sm:$0xff]
        %v739 = vld [vmem:[%s214 + $0xe60] sm:$0xff]
        %v740 = vld [vmem:[%s214 + $0xe68] sm:$0xff]
        %v741 = vld [vmem:[%s214 + $0xe70] sm:$0xff]
        %v742 = vld [vmem:[%s214 + $0xe78] sm:$0xff]
        %v743 = vld [vmem:[%s214 + $0xe80] sm:$0xff]
        %v744 = vld [vmem:[%s214 + $0xe88] sm:$0xff]
        %v745 = vld [vmem:[%s214 + $0xe90] sm:$0xff]
        %v746 = vld [vmem:[%s214 + $0xe98] sm:$0xff]
        %v747 = vld [vmem:[%s214 + $0xea0] sm:$0xff]
        %v748 = vld [vmem:[%s214 + $0xea8] sm:$0xff]
        %v749 = vld [vmem:[%s214 + $0xeb0] sm:$0xff]
        %v750 = vld [vmem:[%s214 + $0xeb8] sm:$0xff]
        %v751 = vld [vmem:[%s214 + $0xec0] sm:$0xff]
        %v752 = vld [vmem:[%s214 + $0xec8] sm:$0xff]
        %v753 = vld [vmem:[%s214 + $0xed0] sm:$0xff]
        %v754 = vld [vmem:[%s214 + $0xed8] sm:$0xff]
        %v755 = vld [vmem:[%s214 + $0xee0] sm:$0xff]
        %v756 = vld [vmem:[%s214 + $0xee8] sm:$0xff]
        %v757 = vld [vmem:[%s214 + $0xef0] sm:$0xff]
        %v758 = vld [vmem:[%s214 + $0xef8] sm:$0xff]
        %v763 = vcombine.high %v275, %v275
        %v765 = vunpack.c.l.s4 1966171168
        %v766 = vunpack.c.0.s8 %v765
        %v767 = vlaneseq
        %v768 = vshrl.u32 %v767, 7
        %v769 = vsub.s32 %v766, %v768
        %v770 = vrot.slane %v275, %v769
        %v772 = vunpack.c.l.s4 1966171168
        %v773 = vunpack.c.0.s8 %v772
        %v774 = vlaneseq
        %v775 = vshrl.u32 %v774, 7
        %v776 = vsub.s32 %v773, %v775
        %v777 = vrot.slane %v763, %v776
        %v778 = vcombine.high %v770, %v770
        %v779 = vcombine.high %v777, %v777
        %v781 = vunpack.c.l.s4 1966171168
        %v782 = vunpack.c.0.s8 %v781
        %v783 = vlaneseq
        %v784 = vshrl.u32 %v783, 7
        %v785 = vsub.s32 %v782, %v784
        %v786 = vrot.slane %v770, %v785
        %v788 = vunpack.c.l.s4 1966171168
        %v789 = vunpack.c.0.s8 %v788
        %v790 = vlaneseq
        %v791 = vshrl.u32 %v790, 7
        %v792 = vsub.s32 %v789, %v791
        %v793 = vrot.slane %v777, %v792
        %v795 = vunpack.c.l.s4 1966171168
        %v796 = vunpack.c.0.s8 %v795
        %v797 = vlaneseq
        %v798 = vshrl.u32 %v797, 7
        %v799 = vsub.s32 %v796, %v798
        %v800 = vrot.slane %v778, %v799
        %v802 = vunpack.c.l.s4 1966171168
        %v803 = vunpack.c.0.s8 %v802
        %v804 = vlaneseq
        %v805 = vshrl.u32 %v804, 7
        %v806 = vsub.s32 %v803, %v805
        %v807 = vrot.slane %v779, %v806
        %v808 = vcombine.high %v786, %v786
        %v809 = vcombine.high %v793, %v793
        %v810 = vcombine.high %v800, %v800
        %v811 = vcombine.high %v807, %v807
        %v812 = vcombine.high %v276, %v276
        %v814 = vunpack.c.l.s4 1966171168
        %v815 = vunpack.c.0.s8 %v814
        %v816 = vlaneseq
        %v817 = vshrl.u32 %v816, 7
        %v818 = vsub.s32 %v815, %v817
        %v819 = vrot.slane %v276, %v818
        %v821 = vunpack.c.l.s4 1966171168
        %v822 = vunpack.c.0.s8 %v821
        %v823 = vlaneseq
        %v824 = vshrl.u32 %v823, 7
        %v825 = vsub.s32 %v822, %v824
        %v826 = vrot.slane %v812, %v825
        %v827 = vcombine.high %v819, %v819
        %v828 = vcombine.high %v826, %v826
        %v830 = vunpack.c.l.s4 1966171168
        %v831 = vunpack.c.0.s8 %v830
        %v832 = vlaneseq
        %v833 = vshrl.u32 %v832, 7
        %v834 = vsub.s32 %v831, %v833
        %v835 = vrot.slane %v819, %v834
        %v837 = vunpack.c.l.s4 1966171168
        %v838 = vunpack.c.0.s8 %v837
        %v839 = vlaneseq
        %v840 = vshrl.u32 %v839, 7
        %v841 = vsub.s32 %v838, %v840
        %v842 = vrot.slane %v826, %v841
        %v844 = vunpack.c.l.s4 1966171168
        %v845 = vunpack.c.0.s8 %v844
        %v846 = vlaneseq
        %v847 = vshrl.u32 %v846, 7
        %v848 = vsub.s32 %v845, %v847
        %v849 = vrot.slane %v827, %v848
        %v851 = vunpack.c.l.s4 1966171168
        %v852 = vunpack.c.0.s8 %v851
        %v853 = vlaneseq
        %v854 = vshrl.u32 %v853, 7
        %v855 = vsub.s32 %v852, %v854
        %v856 = vrot.slane %v828, %v855
        %v857 = vcombine.high %v835, %v835
        %v858 = vcombine.high %v842, %v842
        %v859 = vcombine.high %v849, %v849
        %v860 = vcombine.high %v856, %v856
        %v861 = vcombine.high %v277, %v277
        %v863 = vunpack.c.l.s4 1966171168
        %v864 = vunpack.c.0.s8 %v863
        %v865 = vlaneseq
        %v866 = vshrl.u32 %v865, 7
        %v867 = vsub.s32 %v864, %v866
        %v868 = vrot.slane %v277, %v867
        %v870 = vunpack.c.l.s4 1966171168
        %v871 = vunpack.c.0.s8 %v870
        %v872 = vlaneseq
        %v873 = vshrl.u32 %v872, 7
        %v874 = vsub.s32 %v871, %v873
        %v875 = vrot.slane %v861, %v874
        %v876 = vcombine.high %v868, %v868
        %v877 = vcombine.high %v875, %v875
        %v879 = vunpack.c.l.s4 1966171168
        %v880 = vunpack.c.0.s8 %v879
        %v881 = vlaneseq
        %v882 = vshrl.u32 %v881, 7
        %v883 = vsub.s32 %v880, %v882
        %v884 = vrot.slane %v868, %v883
        %v886 = vunpack.c.l.s4 1966171168
        %v887 = vunpack.c.0.s8 %v886
        %v888 = vlaneseq
        %v889 = vshrl.u32 %v888, 7
        %v890 = vsub.s32 %v887, %v889
        %v891 = vrot.slane %v875, %v890
        %v893 = vunpack.c.l.s4 1966171168
        %v894 = vunpack.c.0.s8 %v893
        %v895 = vlaneseq
        %v896 = vshrl.u32 %v895, 7
        %v897 = vsub.s32 %v894, %v896
        %v898 = vrot.slane %v876, %v897
        %v900 = vunpack.c.l.s4 1966171168
        %v901 = vunpack.c.0.s8 %v900
        %v902 = vlaneseq
        %v903 = vshrl.u32 %v902, 7
        %v904 = vsub.s32 %v901, %v903
        %v905 = vrot.slane %v877, %v904
        %v906 = vcombine.high %v884, %v884
        %v907 = vcombine.high %v891, %v891
        %v908 = vcombine.high %v898, %v898
        %v909 = vcombine.high %v905, %v905
        %v910 = vcombine.high %v278, %v278
        %v912 = vunpack.c.l.s4 1966171168
        %v913 = vunpack.c.0.s8 %v912
        %v914 = vlaneseq
        %v915 = vshrl.u32 %v914, 7
        %v916 = vsub.s32 %v913, %v915
        %v917 = vrot.slane %v278, %v916
        %v919 = vunpack.c.l.s4 1966171168
        %v920 = vunpack.c.0.s8 %v919
        %v921 = vlaneseq
        %v922 = vshrl.u32 %v921, 7
        %v923 = vsub.s32 %v920, %v922
        %v924 = vrot.slane %v910, %v923
        %v925 = vcombine.high %v917, %v917
        %v926 = vcombine.high %v924, %v924
        %v928 = vunpack.c.l.s4 1966171168
        %v929 = vunpack.c.0.s8 %v928
        %v930 = vlaneseq
        %v931 = vshrl.u32 %v930, 7
        %v932 = vsub.s32 %v929, %v931
        %v933 = vrot.slane %v917, %v932
        %v935 = vunpack.c.l.s4 1966171168
        %v936 = vunpack.c.0.s8 %v935
        %v937 = vlaneseq
        %v938 = vshrl.u32 %v937, 7
        %v939 = vsub.s32 %v936, %v938
        %v940 = vrot.slane %v924, %v939
        %v942 = vunpack.c.l.s4 1966171168
        %v943 = vunpack.c.0.s8 %v942
        %v944 = vlaneseq
        %v945 = vshrl.u32 %v944, 7
        %v946 = vsub.s32 %v943, %v945
        %v947 = vrot.slane %v925, %v946
        %v949 = vunpack.c.l.s4 1966171168
        %v950 = vunpack.c.0.s8 %v949
        %v951 = vlaneseq
        %v952 = vshrl.u32 %v951, 7
        %v953 = vsub.s32 %v950, %v952
        %v954 = vrot.slane %v926, %v953
        %v955 = vcombine.high %v933, %v933
        %v956 = vcombine.high %v947, %v947
        %v1467 = vunpack.c.l.b16 %v279
        %v1468 = vunpack.c.h.b16 %v279
        %v1469 = vunpack.c.l.b16 %v280
        %v1470 = vunpack.c.h.b16 %v280
        %v1471 = vunpack.c.l.b16 %v281
        %v1472 = vunpack.c.h.b16 %v281
        %v1473 = vunpack.c.l.b16 %v282
        %v1474 = vunpack.c.h.b16 %v282
        %v1475 = vunpack.c.l.b16 %v283
        %v1476 = vunpack.c.h.b16 %v283
        %v1477 = vunpack.c.l.b16 %v284
        %v1478 = vunpack.c.h.b16 %v284
        %v1479 = vunpack.c.l.b16 %v285
        %v1480 = vunpack.c.h.b16 %v285
        %v1481 = vunpack.c.l.b16 %v286
        %v1482 = vunpack.c.h.b16 %v286
        %v1483 = vunpack.c.l.b16 %v287
        %v1484 = vunpack.c.h.b16 %v287
        %v1485 = vunpack.c.l.b16 %v288
        %v1486 = vunpack.c.h.b16 %v288
        %v1487 = vunpack.c.l.b16 %v289
        %v1488 = vunpack.c.h.b16 %v289
        %v1489 = vunpack.c.l.b16 %v290
        %v1490 = vunpack.c.h.b16 %v290
        %v1491 = vunpack.c.l.b16 %v291
        %v1492 = vunpack.c.h.b16 %v291
        %v1493 = vunpack.c.l.b16 %v292
        %v1494 = vunpack.c.h.b16 %v292
        %v1495 = vunpack.c.l.b16 %v293
        %v1496 = vunpack.c.h.b16 %v293
        %v1497 = vunpack.c.l.b16 %v294
        %v1498 = vunpack.c.h.b16 %v294
        %v1499 = vunpack.c.l.b16 %v295
        %v1500 = vunpack.c.h.b16 %v295
        %v1501 = vunpack.c.l.b16 %v296
        %v1502 = vunpack.c.h.b16 %v296
        %v1503 = vunpack.c.l.b16 %v297
        %v1504 = vunpack.c.h.b16 %v297
        %v1505 = vunpack.c.l.b16 %v298
        %v1506 = vunpack.c.h.b16 %v298
        %v1507 = vunpack.c.l.b16 %v299
        %v1508 = vunpack.c.h.b16 %v299
        %v1509 = vunpack.c.l.b16 %v300
        %v1510 = vunpack.c.h.b16 %v300
        %v1511 = vunpack.c.l.b16 %v301
        %v1512 = vunpack.c.h.b16 %v301
        %v1513 = vunpack.c.l.b16 %v302
        %v1514 = vunpack.c.h.b16 %v302
        %v1515 = vunpack.c.l.b16 %v303
        %v1516 = vunpack.c.h.b16 %v303
        %v1517 = vunpack.c.l.b16 %v304
        %v1518 = vunpack.c.h.b16 %v304
        %v1519 = vunpack.c.l.b16 %v305
        %v1520 = vunpack.c.h.b16 %v305
        %v1521 = vunpack.c.l.b16 %v306
        %v1522 = vunpack.c.h.b16 %v306
        %v1523 = vunpack.c.l.b16 %v307
        %v1524 = vunpack.c.h.b16 %v307
        %v1525 = vunpack.c.l.b16 %v308
        %v1526 = vunpack.c.h.b16 %v308
        %v1527 = vunpack.c.l.b16 %v309
        %v1528 = vunpack.c.h.b16 %v309
        %v1529 = vunpack.c.l.b16 %v310
        %v1530 = vunpack.c.h.b16 %v310
        %v1531 = vunpack.c.l.b16 %v311
        %v1532 = vunpack.c.h.b16 %v311
        %v1533 = vunpack.c.l.b16 %v312
        %v1534 = vunpack.c.h.b16 %v312
        %v1535 = vunpack.c.l.b16 %v313
        %v1536 = vunpack.c.h.b16 %v313
        %v1537 = vunpack.c.l.b16 %v314
        %v1538 = vunpack.c.h.b16 %v314
        %v1539 = vunpack.c.l.b16 %v315
        %v1540 = vunpack.c.h.b16 %v315
        %v1541 = vunpack.c.l.b16 %v316
        %v1542 = vunpack.c.h.b16 %v316
        %v1543 = vunpack.c.l.b16 %v317
        %v1544 = vunpack.c.h.b16 %v317
        %v1545 = vunpack.c.l.b16 %v318
        %v1546 = vunpack.c.h.b16 %v318
        %v1547 = vunpack.c.l.b16 %v319
        %v1548 = vunpack.c.h.b16 %v319
        %v1549 = vunpack.c.l.b16 %v320
        %v1550 = vunpack.c.h.b16 %v320
        %v1551 = vunpack.c.l.b16 %v321
        %v1552 = vunpack.c.h.b16 %v321
        %v1553 = vunpack.c.l.b16 %v322
        %v1554 = vunpack.c.h.b16 %v322
        %v1555 = vunpack.c.l.b16 %v323
        %v1556 = vunpack.c.h.b16 %v323
        %v1557 = vunpack.c.l.b16 %v324
        %v1558 = vunpack.c.h.b16 %v324
        %v1559 = vunpack.c.l.b16 %v325
        %v1560 = vunpack.c.h.b16 %v325
        %v1561 = vunpack.c.l.b16 %v326
        %v1562 = vunpack.c.h.b16 %v326
        %v1563 = vunpack.c.l.b16 %v327
        %v1564 = vunpack.c.h.b16 %v327
        %v1565 = vunpack.c.l.b16 %v328
        %v1566 = vunpack.c.h.b16 %v328
        %v1567 = vunpack.c.l.b16 %v329
        %v1568 = vunpack.c.h.b16 %v329
        %v1569 = vunpack.c.l.b16 %v330
        %v1570 = vunpack.c.h.b16 %v330
        %v1571 = vunpack.c.l.b16 %v331
        %v1572 = vunpack.c.h.b16 %v331
        %v1573 = vunpack.c.l.b16 %v332
        %v1574 = vunpack.c.h.b16 %v332
        %v1575 = vunpack.c.l.b16 %v333
        %v1576 = vunpack.c.h.b16 %v333
        %v1577 = vunpack.c.l.b16 %v334
        %v1578 = vunpack.c.h.b16 %v334
        %v1579 = vunpack.c.l.b16 %v335
        %v1580 = vunpack.c.h.b16 %v335
        %v1581 = vunpack.c.l.b16 %v336
        %v1582 = vunpack.c.h.b16 %v336
        %v1583 = vunpack.c.l.b16 %v337
        %v1584 = vunpack.c.h.b16 %v337
        %v1585 = vunpack.c.l.b16 %v338
        %v1586 = vunpack.c.h.b16 %v338
        %v1587 = vunpack.c.l.b16 %v339
        %v1588 = vunpack.c.h.b16 %v339
        %v1589 = vunpack.c.l.b16 %v340
        %v1590 = vunpack.c.h.b16 %v340
        %v1591 = vunpack.c.l.b16 %v341
        %v1592 = vunpack.c.h.b16 %v341
        %v1593 = vunpack.c.l.b16 %v342
        %v1594 = vunpack.c.h.b16 %v342
        %v1595 = vunpack.c.l.b16 %v343
        %v1596 = vunpack.c.h.b16 %v343
        %v1597 = vunpack.c.l.b16 %v344
        %v1598 = vunpack.c.h.b16 %v344
        %v1599 = vunpack.c.l.b16 %v345
        %v1600 = vunpack.c.h.b16 %v345
        %v1601 = vunpack.c.l.b16 %v346
        %v1602 = vunpack.c.h.b16 %v346
        %v1603 = vunpack.c.l.b16 %v347
        %v1604 = vunpack.c.h.b16 %v347
        %v1605 = vunpack.c.l.b16 %v348
        %v1606 = vunpack.c.h.b16 %v348
        %v1607 = vunpack.c.l.b16 %v349
        %v1608 = vunpack.c.h.b16 %v349
        %v1609 = vunpack.c.l.b16 %v350
        %v1610 = vunpack.c.h.b16 %v350
        %v1611 = vunpack.c.l.b16 %v351
        %v1612 = vunpack.c.h.b16 %v351
        %v1613 = vunpack.c.l.b16 %v352
        %v1614 = vunpack.c.h.b16 %v352
        %v1615 = vunpack.c.l.b16 %v353
        %v1616 = vunpack.c.h.b16 %v353
        %v1617 = vunpack.c.l.b16 %v354
        %v1618 = vunpack.c.h.b16 %v354
        %v1619 = vunpack.c.l.b16 %v355
        %v1620 = vunpack.c.h.b16 %v355
        %v1621 = vunpack.c.l.b16 %v356
        %v1622 = vunpack.c.h.b16 %v356
        %v1623 = vunpack.c.l.b16 %v357
        %v1624 = vunpack.c.h.b16 %v357
        %v1625 = vunpack.c.l.b16 %v358
        %v1626 = vunpack.c.h.b16 %v358
        %v1627 = vunpack.c.l.b16 %v359
        %v1628 = vunpack.c.h.b16 %v359
        %v1629 = vunpack.c.l.b16 %v360
        %v1630 = vunpack.c.h.b16 %v360
        %v1631 = vunpack.c.l.b16 %v361
        %v1632 = vunpack.c.h.b16 %v361
        %v1633 = vunpack.c.l.b16 %v362
        %v1634 = vunpack.c.h.b16 %v362
        %v1635 = vunpack.c.l.b16 %v363
        %v1636 = vunpack.c.h.b16 %v363
        %v1637 = vunpack.c.l.b16 %v364
        %v1638 = vunpack.c.h.b16 %v364
        %v1639 = vunpack.c.l.b16 %v365
        %v1640 = vunpack.c.h.b16 %v365
        %v1641 = vunpack.c.l.b16 %v366
        %v1642 = vunpack.c.h.b16 %v366
        %v1643 = vunpack.c.l.b16 %v367
        %v1644 = vunpack.c.h.b16 %v367
        %v1645 = vunpack.c.l.b16 %v368
        %v1646 = vunpack.c.h.b16 %v368
        %v1647 = vunpack.c.l.b16 %v369
        %v1648 = vunpack.c.h.b16 %v369
        %v1649 = vunpack.c.l.b16 %v370
        %v1650 = vunpack.c.h.b16 %v370
        %v1651 = vunpack.c.l.b16 %v371
        %v1652 = vunpack.c.h.b16 %v371
        %v1653 = vunpack.c.l.b16 %v372
        %v1654 = vunpack.c.h.b16 %v372
        %v1655 = vunpack.c.l.b16 %v373
        %v1656 = vunpack.c.h.b16 %v373
        %v1657 = vunpack.c.l.b16 %v374
        %v1658 = vunpack.c.h.b16 %v374
        %v1659 = vunpack.c.l.b16 %v375
        %v1660 = vunpack.c.h.b16 %v375
        %v1661 = vunpack.c.l.b16 %v376
        %v1662 = vunpack.c.h.b16 %v376
        %v1663 = vunpack.c.l.b16 %v377
        %v1664 = vunpack.c.h.b16 %v377
        %v1665 = vunpack.c.l.b16 %v378
        %v1666 = vunpack.c.h.b16 %v378
        %v1667 = vunpack.c.l.b16 %v379
        %v1668 = vunpack.c.h.b16 %v379
        %v1669 = vunpack.c.l.b16 %v380
        %v1670 = vunpack.c.h.b16 %v380
        %v1671 = vunpack.c.l.b16 %v381
        %v1672 = vunpack.c.h.b16 %v381
        %v1673 = vunpack.c.l.b16 %v382
        %v1674 = vunpack.c.h.b16 %v382
        %v1675 = vunpack.c.l.b16 %v383
        %v1676 = vunpack.c.h.b16 %v383
        %v1677 = vunpack.c.l.b16 %v384
        %v1678 = vunpack.c.h.b16 %v384
        %v1679 = vunpack.c.l.b16 %v385
        %v1680 = vunpack.c.h.b16 %v385
        %v1681 = vunpack.c.l.b16 %v386
        %v1682 = vunpack.c.h.b16 %v386
        %v1683 = vunpack.c.l.b16 %v387
        %v1684 = vunpack.c.h.b16 %v387
        %v1685 = vunpack.c.l.b16 %v388
        %v1686 = vunpack.c.h.b16 %v388
        %v1687 = vunpack.c.l.b16 %v389
        %v1688 = vunpack.c.h.b16 %v389
        %v1689 = vunpack.c.l.b16 %v390
        %v1690 = vunpack.c.h.b16 %v390
        %v1691 = vunpack.c.l.b16 %v391
        %v1692 = vunpack.c.h.b16 %v391
        %v1693 = vunpack.c.l.b16 %v392
        %v1694 = vunpack.c.h.b16 %v392
        %v1695 = vunpack.c.l.b16 %v393
        %v1696 = vunpack.c.h.b16 %v393
        %v1697 = vunpack.c.l.b16 %v394
        %v1698 = vunpack.c.h.b16 %v394
        %v1699 = vunpack.c.l.b16 %v395
        %v1700 = vunpack.c.h.b16 %v395
        %v1701 = vunpack.c.l.b16 %v396
        %v1702 = vunpack.c.h.b16 %v396
        %v1703 = vunpack.c.l.b16 %v397
        %v1704 = vunpack.c.h.b16 %v397
        %v1705 = vunpack.c.l.b16 %v398
        %v1706 = vunpack.c.h.b16 %v398
        %v1707 = vunpack.c.l.b16 %v399
        %v1708 = vunpack.c.h.b16 %v399
        %v1709 = vunpack.c.l.b16 %v400
        %v1710 = vunpack.c.h.b16 %v400
        %v1711 = vunpack.c.l.b16 %v401
        %v1712 = vunpack.c.h.b16 %v401
        %v1713 = vunpack.c.l.b16 %v402
        %v1714 = vunpack.c.h.b16 %v402
        %v1715 = vunpack.c.l.b16 %v403
        %v1716 = vunpack.c.h.b16 %v403
        %v1717 = vunpack.c.l.b16 %v404
        %v1718 = vunpack.c.h.b16 %v404
        %v1719 = vunpack.c.l.b16 %v405
        %v1720 = vunpack.c.h.b16 %v405
        %v1721 = vunpack.c.l.b16 %v406
        %v1722 = vunpack.c.h.b16 %v406
        %v1723 = vunpack.c.l.b16 %v407
        %v1724 = vunpack.c.h.b16 %v407
        %v1725 = vunpack.c.l.b16 %v408
        %v1726 = vunpack.c.h.b16 %v408
        %v1727 = vunpack.c.l.b16 %v409
        %v1728 = vunpack.c.h.b16 %v409
        %v1729 = vunpack.c.l.b16 %v410
        %v1730 = vunpack.c.h.b16 %v410
        %v1731 = vunpack.c.l.b16 %v411
        %v1732 = vunpack.c.h.b16 %v411
        %v1733 = vunpack.c.l.b16 %v412
        %v1734 = vunpack.c.h.b16 %v412
        %v1735 = vunpack.c.l.b16 %v413
        %v1736 = vunpack.c.h.b16 %v413
        %v1737 = vunpack.c.l.b16 %v414
        %v1738 = vunpack.c.h.b16 %v414
        %v1739 = vunpack.c.l.b16 %v415
        %v1740 = vunpack.c.h.b16 %v415
        %v1741 = vunpack.c.l.b16 %v416
        %v1742 = vunpack.c.h.b16 %v416
        %v1743 = vunpack.c.l.b16 %v417
        %v1744 = vunpack.c.h.b16 %v417
        %v1745 = vunpack.c.l.b16 %v418
        %v1746 = vunpack.c.h.b16 %v418
        %v1747 = vunpack.c.l.b16 %v419
        %v1748 = vunpack.c.h.b16 %v419
        %v1749 = vunpack.c.l.b16 %v420
        %v1750 = vunpack.c.h.b16 %v420
        %v1751 = vunpack.c.l.b16 %v421
        %v1752 = vunpack.c.h.b16 %v421
        %v1753 = vunpack.c.l.b16 %v422
        %v1754 = vunpack.c.h.b16 %v422
        %v1755 = vunpack.c.l.b16 %v423
        %v1756 = vunpack.c.h.b16 %v423
        %v1757 = vunpack.c.l.b16 %v424
        %v1758 = vunpack.c.h.b16 %v424
        %v1759 = vunpack.c.l.b16 %v425
        %v1760 = vunpack.c.h.b16 %v425
        %v1761 = vunpack.c.l.b16 %v426
        %v1762 = vunpack.c.h.b16 %v426
        %v1763 = vunpack.c.l.b16 %v427
        %v1764 = vunpack.c.h.b16 %v427
        %v1765 = vunpack.c.l.b16 %v428
        %v1766 = vunpack.c.h.b16 %v428
        %v1767 = vunpack.c.l.b16 %v429
        %v1768 = vunpack.c.h.b16 %v429
        %v1769 = vunpack.c.l.b16 %v430
        %v1770 = vunpack.c.h.b16 %v430
        %v1771 = vunpack.c.l.b16 %v431
        %v1772 = vunpack.c.h.b16 %v431
        %v1773 = vunpack.c.l.b16 %v432
        %v1774 = vunpack.c.h.b16 %v432
        %v1775 = vunpack.c.l.b16 %v433
        %v1776 = vunpack.c.h.b16 %v433
        %v1777 = vunpack.c.l.b16 %v434
        %v1778 = vunpack.c.h.b16 %v434
        %v1779 = vunpack.c.l.b16 %v435
        %v1780 = vunpack.c.h.b16 %v435
        %v1781 = vunpack.c.l.b16 %v436
        %v1782 = vunpack.c.h.b16 %v436
        %v1783 = vunpack.c.l.b16 %v437
        %v1784 = vunpack.c.h.b16 %v437
        %v1785 = vunpack.c.l.b16 %v438
        %v1786 = vunpack.c.h.b16 %v438
        %v1787 = vunpack.c.l.b16 %v439
        %v1788 = vunpack.c.h.b16 %v439
        %v1789 = vunpack.c.l.b16 %v440
        %v1790 = vunpack.c.h.b16 %v440
        %v1791 = vunpack.c.l.b16 %v441
        %v1792 = vunpack.c.h.b16 %v441
        %v1793 = vunpack.c.l.b16 %v442
        %v1794 = vunpack.c.h.b16 %v442
        %v1795 = vunpack.c.l.b16 %v443
        %v1796 = vunpack.c.h.b16 %v443
        %v1797 = vunpack.c.l.b16 %v444
        %v1798 = vunpack.c.h.b16 %v444
        %v1799 = vunpack.c.l.b16 %v445
        %v1800 = vunpack.c.h.b16 %v445
        %v1801 = vunpack.c.l.b16 %v446
        %v1802 = vunpack.c.h.b16 %v446
        %v1803 = vunpack.c.l.b16 %v447
        %v1804 = vunpack.c.h.b16 %v447
        %v1805 = vunpack.c.l.b16 %v448
        %v1806 = vunpack.c.h.b16 %v448
        %v1807 = vunpack.c.l.b16 %v449
        %v1808 = vunpack.c.h.b16 %v449
        %v1809 = vunpack.c.l.b16 %v450
        %v1810 = vunpack.c.h.b16 %v450
        %v1811 = vunpack.c.l.b16 %v451
        %v1812 = vunpack.c.h.b16 %v451
        %v1813 = vunpack.c.l.b16 %v452
        %v1814 = vunpack.c.h.b16 %v452
        %v1815 = vunpack.c.l.b16 %v453
        %v1816 = vunpack.c.h.b16 %v453
        %v1817 = vunpack.c.l.b16 %v454
        %v1818 = vunpack.c.h.b16 %v454
        %v1819 = vunpack.c.l.b16 %v455
        %v1820 = vunpack.c.h.b16 %v455
        %v1821 = vunpack.c.l.b16 %v456
        %v1822 = vunpack.c.h.b16 %v456
        %v1823 = vunpack.c.l.b16 %v457
        %v1824 = vunpack.c.h.b16 %v457
        %v1825 = vunpack.c.l.b16 %v458
        %v1826 = vunpack.c.h.b16 %v458
        %v1827 = vunpack.c.l.b16 %v459
        %v1828 = vunpack.c.h.b16 %v459
        %v1829 = vunpack.c.l.b16 %v460
        %v1830 = vunpack.c.h.b16 %v460
        %v1831 = vunpack.c.l.b16 %v461
        %v1832 = vunpack.c.h.b16 %v461
        %v1833 = vunpack.c.l.b16 %v462
        %v1834 = vunpack.c.h.b16 %v462
        %v1835 = vunpack.c.l.b16 %v463
        %v1836 = vunpack.c.h.b16 %v463
        %v1837 = vunpack.c.l.b16 %v464
        %v1838 = vunpack.c.h.b16 %v464
        %v1839 = vunpack.c.l.b16 %v465
        %v1840 = vunpack.c.h.b16 %v465
        %v1841 = vunpack.c.l.b16 %v466
        %v1842 = vunpack.c.h.b16 %v466
        %v1843 = vunpack.c.l.b16 %v467
        %v1844 = vunpack.c.h.b16 %v467
        %v1845 = vunpack.c.l.b16 %v468
        %v1846 = vunpack.c.h.b16 %v468
        %v1847 = vunpack.c.l.b16 %v469
        %v1848 = vunpack.c.h.b16 %v469
        %v1849 = vunpack.c.l.b16 %v470
        %v1850 = vunpack.c.h.b16 %v470
        %v1851 = vunpack.c.l.b16 %v471
        %v1852 = vunpack.c.h.b16 %v471
        %v1853 = vunpack.c.l.b16 %v472
        %v1854 = vunpack.c.h.b16 %v472
        %v1855 = vunpack.c.l.b16 %v473
        %v1856 = vunpack.c.h.b16 %v473
        %v1857 = vunpack.c.l.b16 %v474
        %v1858 = vunpack.c.h.b16 %v474
        %v1859 = vunpack.c.l.b16 %v475
        %v1860 = vunpack.c.h.b16 %v475
        %v1861 = vunpack.c.l.b16 %v476
        %v1862 = vunpack.c.h.b16 %v476
        %v1863 = vunpack.c.l.b16 %v477
        %v1864 = vunpack.c.h.b16 %v477
        %v1865 = vunpack.c.l.b16 %v478
        %v1866 = vunpack.c.h.b16 %v478
        %v1867 = vunpack.c.l.b16 %v479
        %v1868 = vunpack.c.h.b16 %v479
        %v1869 = vunpack.c.l.b16 %v480
        %v1870 = vunpack.c.h.b16 %v480
        %v1871 = vunpack.c.l.b16 %v481
        %v1872 = vunpack.c.h.b16 %v481
        %v1873 = vunpack.c.l.b16 %v482
        %v1874 = vunpack.c.h.b16 %v482
        %v1875 = vunpack.c.l.b16 %v483
        %v1876 = vunpack.c.h.b16 %v483
        %v1877 = vunpack.c.l.b16 %v484
        %v1878 = vunpack.c.h.b16 %v484
        %v1879 = vunpack.c.l.b16 %v485
        %v1880 = vunpack.c.h.b16 %v485
        %v1881 = vunpack.c.l.b16 %v486
        %v1882 = vunpack.c.h.b16 %v486
        %v1883 = vunpack.c.l.b16 %v487
        %v1884 = vunpack.c.h.b16 %v487
        %v1885 = vunpack.c.l.b16 %v488
        %v1886 = vunpack.c.h.b16 %v488
        %v1887 = vunpack.c.l.b16 %v489
        %v1888 = vunpack.c.h.b16 %v489
        %v1889 = vunpack.c.l.b16 %v490
        %v1890 = vunpack.c.h.b16 %v490
        %v1891 = vunpack.c.l.b16 %v491
        %v1892 = vunpack.c.h.b16 %v491
        %v1893 = vunpack.c.l.b16 %v492
        %v1894 = vunpack.c.h.b16 %v492
        %v1895 = vunpack.c.l.b16 %v493
        %v1896 = vunpack.c.h.b16 %v493
        %v1897 = vunpack.c.l.b16 %v494
        %v1898 = vunpack.c.h.b16 %v494
        %v1899 = vunpack.c.l.b16 %v495
        %v1900 = vunpack.c.h.b16 %v495
        %v1901 = vunpack.c.l.b16 %v496
        %v1902 = vunpack.c.h.b16 %v496
        %v1903 = vunpack.c.l.b16 %v497
        %v1904 = vunpack.c.h.b16 %v497
        %v1905 = vunpack.c.l.b16 %v498
        %v1906 = vunpack.c.h.b16 %v498
        %v1907 = vunpack.c.l.b16 %v499
        %v1908 = vunpack.c.h.b16 %v499
        %v1909 = vunpack.c.l.b16 %v500
        %v1910 = vunpack.c.h.b16 %v500
        %v1911 = vunpack.c.l.b16 %v501
        %v1912 = vunpack.c.h.b16 %v501
        %v1913 = vunpack.c.l.b16 %v502
        %v1914 = vunpack.c.h.b16 %v502
        %v1915 = vunpack.c.l.b16 %v503
        %v1916 = vunpack.c.h.b16 %v503
        %v1917 = vunpack.c.l.b16 %v504
        %v1918 = vunpack.c.h.b16 %v504
        %v1919 = vunpack.c.l.b16 %v505
        %v1920 = vunpack.c.h.b16 %v505
        %v1921 = vunpack.c.l.b16 %v506
        %v1922 = vunpack.c.h.b16 %v506
        %v1923 = vunpack.c.l.b16 %v507
        %v1924 = vunpack.c.h.b16 %v507
        %v1925 = vunpack.c.l.b16 %v508
        %v1926 = vunpack.c.h.b16 %v508
        %v1927 = vunpack.c.l.b16 %v509
        %v1928 = vunpack.c.h.b16 %v509
        %v1929 = vunpack.c.l.b16 %v510
        %v1930 = vunpack.c.h.b16 %v510
        %v1931 = vunpack.c.l.b16 %v511
        %v1932 = vunpack.c.h.b16 %v511
        %v1933 = vunpack.c.l.b16 %v512
        %v1934 = vunpack.c.h.b16 %v512
        %v1935 = vunpack.c.l.b16 %v513
        %v1936 = vunpack.c.h.b16 %v513
        %v1937 = vunpack.c.l.b16 %v514
        %v1938 = vunpack.c.h.b16 %v514
        %v1939 = vunpack.c.l.b16 %v515
        %v1940 = vunpack.c.h.b16 %v515
        %v1941 = vunpack.c.l.b16 %v516
        %v1942 = vunpack.c.h.b16 %v516
        %v1943 = vunpack.c.l.b16 %v517
        %v1944 = vunpack.c.h.b16 %v517
        %v1945 = vunpack.c.l.b16 %v518
        %v1946 = vunpack.c.h.b16 %v518
        %v1947 = vunpack.c.l.b16 %v519
        %v1948 = vunpack.c.h.b16 %v519
        %v1949 = vunpack.c.l.b16 %v520
        %v1950 = vunpack.c.h.b16 %v520
        %v1951 = vunpack.c.l.b16 %v521
        %v1952 = vunpack.c.h.b16 %v521
        %v1953 = vunpack.c.l.b16 %v522
        %v1954 = vunpack.c.h.b16 %v522
        %v1955 = vunpack.c.l.b16 %v523
        %v1956 = vunpack.c.h.b16 %v523
        %v1957 = vunpack.c.l.b16 %v524
        %v1958 = vunpack.c.h.b16 %v524
        %v1959 = vunpack.c.l.b16 %v525
        %v1960 = vunpack.c.h.b16 %v525
        %v1961 = vunpack.c.l.b16 %v526
        %v1962 = vunpack.c.h.b16 %v526
        %v1963 = vunpack.c.l.b16 %v527
        %v1964 = vunpack.c.h.b16 %v527
        %v1965 = vunpack.c.l.b16 %v528
        %v1966 = vunpack.c.h.b16 %v528
        %v1967 = vunpack.c.l.b16 %v529
        %v1968 = vunpack.c.h.b16 %v529
        %v1969 = vunpack.c.l.b16 %v530
        %v1970 = vunpack.c.h.b16 %v530
        %v1971 = vunpack.c.l.b16 %v531
        %v1972 = vunpack.c.h.b16 %v531
        %v1973 = vunpack.c.l.b16 %v532
        %v1974 = vunpack.c.h.b16 %v532
        %v1975 = vunpack.c.l.b16 %v533
        %v1976 = vunpack.c.h.b16 %v533
        %v1977 = vunpack.c.l.b16 %v534
        %v1978 = vunpack.c.h.b16 %v534
        %v1979 = vunpack.c.l.b16 %v535
        %v1980 = vunpack.c.h.b16 %v535
        %v1981 = vunpack.c.l.b16 %v536
        %v1982 = vunpack.c.h.b16 %v536
        %v1983 = vunpack.c.l.b16 %v537
        %v1984 = vunpack.c.h.b16 %v537
        %v1985 = vunpack.c.l.b16 %v538
        %v1986 = vunpack.c.h.b16 %v538
        %v1987 = vunpack.c.l.b16 %v539
        %v1988 = vunpack.c.h.b16 %v539
        %v1989 = vunpack.c.l.b16 %v540
        %v1990 = vunpack.c.h.b16 %v540
        %v1991 = vunpack.c.l.b16 %v541
        %v1992 = vunpack.c.h.b16 %v541
        %v1993 = vunpack.c.l.b16 %v542
        %v1994 = vunpack.c.h.b16 %v542
        %v1995 = vunpack.c.l.b16 %v543
        %v1996 = vunpack.c.h.b16 %v543
        %v1997 = vunpack.c.l.b16 %v544
        %v1998 = vunpack.c.h.b16 %v544
        %v1999 = vunpack.c.l.b16 %v545
        %v2000 = vunpack.c.h.b16 %v545
        %v2001 = vunpack.c.l.b16 %v546
        %v2002 = vunpack.c.h.b16 %v546
        %v2003 = vunpack.c.l.b16 %v547
        %v2004 = vunpack.c.h.b16 %v547
        %v2005 = vunpack.c.l.b16 %v548
        %v2006 = vunpack.c.h.b16 %v548
        %v2007 = vunpack.c.l.b16 %v549
        %v2008 = vunpack.c.h.b16 %v549
        %v2009 = vunpack.c.l.b16 %v550
        %v2010 = vunpack.c.h.b16 %v550
        %v2011 = vunpack.c.l.b16 %v551
        %v2012 = vunpack.c.h.b16 %v551
        %v2013 = vunpack.c.l.b16 %v552
        %v2014 = vunpack.c.h.b16 %v552
        %v2015 = vunpack.c.l.b16 %v553
        %v2016 = vunpack.c.h.b16 %v553
        %v2017 = vunpack.c.l.b16 %v554
        %v2018 = vunpack.c.h.b16 %v554
        %v2019 = vunpack.c.l.b16 %v555
        %v2020 = vunpack.c.h.b16 %v555
        %v2021 = vunpack.c.l.b16 %v556
        %v2022 = vunpack.c.h.b16 %v556
        %v2023 = vunpack.c.l.b16 %v557
        %v2024 = vunpack.c.h.b16 %v557
        %v2025 = vunpack.c.l.b16 %v558
        %v2026 = vunpack.c.h.b16 %v558
        %v2027 = vunpack.c.l.b16 %v559
        %v2028 = vunpack.c.h.b16 %v559
        %v2029 = vunpack.c.l.b16 %v560
        %v2030 = vunpack.c.h.b16 %v560
        %v2031 = vunpack.c.l.b16 %v561
        %v2032 = vunpack.c.h.b16 %v561
        %v2033 = vunpack.c.l.b16 %v562
        %v2034 = vunpack.c.h.b16 %v562
        %v2035 = vunpack.c.l.b16 %v563
        %v2036 = vunpack.c.h.b16 %v563
        %v2037 = vunpack.c.l.b16 %v564
        %v2038 = vunpack.c.h.b16 %v564
        %v2039 = vunpack.c.l.b16 %v565
        %v2040 = vunpack.c.h.b16 %v565
        %v2041 = vunpack.c.l.b16 %v566
        %v2042 = vunpack.c.h.b16 %v566
        %v2043 = vunpack.c.l.b16 %v567
        %v2044 = vunpack.c.h.b16 %v567
        %v2045 = vunpack.c.l.b16 %v568
        %v2046 = vunpack.c.h.b16 %v568
        %v2047 = vunpack.c.l.b16 %v569
        %v2048 = vunpack.c.h.b16 %v569
        %v2049 = vunpack.c.l.b16 %v570
        %v2050 = vunpack.c.h.b16 %v570
        %v2051 = vunpack.c.l.b16 %v571
        %v2052 = vunpack.c.h.b16 %v571
        %v2053 = vunpack.c.l.b16 %v572
        %v2054 = vunpack.c.h.b16 %v572
        %v2055 = vunpack.c.l.b16 %v573
        %v2056 = vunpack.c.h.b16 %v573
        %v2057 = vunpack.c.l.b16 %v574
        %v2058 = vunpack.c.h.b16 %v574
        %v2059 = vunpack.c.l.b16 %v575
        %v2060 = vunpack.c.h.b16 %v575
        %v2061 = vunpack.c.l.b16 %v576
        %v2062 = vunpack.c.h.b16 %v576
        %v2063 = vunpack.c.l.b16 %v577
        %v2064 = vunpack.c.h.b16 %v577
        %v2065 = vunpack.c.l.b16 %v578
        %v2066 = vunpack.c.h.b16 %v578
        %v2067 = vunpack.c.l.b16 %v579
        %v2068 = vunpack.c.h.b16 %v579
        %v2069 = vunpack.c.l.b16 %v580
        %v2070 = vunpack.c.h.b16 %v580
        %v2071 = vunpack.c.l.b16 %v581
        %v2072 = vunpack.c.h.b16 %v581
        %v2073 = vunpack.c.l.b16 %v582
        %v2074 = vunpack.c.h.b16 %v582
        %v2075 = vunpack.c.l.b16 %v583
        %v2076 = vunpack.c.h.b16 %v583
        %v2077 = vunpack.c.l.b16 %v584
        %v2078 = vunpack.c.h.b16 %v584
        %v2079 = vunpack.c.l.b16 %v585
        %v2080 = vunpack.c.h.b16 %v585
        %v2081 = vunpack.c.l.b16 %v586
        %v2082 = vunpack.c.h.b16 %v586
        %v2083 = vunpack.c.l.b16 %v587
        %v2084 = vunpack.c.h.b16 %v587
        %v2085 = vunpack.c.l.b16 %v588
        %v2086 = vunpack.c.h.b16 %v588
        %v2087 = vunpack.c.l.b16 %v589
        %v2088 = vunpack.c.h.b16 %v589
        %v2089 = vunpack.c.l.b16 %v590
        %v2090 = vunpack.c.h.b16 %v590
        %v2091 = vunpack.c.l.b16 %v591
        %v2092 = vunpack.c.h.b16 %v591
        %v2093 = vunpack.c.l.b16 %v592
        %v2094 = vunpack.c.h.b16 %v592
        %v2095 = vunpack.c.l.b16 %v593
        %v2096 = vunpack.c.h.b16 %v593
        %v2097 = vunpack.c.l.b16 %v594
        %v2098 = vunpack.c.h.b16 %v594
        %v2099 = vunpack.c.l.b16 %v595
        %v2100 = vunpack.c.h.b16 %v595
        %v2101 = vunpack.c.l.b16 %v596
        %v2102 = vunpack.c.h.b16 %v596
        %v2103 = vunpack.c.l.b16 %v597
        %v2104 = vunpack.c.h.b16 %v597
        %v2105 = vunpack.c.l.b16 %v598
        %v2106 = vunpack.c.h.b16 %v598
        %v2107 = vunpack.c.l.b16 %v599
        %v2108 = vunpack.c.h.b16 %v599
        %v2109 = vunpack.c.l.b16 %v600
        %v2110 = vunpack.c.h.b16 %v600
        %v2111 = vunpack.c.l.b16 %v601
        %v2112 = vunpack.c.h.b16 %v601
        %v2113 = vunpack.c.l.b16 %v602
        %v2114 = vunpack.c.h.b16 %v602
        %v2115 = vunpack.c.l.b16 %v603
        %v2116 = vunpack.c.h.b16 %v603
        %v2117 = vunpack.c.l.b16 %v604
        %v2118 = vunpack.c.h.b16 %v604
        %v2119 = vunpack.c.l.b16 %v605
        %v2120 = vunpack.c.h.b16 %v605
        %v2121 = vunpack.c.l.b16 %v606
        %v2122 = vunpack.c.h.b16 %v606
        %v2123 = vunpack.c.l.b16 %v607
        %v2124 = vunpack.c.h.b16 %v607
        %v2125 = vunpack.c.l.b16 %v608
        %v2126 = vunpack.c.h.b16 %v608
        %v2127 = vunpack.c.l.b16 %v609
        %v2128 = vunpack.c.h.b16 %v609
        %v2129 = vunpack.c.l.b16 %v610
        %v2130 = vunpack.c.h.b16 %v610
        %v2131 = vunpack.c.l.b16 %v611
        %v2132 = vunpack.c.h.b16 %v611
        %v2133 = vunpack.c.l.b16 %v612
        %v2134 = vunpack.c.h.b16 %v612
        %v2135 = vunpack.c.l.b16 %v613
        %v2136 = vunpack.c.h.b16 %v613
        %v2137 = vunpack.c.l.b16 %v614
        %v2138 = vunpack.c.h.b16 %v614
        %v2139 = vunpack.c.l.b16 %v615
        %v2140 = vunpack.c.h.b16 %v615
        %v2141 = vunpack.c.l.b16 %v616
        %v2142 = vunpack.c.h.b16 %v616
        %v2143 = vunpack.c.l.b16 %v617
        %v2144 = vunpack.c.h.b16 %v617
        %v2145 = vunpack.c.l.b16 %v618
        %v2146 = vunpack.c.h.b16 %v618
        %v2147 = vunpack.c.l.b16 %v619
        %v2148 = vunpack.c.h.b16 %v619
        %v2149 = vunpack.c.l.b16 %v620
        %v2150 = vunpack.c.h.b16 %v620
        %v2151 = vunpack.c.l.b16 %v621
        %v2152 = vunpack.c.h.b16 %v621
        %v2153 = vunpack.c.l.b16 %v622
        %v2154 = vunpack.c.h.b16 %v622
        %v2155 = vunpack.c.l.b16 %v623
        %v2156 = vunpack.c.h.b16 %v623
        %v2157 = vunpack.c.l.b16 %v624
        %v2158 = vunpack.c.h.b16 %v624
        %v2159 = vunpack.c.l.b16 %v625
        %v2160 = vunpack.c.h.b16 %v625
        %v2161 = vunpack.c.l.b16 %v626
        %v2162 = vunpack.c.h.b16 %v626
        %v2163 = vunpack.c.l.b16 %v627
        %v2164 = vunpack.c.h.b16 %v627
        %v2165 = vunpack.c.l.b16 %v628
        %v2166 = vunpack.c.h.b16 %v628
        %v2167 = vunpack.c.l.b16 %v629
        %v2168 = vunpack.c.h.b16 %v629
        %v2169 = vunpack.c.l.b16 %v630
        %v2170 = vunpack.c.h.b16 %v630
        %v2171 = vunpack.c.l.b16 %v631
        %v2172 = vunpack.c.h.b16 %v631
        %v2173 = vunpack.c.l.b16 %v632
        %v2174 = vunpack.c.h.b16 %v632
        %v2175 = vunpack.c.l.b16 %v633
        %v2176 = vunpack.c.h.b16 %v633
        %v2177 = vunpack.c.l.b16 %v634
        %v2178 = vunpack.c.h.b16 %v634
        %v2179 = vunpack.c.l.b16 %v635
        %v2180 = vunpack.c.h.b16 %v635
        %v2181 = vunpack.c.l.b16 %v636
        %v2182 = vunpack.c.h.b16 %v636
        %v2183 = vunpack.c.l.b16 %v637
        %v2184 = vunpack.c.h.b16 %v637
        %v2185 = vunpack.c.l.b16 %v638
        %v2186 = vunpack.c.h.b16 %v638
        %v2187 = vunpack.c.l.b16 %v639
        %v2188 = vunpack.c.h.b16 %v639
        %v2189 = vunpack.c.l.b16 %v640
        %v2190 = vunpack.c.h.b16 %v640
        %v2191 = vunpack.c.l.b16 %v641
        %v2192 = vunpack.c.h.b16 %v641
        %v2193 = vunpack.c.l.b16 %v642
        %v2194 = vunpack.c.h.b16 %v642
        %v2195 = vunpack.c.l.b16 %v643
        %v2196 = vunpack.c.h.b16 %v643
        %v2197 = vunpack.c.l.b16 %v644
        %v2198 = vunpack.c.h.b16 %v644
        %v2199 = vunpack.c.l.b16 %v645
        %v2200 = vunpack.c.h.b16 %v645
        %v2201 = vunpack.c.l.b16 %v646
        %v2202 = vunpack.c.h.b16 %v646
        %v2203 = vunpack.c.l.b16 %v647
        %v2204 = vunpack.c.h.b16 %v647
        %v2205 = vunpack.c.l.b16 %v648
        %v2206 = vunpack.c.h.b16 %v648
        %v2207 = vunpack.c.l.b16 %v649
        %v2208 = vunpack.c.h.b16 %v649
        %v2209 = vunpack.c.l.b16 %v650
        %v2210 = vunpack.c.h.b16 %v650
        %v2211 = vunpack.c.l.b16 %v651
        %v2212 = vunpack.c.h.b16 %v651
        %v2213 = vunpack.c.l.b16 %v652
        %v2214 = vunpack.c.h.b16 %v652
        %v2215 = vunpack.c.l.b16 %v653
        %v2216 = vunpack.c.h.b16 %v653
        %v2217 = vunpack.c.l.b16 %v654
        %v2218 = vunpack.c.h.b16 %v654
        %v2219 = vunpack.c.l.b16 %v655
        %v2220 = vunpack.c.h.b16 %v655
        %v2221 = vunpack.c.l.b16 %v656
        %v2222 = vunpack.c.h.b16 %v656
        %v2223 = vunpack.c.l.b16 %v657
        %v2224 = vunpack.c.h.b16 %v657
        %v2225 = vunpack.c.l.b16 %v658
        %v2226 = vunpack.c.h.b16 %v658
        %v2227 = vunpack.c.l.b16 %v659
        %v2228 = vunpack.c.h.b16 %v659
        %v2229 = vunpack.c.l.b16 %v660
        %v2230 = vunpack.c.h.b16 %v660
        %v2231 = vunpack.c.l.b16 %v661
        %v2232 = vunpack.c.h.b16 %v661
        %v2233 = vunpack.c.l.b16 %v662
        %v2234 = vunpack.c.h.b16 %v662
        %v2235 = vunpack.c.l.b16 %v663
        %v2236 = vunpack.c.h.b16 %v663
        %v2237 = vunpack.c.l.b16 %v664
        %v2238 = vunpack.c.h.b16 %v664
        %v2239 = vunpack.c.l.b16 %v665
        %v2240 = vunpack.c.h.b16 %v665
        %v2241 = vunpack.c.l.b16 %v666
        %v2242 = vunpack.c.h.b16 %v666
        %v2243 = vunpack.c.l.b16 %v667
        %v2244 = vunpack.c.h.b16 %v667
        %v2245 = vunpack.c.l.b16 %v668
        %v2246 = vunpack.c.h.b16 %v668
        %v2247 = vunpack.c.l.b16 %v669
        %v2248 = vunpack.c.h.b16 %v669
        %v2249 = vunpack.c.l.b16 %v670
        %v2250 = vunpack.c.h.b16 %v670
        %v2251 = vunpack.c.l.b16 %v671
        %v2252 = vunpack.c.h.b16 %v671
        %v2253 = vunpack.c.l.b16 %v672
        %v2254 = vunpack.c.h.b16 %v672
        %v2255 = vunpack.c.l.b16 %v673
        %v2256 = vunpack.c.h.b16 %v673
        %v2257 = vunpack.c.l.b16 %v674
        %v2258 = vunpack.c.h.b16 %v674
        %v2259 = vunpack.c.l.b16 %v675
        %v2260 = vunpack.c.h.b16 %v675
        %v2261 = vunpack.c.l.b16 %v676
        %v2262 = vunpack.c.h.b16 %v676
        %v2263 = vunpack.c.l.b16 %v677
        %v2264 = vunpack.c.h.b16 %v677
        %v2265 = vunpack.c.l.b16 %v678
        %v2266 = vunpack.c.h.b16 %v678
        %v2267 = vunpack.c.l.b16 %v679
        %v2268 = vunpack.c.h.b16 %v679
        %v2269 = vunpack.c.l.b16 %v680
        %v2270 = vunpack.c.h.b16 %v680
        %v2271 = vunpack.c.l.b16 %v681
        %v2272 = vunpack.c.h.b16 %v681
        %v2273 = vunpack.c.l.b16 %v682
        %v2274 = vunpack.c.h.b16 %v682
        %v2275 = vunpack.c.l.b16 %v683
        %v2276 = vunpack.c.h.b16 %v683
        %v2277 = vunpack.c.l.b16 %v684
        %v2278 = vunpack.c.h.b16 %v684
        %v2279 = vunpack.c.l.b16 %v685
        %v2280 = vunpack.c.h.b16 %v685
        %v2281 = vunpack.c.l.b16 %v686
        %v2282 = vunpack.c.h.b16 %v686
        %v2283 = vunpack.c.l.b16 %v687
        %v2284 = vunpack.c.h.b16 %v687
        %v2285 = vunpack.c.l.b16 %v688
        %v2286 = vunpack.c.h.b16 %v688
        %v2287 = vunpack.c.l.b16 %v689
        %v2288 = vunpack.c.h.b16 %v689
        %v2289 = vunpack.c.l.b16 %v690
        %v2290 = vunpack.c.h.b16 %v690
        %v2291 = vunpack.c.l.b16 %v691
        %v2292 = vunpack.c.h.b16 %v691
        %v2293 = vunpack.c.l.b16 %v692
        %v2294 = vunpack.c.h.b16 %v692
        %v2295 = vunpack.c.l.b16 %v693
        %v2296 = vunpack.c.h.b16 %v693
        %v2297 = vunpack.c.l.b16 %v694
        %v2298 = vunpack.c.h.b16 %v694
        %v2299 = vunpack.c.l.b16 %v695
        %v2300 = vunpack.c.h.b16 %v695
        %v2301 = vunpack.c.l.b16 %v696
        %v2302 = vunpack.c.h.b16 %v696
        %v2303 = vunpack.c.l.b16 %v697
        %v2304 = vunpack.c.h.b16 %v697
        %v2305 = vunpack.c.l.b16 %v698
        %v2306 = vunpack.c.h.b16 %v698
        %v2307 = vunpack.c.l.b16 %v699
        %v2308 = vunpack.c.h.b16 %v699
        %v2309 = vunpack.c.l.b16 %v700
        %v2310 = vunpack.c.h.b16 %v700
        %v2311 = vunpack.c.l.b16 %v701
        %v2312 = vunpack.c.h.b16 %v701
        %v2313 = vunpack.c.l.b16 %v702
        %v2314 = vunpack.c.h.b16 %v702
        %v2315 = vunpack.c.l.b16 %v703
        %v2316 = vunpack.c.h.b16 %v703
        %v2317 = vunpack.c.l.b16 %v704
        %v2318 = vunpack.c.h.b16 %v704
        %v2319 = vunpack.c.l.b16 %v705
        %v2320 = vunpack.c.h.b16 %v705
        %v2321 = vunpack.c.l.b16 %v706
        %v2322 = vunpack.c.h.b16 %v706
        %v2323 = vunpack.c.l.b16 %v707
        %v2324 = vunpack.c.h.b16 %v707
        %v2325 = vunpack.c.l.b16 %v708
        %v2326 = vunpack.c.h.b16 %v708
        %v2327 = vunpack.c.l.b16 %v709
        %v2328 = vunpack.c.h.b16 %v709
        %v2329 = vunpack.c.l.b16 %v710
        %v2330 = vunpack.c.h.b16 %v710
        %v2331 = vunpack.c.l.b16 %v711
        %v2332 = vunpack.c.h.b16 %v711
        %v2333 = vunpack.c.l.b16 %v712
        %v2334 = vunpack.c.h.b16 %v712
        %v2335 = vunpack.c.l.b16 %v713
        %v2336 = vunpack.c.h.b16 %v713
        %v2337 = vunpack.c.l.b16 %v714
        %v2338 = vunpack.c.h.b16 %v714
        %v2339 = vunpack.c.l.b16 %v715
        %v2340 = vunpack.c.h.b16 %v715
        %v2341 = vunpack.c.l.b16 %v716
        %v2342 = vunpack.c.h.b16 %v716
        %v2343 = vunpack.c.l.b16 %v717
        %v2344 = vunpack.c.h.b16 %v717
        %v2345 = vunpack.c.l.b16 %v718
        %v2346 = vunpack.c.h.b16 %v718
        %v2347 = vunpack.c.l.b16 %v719
        %v2348 = vunpack.c.h.b16 %v719
        %v2349 = vunpack.c.l.b16 %v720
        %v2350 = vunpack.c.h.b16 %v720
        %v2351 = vunpack.c.l.b16 %v721
        %v2352 = vunpack.c.h.b16 %v721
        %v2353 = vunpack.c.l.b16 %v722
        %v2354 = vunpack.c.h.b16 %v722
        %v2355 = vunpack.c.l.b16 %v723
        %v2356 = vunpack.c.h.b16 %v723
        %v2357 = vunpack.c.l.b16 %v724
        %v2358 = vunpack.c.h.b16 %v724
        %v2359 = vunpack.c.l.b16 %v725
        %v2360 = vunpack.c.h.b16 %v725
        %v2361 = vunpack.c.l.b16 %v726
        %v2362 = vunpack.c.h.b16 %v726
        %v2363 = vunpack.c.l.b16 %v727
        %v2364 = vunpack.c.h.b16 %v727
        %v2365 = vunpack.c.l.b16 %v728
        %v2366 = vunpack.c.h.b16 %v728
        %v2367 = vunpack.c.l.b16 %v729
        %v2368 = vunpack.c.h.b16 %v729
        %v2369 = vunpack.c.l.b16 %v730
        %v2370 = vunpack.c.h.b16 %v730
        %v2371 = vunpack.c.l.b16 %v731
        %v2372 = vunpack.c.h.b16 %v731
        %v2373 = vunpack.c.l.b16 %v732
        %v2374 = vunpack.c.h.b16 %v732
        %v2375 = vunpack.c.l.b16 %v733
        %v2376 = vunpack.c.h.b16 %v733
        %v2377 = vunpack.c.l.b16 %v734
        %v2378 = vunpack.c.h.b16 %v734
        %v2379 = vunpack.c.l.b16 %v735
        %v2380 = vunpack.c.h.b16 %v735
        %v2381 = vunpack.c.l.b16 %v736
        %v2382 = vunpack.c.h.b16 %v736
        %v2383 = vunpack.c.l.b16 %v737
        %v2384 = vunpack.c.h.b16 %v737
        %v2385 = vunpack.c.l.b16 %v738
        %v2386 = vunpack.c.h.b16 %v738
        %v2387 = vunpack.c.l.b16 %v739
        %v2388 = vunpack.c.h.b16 %v739
        %v2389 = vunpack.c.l.b16 %v740
        %v2390 = vunpack.c.h.b16 %v740
        %v2391 = vunpack.c.l.b16 %v741
        %v2392 = vunpack.c.h.b16 %v741
        %v2393 = vunpack.c.l.b16 %v742
        %v2394 = vunpack.c.h.b16 %v742
        %v2395 = vunpack.c.l.b16 %v743
        %v2396 = vunpack.c.h.b16 %v743
        %v2397 = vunpack.c.l.b16 %v744
        %v2398 = vunpack.c.h.b16 %v744
        %v2399 = vunpack.c.l.b16 %v745
        %v2400 = vunpack.c.h.b16 %v745
        %v2401 = vunpack.c.l.b16 %v746
        %v2402 = vunpack.c.h.b16 %v746
        %v2403 = vunpack.c.l.b16 %v747
        %v2404 = vunpack.c.h.b16 %v747
        %v2405 = vunpack.c.l.b16 %v748
        %v2406 = vunpack.c.h.b16 %v748
        %v2407 = vunpack.c.l.b16 %v749
        %v2408 = vunpack.c.h.b16 %v749
        %v2409 = vunpack.c.l.b16 %v750
        %v2410 = vunpack.c.h.b16 %v750
        %v2411 = vunpack.c.l.b16 %v751
        %v2412 = vunpack.c.h.b16 %v751
        %v2413 = vunpack.c.l.b16 %v752
        %v2414 = vunpack.c.h.b16 %v752
        %v2415 = vunpack.c.l.b16 %v753
        %v2416 = vunpack.c.h.b16 %v753
        %v2417 = vunpack.c.l.b16 %v754
        %v2418 = vunpack.c.h.b16 %v754
        %v2419 = vunpack.c.l.b16 %v755
        %v2420 = vunpack.c.h.b16 %v755
        %v2421 = vunpack.c.l.b16 %v756
        %v2422 = vunpack.c.h.b16 %v756
        %v2423 = vunpack.c.l.b16 %v757
        %v2424 = vunpack.c.h.b16 %v757
        %v2425 = vunpack.c.l.b16 %v758
        %v2426 = vunpack.c.h.b16 %v758
        %v2427 = vpack.c.b16 %v1469, %v1467
        %v2428 = vpack.c.b16 %v1470, %v1468
        %v2429 = vpack.c.b16 %v1473, %v1471
        %v2430 = vpack.c.b16 %v1474, %v1472
        %v2431 = vpack.c.b16 %v1477, %v1475
        %v2432 = vpack.c.b16 %v1478, %v1476
        %v2433 = vpack.c.b16 %v1481, %v1479
        %v2434 = vpack.c.b16 %v1482, %v1480
        %v2435 = vpack.c.b16 %v1485, %v1483
        %v2436 = vpack.c.b16 %v1486, %v1484
        %v2437 = vpack.c.b16 %v1489, %v1487
        %v2438 = vpack.c.b16 %v1490, %v1488
        %v2439 = vpack.c.b16 %v1493, %v1491
        %v2440 = vpack.c.b16 %v1494, %v1492
        %v2441 = vpack.c.b16 %v1497, %v1495
        %v2442 = vpack.c.b16 %v1498, %v1496
        %v2443 = vpack.c.b16 %v1501, %v1499
        %v2444 = vpack.c.b16 %v1502, %v1500
        %v2445 = vpack.c.b16 %v1505, %v1503
        %v2446 = vpack.c.b16 %v1506, %v1504
        %v2447 = vpack.c.b16 %v1509, %v1507
        %v2448 = vpack.c.b16 %v1510, %v1508
        %v2449 = vpack.c.b16 %v1513, %v1511
        %v2450 = vpack.c.b16 %v1514, %v1512
        %v2451 = vpack.c.b16 %v1517, %v1515
        %v2452 = vpack.c.b16 %v1518, %v1516
        %v2453 = vpack.c.b16 %v1521, %v1519
        %v2454 = vpack.c.b16 %v1522, %v1520
        %v2455 = vpack.c.b16 %v1525, %v1523
        %v2456 = vpack.c.b16 %v1526, %v1524
        %v2457 = vpack.c.b16 %v1529, %v1527
        %v2458 = vpack.c.b16 %v1530, %v1528
        %v2459 = vpack.c.b16 %v1533, %v1531
        %v2460 = vpack.c.b16 %v1534, %v1532
        %v2461 = vpack.c.b16 %v1537, %v1535
        %v2462 = vpack.c.b16 %v1538, %v1536
        %v2463 = vpack.c.b16 %v1541, %v1539
        %v2464 = vpack.c.b16 %v1542, %v1540
        %v2465 = vpack.c.b16 %v1545, %v1543
        %v2466 = vpack.c.b16 %v1546, %v1544
        %v2467 = vpack.c.b16 %v1549, %v1547
        %v2468 = vpack.c.b16 %v1550, %v1548
        %v2469 = vpack.c.b16 %v1553, %v1551
        %v2470 = vpack.c.b16 %v1554, %v1552
        %v2471 = vpack.c.b16 %v1557, %v1555
        %v2472 = vpack.c.b16 %v1558, %v1556
        %v2473 = vpack.c.b16 %v1561, %v1559
        %v2474 = vpack.c.b16 %v1562, %v1560
        %v2475 = vpack.c.b16 %v1565, %v1563
        %v2476 = vpack.c.b16 %v1566, %v1564
        %v2477 = vpack.c.b16 %v1569, %v1567
        %v2478 = vpack.c.b16 %v1570, %v1568
        %v2479 = vpack.c.b16 %v1573, %v1571
        %v2480 = vpack.c.b16 %v1574, %v1572
        %v2481 = vpack.c.b16 %v1577, %v1575
        %v2482 = vpack.c.b16 %v1578, %v1576
        %v2483 = vpack.c.b16 %v1581, %v1579
        %v2484 = vpack.c.b16 %v1582, %v1580
        %v2485 = vpack.c.b16 %v1585, %v1583
        %v2486 = vpack.c.b16 %v1586, %v1584
        %v2487 = vpack.c.b16 %v1589, %v1587
        %v2488 = vpack.c.b16 %v1590, %v1588
        %v2489 = vpack.c.b16 %v1593, %v1591
        %v2490 = vpack.c.b16 %v1594, %v1592
        %v2491 = vpack.c.b16 %v1597, %v1595
        %v2492 = vpack.c.b16 %v1598, %v1596
        %v2493 = vpack.c.b16 %v1601, %v1599
        %v2494 = vpack.c.b16 %v1602, %v1600
        %v2495 = vpack.c.b16 %v1605, %v1603
        %v2496 = vpack.c.b16 %v1606, %v1604
        %v2497 = vpack.c.b16 %v1609, %v1607
        %v2498 = vpack.c.b16 %v1610, %v1608
        %v2499 = vpack.c.b16 %v1613, %v1611
        %v2500 = vpack.c.b16 %v1614, %v1612
        %v2501 = vpack.c.b16 %v1617, %v1615
        %v2502 = vpack.c.b16 %v1618, %v1616
        %v2503 = vpack.c.b16 %v1621, %v1619
        %v2504 = vpack.c.b16 %v1622, %v1620
        %v2505 = vpack.c.b16 %v1625, %v1623
        %v2506 = vpack.c.b16 %v1626, %v1624
        %v2507 = vpack.c.b16 %v1629, %v1627
        %v2508 = vpack.c.b16 %v1630, %v1628
        %v2509 = vpack.c.b16 %v1633, %v1631
        %v2510 = vpack.c.b16 %v1634, %v1632
        %v2511 = vpack.c.b16 %v1637, %v1635
        %v2512 = vpack.c.b16 %v1638, %v1636
        %v2513 = vpack.c.b16 %v1641, %v1639
        %v2514 = vpack.c.b16 %v1642, %v1640
        %v2515 = vpack.c.b16 %v1645, %v1643
        %v2516 = vpack.c.b16 %v1646, %v1644
        %v2517 = vpack.c.b16 %v1649, %v1647
        %v2518 = vpack.c.b16 %v1650, %v1648
        %v2519 = vpack.c.b16 %v1653, %v1651
        %v2520 = vpack.c.b16 %v1654, %v1652
        %v2521 = vpack.c.b16 %v1657, %v1655
        %v2522 = vpack.c.b16 %v1658, %v1656
        %v2523 = vpack.c.b16 %v1661, %v1659
        %v2524 = vpack.c.b16 %v1662, %v1660
        %v2525 = vpack.c.b16 %v1665, %v1663
        %v2526 = vpack.c.b16 %v1666, %v1664
        %v2527 = vpack.c.b16 %v1669, %v1667
        %v2528 = vpack.c.b16 %v1670, %v1668
        %v2529 = vpack.c.b16 %v1673, %v1671
        %v2530 = vpack.c.b16 %v1674, %v1672
        %v2531 = vpack.c.b16 %v1677, %v1675
        %v2532 = vpack.c.b16 %v1678, %v1676
        %v2533 = vpack.c.b16 %v1681, %v1679
        %v2534 = vpack.c.b16 %v1682, %v1680
        %v2535 = vpack.c.b16 %v1685, %v1683
        %v2536 = vpack.c.b16 %v1686, %v1684
        %v2537 = vpack.c.b16 %v1689, %v1687
        %v2538 = vpack.c.b16 %v1690, %v1688
        %v2539 = vpack.c.b16 %v1693, %v1691
        %v2540 = vpack.c.b16 %v1694, %v1692
        %v2541 = vpack.c.b16 %v1697, %v1695
        %v2542 = vpack.c.b16 %v1698, %v1696
        %v2543 = vpack.c.b16 %v1701, %v1699
        %v2544 = vpack.c.b16 %v1702, %v1700
        %v2545 = vpack.c.b16 %v1705, %v1703
        %v2546 = vpack.c.b16 %v1706, %v1704
        %v2547 = vpack.c.b16 %v1709, %v1707
        %v2548 = vpack.c.b16 %v1710, %v1708
        %v2549 = vpack.c.b16 %v1713, %v1711
        %v2550 = vpack.c.b16 %v1714, %v1712
        %v2551 = vpack.c.b16 %v1717, %v1715
        %v2552 = vpack.c.b16 %v1718, %v1716
        %v2553 = vpack.c.b16 %v1721, %v1719
        %v2554 = vpack.c.b16 %v1722, %v1720
        %v2555 = vpack.c.b16 %v1725, %v1723
        %v2556 = vpack.c.b16 %v1726, %v1724
        %v2557 = vpack.c.b16 %v1729, %v1727
        %v2558 = vpack.c.b16 %v1730, %v1728
        %v2559 = vpack.c.b16 %v1733, %v1731
        %v2560 = vpack.c.b16 %v1734, %v1732
        %v2561 = vpack.c.b16 %v1737, %v1735
        %v2562 = vpack.c.b16 %v1738, %v1736
        %v2563 = vpack.c.b16 %v1741, %v1739
        %v2564 = vpack.c.b16 %v1742, %v1740
        %v2565 = vpack.c.b16 %v1745, %v1743
        %v2566 = vpack.c.b16 %v1746, %v1744
        %v2567 = vpack.c.b16 %v1749, %v1747
        %v2568 = vpack.c.b16 %v1750, %v1748
        %v2569 = vpack.c.b16 %v1753, %v1751
        %v2570 = vpack.c.b16 %v1754, %v1752
        %v2571 = vpack.c.b16 %v1757, %v1755
        %v2572 = vpack.c.b16 %v1758, %v1756
        %v2573 = vpack.c.b16 %v1761, %v1759
        %v2574 = vpack.c.b16 %v1762, %v1760
        %v2575 = vpack.c.b16 %v1765, %v1763
        %v2576 = vpack.c.b16 %v1766, %v1764
        %v2577 = vpack.c.b16 %v1769, %v1767
        %v2578 = vpack.c.b16 %v1770, %v1768
        %v2579 = vpack.c.b16 %v1773, %v1771
        %v2580 = vpack.c.b16 %v1774, %v1772
        %v2581 = vpack.c.b16 %v1777, %v1775
        %v2582 = vpack.c.b16 %v1778, %v1776
        %v2583 = vpack.c.b16 %v1781, %v1779
        %v2584 = vpack.c.b16 %v1782, %v1780
        %v2585 = vpack.c.b16 %v1785, %v1783
        %v2586 = vpack.c.b16 %v1786, %v1784
        %v2587 = vpack.c.b16 %v1789, %v1787
        %v2588 = vpack.c.b16 %v1790, %v1788
        %v2589 = vpack.c.b16 %v1793, %v1791
        %v2590 = vpack.c.b16 %v1794, %v1792
        %v2591 = vpack.c.b16 %v1797, %v1795
        %v2592 = vpack.c.b16 %v1798, %v1796
        %v2593 = vpack.c.b16 %v1801, %v1799
        %v2594 = vpack.c.b16 %v1802, %v1800
        %v2595 = vpack.c.b16 %v1805, %v1803
        %v2596 = vpack.c.b16 %v1806, %v1804
        %v2597 = vpack.c.b16 %v1809, %v1807
        %v2598 = vpack.c.b16 %v1810, %v1808
        %v2599 = vpack.c.b16 %v1813, %v1811
        %v2600 = vpack.c.b16 %v1814, %v1812
        %v2601 = vpack.c.b16 %v1817, %v1815
        %v2602 = vpack.c.b16 %v1818, %v1816
        %v2603 = vpack.c.b16 %v1821, %v1819
        %v2604 = vpack.c.b16 %v1822, %v1820
        %v2605 = vpack.c.b16 %v1825, %v1823
        %v2606 = vpack.c.b16 %v1826, %v1824
        %v2607 = vpack.c.b16 %v1829, %v1827
        %v2608 = vpack.c.b16 %v1830, %v1828
        %v2609 = vpack.c.b16 %v1833, %v1831
        %v2610 = vpack.c.b16 %v1834, %v1832
        %v2611 = vpack.c.b16 %v1837, %v1835
        %v2612 = vpack.c.b16 %v1838, %v1836
        %v2613 = vpack.c.b16 %v1841, %v1839
        %v2614 = vpack.c.b16 %v1842, %v1840
        %v2615 = vpack.c.b16 %v1845, %v1843
        %v2616 = vpack.c.b16 %v1846, %v1844
        %v2617 = vpack.c.b16 %v1849, %v1847
        %v2618 = vpack.c.b16 %v1850, %v1848
        %v2619 = vpack.c.b16 %v1853, %v1851
        %v2620 = vpack.c.b16 %v1854, %v1852
        %v2621 = vpack.c.b16 %v1857, %v1855
        %v2622 = vpack.c.b16 %v1858, %v1856
        %v2623 = vpack.c.b16 %v1861, %v1859
        %v2624 = vpack.c.b16 %v1862, %v1860
        %v2625 = vpack.c.b16 %v1865, %v1863
        %v2626 = vpack.c.b16 %v1866, %v1864
        %v2627 = vpack.c.b16 %v1869, %v1867
        %v2628 = vpack.c.b16 %v1870, %v1868
        %v2629 = vpack.c.b16 %v1873, %v1871
        %v2630 = vpack.c.b16 %v1874, %v1872
        %v2631 = vpack.c.b16 %v1877, %v1875
        %v2632 = vpack.c.b16 %v1878, %v1876
        %v2633 = vpack.c.b16 %v1881, %v1879
        %v2634 = vpack.c.b16 %v1882, %v1880
        %v2635 = vpack.c.b16 %v1885, %v1883
        %v2636 = vpack.c.b16 %v1886, %v1884
        %v2637 = vpack.c.b16 %v1889, %v1887
        %v2638 = vpack.c.b16 %v1890, %v1888
        %v2639 = vpack.c.b16 %v1893, %v1891
        %v2640 = vpack.c.b16 %v1894, %v1892
        %v2641 = vpack.c.b16 %v1897, %v1895
        %v2642 = vpack.c.b16 %v1898, %v1896
        %v2643 = vpack.c.b16 %v1901, %v1899
        %v2644 = vpack.c.b16 %v1902, %v1900
        %v2645 = vpack.c.b16 %v1905, %v1903
        %v2646 = vpack.c.b16 %v1906, %v1904
        %v2647 = vpack.c.b16 %v1909, %v1907
        %v2648 = vpack.c.b16 %v1910, %v1908
        %v2649 = vpack.c.b16 %v1913, %v1911
        %v2650 = vpack.c.b16 %v1914, %v1912
        %v2651 = vpack.c.b16 %v1917, %v1915
        %v2652 = vpack.c.b16 %v1918, %v1916
        %v2653 = vpack.c.b16 %v1921, %v1919
        %v2654 = vpack.c.b16 %v1922, %v1920
        %v2655 = vpack.c.b16 %v1925, %v1923
        %v2656 = vpack.c.b16 %v1926, %v1924
        %v2657 = vpack.c.b16 %v1929, %v1927
        %v2658 = vpack.c.b16 %v1930, %v1928
        %v2659 = vpack.c.b16 %v1933, %v1931
        %v2660 = vpack.c.b16 %v1934, %v1932
        %v2661 = vpack.c.b16 %v1937, %v1935
        %v2662 = vpack.c.b16 %v1938, %v1936
        %v2663 = vpack.c.b16 %v1941, %v1939
        %v2664 = vpack.c.b16 %v1942, %v1940
        %v2665 = vpack.c.b16 %v1945, %v1943
        %v2666 = vpack.c.b16 %v1946, %v1944
        %v2667 = vpack.c.b16 %v1949, %v1947
        %v2668 = vpack.c.b16 %v1950, %v1948
        %v2669 = vpack.c.b16 %v1953, %v1951
        %v2670 = vpack.c.b16 %v1954, %v1952
        %v2671 = vpack.c.b16 %v1957, %v1955
        %v2672 = vpack.c.b16 %v1958, %v1956
        %v2673 = vpack.c.b16 %v1961, %v1959
        %v2674 = vpack.c.b16 %v1962, %v1960
        %v2675 = vpack.c.b16 %v1965, %v1963
        %v2676 = vpack.c.b16 %v1966, %v1964
        %v2677 = vpack.c.b16 %v1969, %v1967
        %v2678 = vpack.c.b16 %v1970, %v1968
        %v2679 = vpack.c.b16 %v1973, %v1971
        %v2680 = vpack.c.b16 %v1974, %v1972
        %v2681 = vpack.c.b16 %v1977, %v1975
        %v2682 = vpack.c.b16 %v1978, %v1976
        %v2683 = vpack.c.b16 %v1981, %v1979
        %v2684 = vpack.c.b16 %v1982, %v1980
        %v2685 = vpack.c.b16 %v1985, %v1983
        %v2686 = vpack.c.b16 %v1986, %v1984
        %v2687 = vpack.c.b16 %v1989, %v1987
        %v2688 = vpack.c.b16 %v1990, %v1988
        %v2689 = vpack.c.b16 %v1993, %v1991
        %v2690 = vpack.c.b16 %v1994, %v1992
        %v2691 = vpack.c.b16 %v1997, %v1995
        %v2692 = vpack.c.b16 %v1998, %v1996
        %v2693 = vpack.c.b16 %v2001, %v1999
        %v2694 = vpack.c.b16 %v2002, %v2000
        %v2695 = vpack.c.b16 %v2005, %v2003
        %v2696 = vpack.c.b16 %v2006, %v2004
        %v2697 = vpack.c.b16 %v2009, %v2007
        %v2698 = vpack.c.b16 %v2010, %v2008
        %v2699 = vpack.c.b16 %v2013, %v2011
        %v2700 = vpack.c.b16 %v2014, %v2012
        %v2701 = vpack.c.b16 %v2017, %v2015
        %v2702 = vpack.c.b16 %v2018, %v2016
        %v2703 = vpack.c.b16 %v2021, %v2019
        %v2704 = vpack.c.b16 %v2022, %v2020
        %v2705 = vpack.c.b16 %v2025, %v2023
        %v2706 = vpack.c.b16 %v2026, %v2024
        %v2707 = vpack.c.b16 %v2029, %v2027
        %v2708 = vpack.c.b16 %v2030, %v2028
        %v2709 = vpack.c.b16 %v2033, %v2031
        %v2710 = vpack.c.b16 %v2034, %v2032
        %v2711 = vpack.c.b16 %v2037, %v2035
        %v2712 = vpack.c.b16 %v2038, %v2036
        %v2713 = vpack.c.b16 %v2041, %v2039
        %v2714 = vpack.c.b16 %v2042, %v2040
        %v2715 = vpack.c.b16 %v2045, %v2043
        %v2716 = vpack.c.b16 %v2046, %v2044
        %v2717 = vpack.c.b16 %v2049, %v2047
        %v2718 = vpack.c.b16 %v2050, %v2048
        %v2719 = vpack.c.b16 %v2053, %v2051
        %v2720 = vpack.c.b16 %v2054, %v2052
        %v2721 = vpack.c.b16 %v2057, %v2055
        %v2722 = vpack.c.b16 %v2058, %v2056
        %v2723 = vpack.c.b16 %v2061, %v2059
        %v2724 = vpack.c.b16 %v2062, %v2060
        %v2725 = vpack.c.b16 %v2065, %v2063
        %v2726 = vpack.c.b16 %v2066, %v2064
        %v2727 = vpack.c.b16 %v2069, %v2067
        %v2728 = vpack.c.b16 %v2070, %v2068
        %v2729 = vpack.c.b16 %v2073, %v2071
        %v2730 = vpack.c.b16 %v2074, %v2072
        %v2731 = vpack.c.b16 %v2077, %v2075
        %v2732 = vpack.c.b16 %v2078, %v2076
        %v2733 = vpack.c.b16 %v2081, %v2079
        %v2734 = vpack.c.b16 %v2082, %v2080
        %v2735 = vpack.c.b16 %v2085, %v2083
        %v2736 = vpack.c.b16 %v2086, %v2084
        %v2737 = vpack.c.b16 %v2089, %v2087
        %v2738 = vpack.c.b16 %v2090, %v2088
        %v2739 = vpack.c.b16 %v2093, %v2091
        %v2740 = vpack.c.b16 %v2094, %v2092
        %v2741 = vpack.c.b16 %v2097, %v2095
        %v2742 = vpack.c.b16 %v2098, %v2096
        %v2743 = vpack.c.b16 %v2101, %v2099
        %v2744 = vpack.c.b16 %v2102, %v2100
        %v2745 = vpack.c.b16 %v2105, %v2103
        %v2746 = vpack.c.b16 %v2106, %v2104
        %v2747 = vpack.c.b16 %v2109, %v2107
        %v2748 = vpack.c.b16 %v2110, %v2108
        %v2749 = vpack.c.b16 %v2113, %v2111
        %v2750 = vpack.c.b16 %v2114, %v2112
        %v2751 = vpack.c.b16 %v2117, %v2115
        %v2752 = vpack.c.b16 %v2118, %v2116
        %v2753 = vpack.c.b16 %v2121, %v2119
        %v2754 = vpack.c.b16 %v2122, %v2120
        %v2755 = vpack.c.b16 %v2125, %v2123
        %v2756 = vpack.c.b16 %v2126, %v2124
        %v2757 = vpack.c.b16 %v2129, %v2127
        %v2758 = vpack.c.b16 %v2130, %v2128
        %v2759 = vpack.c.b16 %v2133, %v2131
        %v2760 = vpack.c.b16 %v2134, %v2132
        %v2761 = vpack.c.b16 %v2137, %v2135
        %v2762 = vpack.c.b16 %v2138, %v2136
        %v2763 = vpack.c.b16 %v2141, %v2139
        %v2764 = vpack.c.b16 %v2142, %v2140
        %v2765 = vpack.c.b16 %v2145, %v2143
        %v2766 = vpack.c.b16 %v2146, %v2144
        %v2767 = vpack.c.b16 %v2149, %v2147
        %v2768 = vpack.c.b16 %v2150, %v2148
        %v2769 = vpack.c.b16 %v2153, %v2151
        %v2770 = vpack.c.b16 %v2154, %v2152
        %v2771 = vpack.c.b16 %v2157, %v2155
        %v2772 = vpack.c.b16 %v2158, %v2156
        %v2773 = vpack.c.b16 %v2161, %v2159
        %v2774 = vpack.c.b16 %v2162, %v2160
        %v2775 = vpack.c.b16 %v2165, %v2163
        %v2776 = vpack.c.b16 %v2166, %v2164
        %v2777 = vpack.c.b16 %v2169, %v2167
        %v2778 = vpack.c.b16 %v2170, %v2168
        %v2779 = vpack.c.b16 %v2173, %v2171
        %v2780 = vpack.c.b16 %v2174, %v2172
        %v2781 = vpack.c.b16 %v2177, %v2175
        %v2782 = vpack.c.b16 %v2178, %v2176
        %v2783 = vpack.c.b16 %v2181, %v2179
        %v2784 = vpack.c.b16 %v2182, %v2180
        %v2785 = vpack.c.b16 %v2185, %v2183
        %v2786 = vpack.c.b16 %v2186, %v2184
        %v2787 = vpack.c.b16 %v2189, %v2187
        %v2788 = vpack.c.b16 %v2190, %v2188
        %v2789 = vpack.c.b16 %v2193, %v2191
        %v2790 = vpack.c.b16 %v2194, %v2192
        %v2791 = vpack.c.b16 %v2197, %v2195
        %v2792 = vpack.c.b16 %v2198, %v2196
        %v2793 = vpack.c.b16 %v2201, %v2199
        %v2794 = vpack.c.b16 %v2202, %v2200
        %v2795 = vpack.c.b16 %v2205, %v2203
        %v2796 = vpack.c.b16 %v2206, %v2204
        %v2797 = vpack.c.b16 %v2209, %v2207
        %v2798 = vpack.c.b16 %v2210, %v2208
        %v2799 = vpack.c.b16 %v2213, %v2211
        %v2800 = vpack.c.b16 %v2214, %v2212
        %v2801 = vpack.c.b16 %v2217, %v2215
        %v2802 = vpack.c.b16 %v2218, %v2216
        %v2803 = vpack.c.b16 %v2221, %v2219
        %v2804 = vpack.c.b16 %v2222, %v2220
        %v2805 = vpack.c.b16 %v2225, %v2223
        %v2806 = vpack.c.b16 %v2226, %v2224
        %v2807 = vpack.c.b16 %v2229, %v2227
        %v2808 = vpack.c.b16 %v2230, %v2228
        %v2809 = vpack.c.b16 %v2233, %v2231
        %v2810 = vpack.c.b16 %v2234, %v2232
        %v2811 = vpack.c.b16 %v2237, %v2235
        %v2812 = vpack.c.b16 %v2238, %v2236
        %v2813 = vpack.c.b16 %v2241, %v2239
        %v2814 = vpack.c.b16 %v2242, %v2240
        %v2815 = vpack.c.b16 %v2245, %v2243
        %v2816 = vpack.c.b16 %v2246, %v2244
        %v2817 = vpack.c.b16 %v2249, %v2247
        %v2818 = vpack.c.b16 %v2250, %v2248
        %v2819 = vpack.c.b16 %v2253, %v2251
        %v2820 = vpack.c.b16 %v2254, %v2252
        %v2821 = vpack.c.b16 %v2257, %v2255
        %v2822 = vpack.c.b16 %v2258, %v2256
        %v2823 = vpack.c.b16 %v2261, %v2259
        %v2824 = vpack.c.b16 %v2262, %v2260
        %v2825 = vpack.c.b16 %v2265, %v2263
        %v2826 = vpack.c.b16 %v2266, %v2264
        %v2827 = vpack.c.b16 %v2269, %v2267
        %v2828 = vpack.c.b16 %v2270, %v2268
        %v2829 = vpack.c.b16 %v2273, %v2271
        %v2830 = vpack.c.b16 %v2274, %v2272
        %v2831 = vpack.c.b16 %v2277, %v2275
        %v2832 = vpack.c.b16 %v2278, %v2276
        %v2833 = vpack.c.b16 %v2281, %v2279
        %v2834 = vpack.c.b16 %v2282, %v2280
        %v2835 = vpack.c.b16 %v2285, %v2283
        %v2836 = vpack.c.b16 %v2286, %v2284
        %v2837 = vpack.c.b16 %v2289, %v2287
        %v2838 = vpack.c.b16 %v2290, %v2288
        %v2839 = vpack.c.b16 %v2293, %v2291
        %v2840 = vpack.c.b16 %v2294, %v2292
        %v2841 = vpack.c.b16 %v2297, %v2295
        %v2842 = vpack.c.b16 %v2298, %v2296
        %v2843 = vpack.c.b16 %v2301, %v2299
        %v2844 = vpack.c.b16 %v2302, %v2300
        %v2845 = vpack.c.b16 %v2305, %v2303
        %v2846 = vpack.c.b16 %v2306, %v2304
        %v2847 = vpack.c.b16 %v2309, %v2307
        %v2848 = vpack.c.b16 %v2310, %v2308
        %v2849 = vpack.c.b16 %v2313, %v2311
        %v2850 = vpack.c.b16 %v2314, %v2312
        %v2851 = vpack.c.b16 %v2317, %v2315
        %v2852 = vpack.c.b16 %v2318, %v2316
        %v2853 = vpack.c.b16 %v2321, %v2319
        %v2854 = vpack.c.b16 %v2322, %v2320
        %v2855 = vpack.c.b16 %v2325, %v2323
        %v2856 = vpack.c.b16 %v2326, %v2324
        %v2857 = vpack.c.b16 %v2329, %v2327
        %v2858 = vpack.c.b16 %v2330, %v2328
        %v2859 = vpack.c.b16 %v2333, %v2331
        %v2860 = vpack.c.b16 %v2334, %v2332
        %v2861 = vpack.c.b16 %v2337, %v2335
        %v2862 = vpack.c.b16 %v2338, %v2336
        %v2863 = vpack.c.b16 %v2341, %v2339
        %v2864 = vpack.c.b16 %v2342, %v2340
        %v2865 = vpack.c.b16 %v2345, %v2343
        %v2866 = vpack.c.b16 %v2346, %v2344
        %v2867 = vpack.c.b16 %v2349, %v2347
        %v2868 = vpack.c.b16 %v2350, %v2348
        %v2869 = vpack.c.b16 %v2353, %v2351
        %v2870 = vpack.c.b16 %v2354, %v2352
        %v2871 = vpack.c.b16 %v2357, %v2355
        %v2872 = vpack.c.b16 %v2358, %v2356
        %v2873 = vpack.c.b16 %v2361, %v2359
        %v2874 = vpack.c.b16 %v2362, %v2360
        %v2875 = vpack.c.b16 %v2365, %v2363
        %v2876 = vpack.c.b16 %v2366, %v2364
        %v2877 = vpack.c.b16 %v2369, %v2367
        %v2878 = vpack.c.b16 %v2370, %v2368
        %v2879 = vpack.c.b16 %v2373, %v2371
        %v2880 = vpack.c.b16 %v2374, %v2372
        %v2881 = vpack.c.b16 %v2377, %v2375
        %v2882 = vpack.c.b16 %v2378, %v2376
        %v2883 = vpack.c.b16 %v2381, %v2379
        %v2884 = vpack.c.b16 %v2382, %v2380
        %v2885 = vpack.c.b16 %v2385, %v2383
        %v2886 = vpack.c.b16 %v2386, %v2384
        %v2887 = vpack.c.b16 %v2389, %v2387
        %v2888 = vpack.c.b16 %v2390, %v2388
        %v2889 = vpack.c.b16 %v2393, %v2391
        %v2890 = vpack.c.b16 %v2394, %v2392
        %v2891 = vpack.c.b16 %v2397, %v2395
        %v2892 = vpack.c.b16 %v2398, %v2396
        %v2893 = vpack.c.b16 %v2401, %v2399
        %v2894 = vpack.c.b16 %v2402, %v2400
        %v2895 = vpack.c.b16 %v2405, %v2403
        %v2896 = vpack.c.b16 %v2406, %v2404
        %v2897 = vpack.c.b16 %v2409, %v2407
        %v2898 = vpack.c.b16 %v2410, %v2408
        %v2899 = vpack.c.b16 %v2413, %v2411
        %v2900 = vpack.c.b16 %v2414, %v2412
        %v2901 = vpack.c.b16 %v2417, %v2415
        %v2902 = vpack.c.b16 %v2418, %v2416
        %v2903 = vpack.c.b16 %v2421, %v2419
        %v2904 = vpack.c.b16 %v2422, %v2420
        %v2905 = vpack.c.b16 %v2425, %v2423
        %v2906 = vpack.c.b16 %v2426, %v2424
        %3387 = vmatprep.subr.bf16.mxu0 %v2442
        %3388 = vmatpush1.bf16.msra.mxu0 %v2441
        %3389 = vmatprep.subr.bf16.mxu0 %v2440
        %3390 = vmatpush1.bf16.msra.mxu0 %v2439
        %3391 = vmatprep.subr.bf16.mxu0 %v2438
        %3392 = vmatpush1.bf16.msra.mxu0 %v2437
        %3393 = vmatprep.subr.bf16.mxu0 %v2436
        %3394 = vmatpush1.bf16.msra.mxu0 %v2435
        %3395 = vmatprep.subr.bf16.mxu0 %v2434
        %3396 = vmatpush1.bf16.msra.mxu0 %v2433
        %3397 = vmatprep.subr.bf16.mxu0 %v2432
        %3398 = vmatpush1.bf16.msra.mxu0 %v2431
        %3399 = vmatprep.subr.bf16.mxu0 %v2430
        %3400 = vmatpush1.bf16.msra.mxu0 %v2429
        %3401 = vmatprep.subr.bf16.mxu0 %v2428
        %3402 = vmatpush1.bf16.msra.mxu0 %v2427
        %3403 = vmatprep.subr.bf16.mxu0 %v2458
        %3404 = vmatpush2.bf16.msra.mxu0 %v2457
        %3405 = vmatprep.subr.bf16.mxu0 %v2456
        %3406 = vmatpush2.bf16.msra.mxu0 %v2455
        %3407 = vmatprep.subr.bf16.mxu0 %v2454
        %3408 = vmatpush2.bf16.msra.mxu0 %v2453
        %3409 = vmatprep.subr.bf16.mxu0 %v2452
        %3410 = vmatpush2.bf16.msra.mxu0 %v2451
        %3411 = vmatprep.subr.bf16.mxu0 %v2450
        %3412 = vmatpush2.bf16.msra.mxu0 %v2449
        %3413 = vmatprep.subr.bf16.mxu0 %v2448
        %3414 = vmatpush2.bf16.msra.mxu0 %v2447
        %3415 = vmatprep.subr.bf16.mxu0 %v2446
        %3416 = vmatpush2.bf16.msra.mxu0 %v2445
        %3417 = vmatprep.subr.bf16.mxu0 %v2444
        %3418 = vmatpush2.bf16.msra.mxu0 %v2443
        %3419 = vmatprep.mubr.bf16.mxu0 %v800
        %3420 = vmatmul.mubr.bf16.gmra.mxu0 %v786
        %v3421 = vpop.f32.mrf.mxu0
        %v3422 = vadd.f32 0.0, %v3421
        %v3423 = vpop.f32.mrf.mxu0
        %v3424 = vadd.f32 0.0, %v3423
        %v3425 = vpop.f32.mrf.mxu0
        %v3426 = vpop.f32.mrf.mxu0
        %3427 = vdwg.mxu0
        %3428 = vmatprep.subr.bf16.mxu0 %v2474
        %3429 = vmatpush1.bf16.msra.mxu0 %v2473
        %3430 = vmatprep.subr.bf16.mxu0 %v2472
        %3431 = vmatpush1.bf16.msra.mxu0 %v2471
        %3432 = vmatprep.subr.bf16.mxu0 %v2470
        %3433 = vmatpush1.bf16.msra.mxu0 %v2469
        %3434 = vmatprep.subr.bf16.mxu0 %v2468
        %3435 = vmatpush1.bf16.msra.mxu0 %v2467
        %3436 = vmatprep.subr.bf16.mxu0 %v2466
        %3437 = vmatpush1.bf16.msra.mxu0 %v2465
        %3438 = vmatprep.subr.bf16.mxu0 %v2464
        %3439 = vmatpush1.bf16.msra.mxu0 %v2463
        %3440 = vmatprep.subr.bf16.mxu0 %v2462
        %3441 = vmatpush1.bf16.msra.mxu0 %v2461
        %3442 = vmatprep.subr.bf16.mxu0 %v2460
        %3443 = vmatpush1.bf16.msra.mxu0 %v2459
        %3444 = vmatprep.subr.bf16.mxu0 %v2490
        %3445 = vmatpush2.bf16.msra.mxu0 %v2489
        %3446 = vmatprep.subr.bf16.mxu0 %v2488
        %3447 = vmatpush2.bf16.msra.mxu0 %v2487
        %3448 = vmatprep.subr.bf16.mxu0 %v2486
        %3449 = vmatpush2.bf16.msra.mxu0 %v2485
        %3450 = vmatprep.subr.bf16.mxu0 %v2484
        %3451 = vmatpush2.bf16.msra.mxu0 %v2483
        %3452 = vmatprep.subr.bf16.mxu0 %v2482
        %3453 = vmatpush2.bf16.msra.mxu0 %v2481
        %3454 = vmatprep.subr.bf16.mxu0 %v2480
        %3455 = vmatpush2.bf16.msra.mxu0 %v2479
        %3456 = vmatprep.subr.bf16.mxu0 %v2478
        %3457 = vmatpush2.bf16.msra.mxu0 %v2477
        %3458 = vmatprep.subr.bf16.mxu0 %v2476
        %3459 = vmatpush2.bf16.msra.mxu0 %v2475
        %3460 = vmatprep.mubr.bf16.mxu0 %v810
        %3461 = vmatmul.mubr.bf16.gmra.mxu0 %v808
        %v3462 = vpop.f32.mrf.mxu0
        %v3463 = vadd.f32 %v3422, %v3462
        %v3464 = vpop.f32.mrf.mxu0
        %v3465 = vadd.f32 %v3424, %v3464
        %v3466 = vpop.f32.mrf.mxu0
        %v3467 = vpop.f32.mrf.mxu0
        %3468 = vdwg.mxu0
        %3469 = vmatprep.subr.bf16.mxu0 %v2506
        %3470 = vmatpush1.bf16.msra.mxu0 %v2505
        %3471 = vmatprep.subr.bf16.mxu0 %v2504
        %3472 = vmatpush1.bf16.msra.mxu0 %v2503
        %3473 = vmatprep.subr.bf16.mxu0 %v2502
        %3474 = vmatpush1.bf16.msra.mxu0 %v2501
        %3475 = vmatprep.subr.bf16.mxu0 %v2500
        %3476 = vmatpush1.bf16.msra.mxu0 %v2499
        %3477 = vmatprep.subr.bf16.mxu0 %v2498
        %3478 = vmatpush1.bf16.msra.mxu0 %v2497
        %3479 = vmatprep.subr.bf16.mxu0 %v2496
        %3480 = vmatpush1.bf16.msra.mxu0 %v2495
        %3481 = vmatprep.subr.bf16.mxu0 %v2494
        %3482 = vmatpush1.bf16.msra.mxu0 %v2493
        %3483 = vmatprep.subr.bf16.mxu0 %v2492
        %3484 = vmatpush1.bf16.msra.mxu0 %v2491
        %3485 = vmatprep.subr.bf16.mxu0 %v2522
        %3486 = vmatpush2.bf16.msra.mxu0 %v2521
        %3487 = vmatprep.subr.bf16.mxu0 %v2520
        %3488 = vmatpush2.bf16.msra.mxu0 %v2519
        %3489 = vmatprep.subr.bf16.mxu0 %v2518
        %3490 = vmatpush2.bf16.msra.mxu0 %v2517
        %3491 = vmatprep.subr.bf16.mxu0 %v2516
        %3492 = vmatpush2.bf16.msra.mxu0 %v2515
        %3493 = vmatprep.subr.bf16.mxu0 %v2514
        %3494 = vmatpush2.bf16.msra.mxu0 %v2513
        %3495 = vmatprep.subr.bf16.mxu0 %v2512
        %3496 = vmatpush2.bf16.msra.mxu0 %v2511
        %3497 = vmatprep.subr.bf16.mxu0 %v2510
        %3498 = vmatpush2.bf16.msra.mxu0 %v2509
        %3499 = vmatprep.subr.bf16.mxu0 %v2508
        %3500 = vmatpush2.bf16.msra.mxu0 %v2507
        %3501 = vmatprep.mubr.bf16.mxu0 %v807
        %3502 = vmatmul.mubr.bf16.gmra.mxu0 %v793
        %v3503 = vpop.f32.mrf.mxu0
        %v3504 = vadd.f32 %v3463, %v3503
        %v3505 = vpop.f32.mrf.mxu0
        %v3506 = vadd.f32 %v3465, %v3505
        %v3507 = vpop.f32.mrf.mxu0
        %v3508 = vpop.f32.mrf.mxu0
        %3509 = vdwg.mxu0
        %3510 = vmatprep.subr.bf16.mxu0 %v2538
        %3511 = vmatpush1.bf16.msra.mxu0 %v2537
        %3512 = vmatprep.subr.bf16.mxu0 %v2536
        %3513 = vmatpush1.bf16.msra.mxu0 %v2535
        %3514 = vmatprep.subr.bf16.mxu0 %v2534
        %3515 = vmatpush1.bf16.msra.mxu0 %v2533
        %3516 = vmatprep.subr.bf16.mxu0 %v2532
        %3517 = vmatpush1.bf16.msra.mxu0 %v2531
        %3518 = vmatprep.subr.bf16.mxu0 %v2530
        %3519 = vmatpush1.bf16.msra.mxu0 %v2529
        %3520 = vmatprep.subr.bf16.mxu0 %v2528
        %3521 = vmatpush1.bf16.msra.mxu0 %v2527
        %3522 = vmatprep.subr.bf16.mxu0 %v2526
        %3523 = vmatpush1.bf16.msra.mxu0 %v2525
        %3524 = vmatprep.subr.bf16.mxu0 %v2524
        %3525 = vmatpush1.bf16.msra.mxu0 %v2523
        %3526 = vmatprep.subr.bf16.mxu0 %v2554
        %3527 = vmatpush2.bf16.msra.mxu0 %v2553
        %3528 = vmatprep.subr.bf16.mxu0 %v2552
        %3529 = vmatpush2.bf16.msra.mxu0 %v2551
        %3530 = vmatprep.subr.bf16.mxu0 %v2550
        %3531 = vmatpush2.bf16.msra.mxu0 %v2549
        %3532 = vmatprep.subr.bf16.mxu0 %v2548
        %3533 = vmatpush2.bf16.msra.mxu0 %v2547
        %3534 = vmatprep.subr.bf16.mxu0 %v2546
        %3535 = vmatpush2.bf16.msra.mxu0 %v2545
        %3536 = vmatprep.subr.bf16.mxu0 %v2544
        %3537 = vmatpush2.bf16.msra.mxu0 %v2543
        %3538 = vmatprep.subr.bf16.mxu0 %v2542
        %3539 = vmatpush2.bf16.msra.mxu0 %v2541
        %3540 = vmatprep.subr.bf16.mxu0 %v2540
        %3541 = vmatpush2.bf16.msra.mxu0 %v2539
        %3542 = vmatprep.mubr.bf16.mxu0 %v811
        %3543 = vmatmul.mubr.bf16.gmra.mxu0 %v809
        %v3544 = vpop.f32.mrf.mxu0
        %v3545 = vadd.f32 %v3504, %v3544
        %v3546 = vpop.f32.mrf.mxu0
        %v3547 = vadd.f32 %v3506, %v3546
        %v3548 = vpop.f32.mrf.mxu0
        %v3549 = vpop.f32.mrf.mxu0
        %3550 = vdwg.mxu0
        %3551 = vmatprep.subr.bf16.mxu0 %v2570
        %3552 = vmatpush1.bf16.msra.mxu0 %v2569
        %3553 = vmatprep.subr.bf16.mxu0 %v2568
        %3554 = vmatpush1.bf16.msra.mxu0 %v2567
        %3555 = vmatprep.subr.bf16.mxu0 %v2566
        %3556 = vmatpush1.bf16.msra.mxu0 %v2565
        %3557 = vmatprep.subr.bf16.mxu0 %v2564
        %3558 = vmatpush1.bf16.msra.mxu0 %v2563
        %3559 = vmatprep.subr.bf16.mxu0 %v2562
        %3560 = vmatpush1.bf16.msra.mxu0 %v2561
        %3561 = vmatprep.subr.bf16.mxu0 %v2560
        %3562 = vmatpush1.bf16.msra.mxu0 %v2559
        %3563 = vmatprep.subr.bf16.mxu0 %v2558
        %3564 = vmatpush1.bf16.msra.mxu0 %v2557
        %3565 = vmatprep.subr.bf16.mxu0 %v2556
        %3566 = vmatpush1.bf16.msra.mxu0 %v2555
        %3567 = vmatprep.subr.bf16.mxu0 %v2586
        %3568 = vmatpush2.bf16.msra.mxu0 %v2585
        %3569 = vmatprep.subr.bf16.mxu0 %v2584
        %3570 = vmatpush2.bf16.msra.mxu0 %v2583
        %3571 = vmatprep.subr.bf16.mxu0 %v2582
        %3572 = vmatpush2.bf16.msra.mxu0 %v2581
        %3573 = vmatprep.subr.bf16.mxu0 %v2580
        %3574 = vmatpush2.bf16.msra.mxu0 %v2579
        %3575 = vmatprep.subr.bf16.mxu0 %v2578
        %3576 = vmatpush2.bf16.msra.mxu0 %v2577
        %3577 = vmatprep.subr.bf16.mxu0 %v2576
        %3578 = vmatpush2.bf16.msra.mxu0 %v2575
        %3579 = vmatprep.subr.bf16.mxu0 %v2574
        %3580 = vmatpush2.bf16.msra.mxu0 %v2573
        %3581 = vmatprep.subr.bf16.mxu0 %v2572
        %3582 = vmatpush2.bf16.msra.mxu0 %v2571
        %3583 = vmatprep.mubr.bf16.mxu0 %v849
        %3584 = vmatmul.mubr.bf16.gmra.mxu0 %v835
        %v3585 = vpop.f32.mrf.mxu0
        %v3586 = vadd.f32 %v3545, %v3585
        %v3587 = vpop.f32.mrf.mxu0
        %v3588 = vadd.f32 %v3547, %v3587
        %v3589 = vpop.f32.mrf.mxu0
        %v3590 = vpop.f32.mrf.mxu0
        %3591 = vdwg.mxu0
        %3592 = vmatprep.subr.bf16.mxu0 %v2602
        %3593 = vmatpush1.bf16.msra.mxu0 %v2601
        %3594 = vmatprep.subr.bf16.mxu0 %v2600
        %3595 = vmatpush1.bf16.msra.mxu0 %v2599
        %3596 = vmatprep.subr.bf16.mxu0 %v2598
        %3597 = vmatpush1.bf16.msra.mxu0 %v2597
        %3598 = vmatprep.subr.bf16.mxu0 %v2596
        %3599 = vmatpush1.bf16.msra.mxu0 %v2595
        %3600 = vmatprep.subr.bf16.mxu0 %v2594
        %3601 = vmatpush1.bf16.msra.mxu0 %v2593
        %3602 = vmatprep.subr.bf16.mxu0 %v2592
        %3603 = vmatpush1.bf16.msra.mxu0 %v2591
        %3604 = vmatprep.subr.bf16.mxu0 %v2590
        %3605 = vmatpush1.bf16.msra.mxu0 %v2589
        %3606 = vmatprep.subr.bf16.mxu0 %v2588
        %3607 = vmatpush1.bf16.msra.mxu0 %v2587
        %3608 = vmatprep.subr.bf16.mxu0 %v2618
        %3609 = vmatpush2.bf16.msra.mxu0 %v2617
        %3610 = vmatprep.subr.bf16.mxu0 %v2616
        %3611 = vmatpush2.bf16.msra.mxu0 %v2615
        %3612 = vmatprep.subr.bf16.mxu0 %v2614
        %3613 = vmatpush2.bf16.msra.mxu0 %v2613
        %3614 = vmatprep.subr.bf16.mxu0 %v2612
        %3615 = vmatpush2.bf16.msra.mxu0 %v2611
        %3616 = vmatprep.subr.bf16.mxu0 %v2610
        %3617 = vmatpush2.bf16.msra.mxu0 %v2609
        %3618 = vmatprep.subr.bf16.mxu0 %v2608
        %3619 = vmatpush2.bf16.msra.mxu0 %v2607
        %3620 = vmatprep.subr.bf16.mxu0 %v2606
        %3621 = vmatpush2.bf16.msra.mxu0 %v2605
        %3622 = vmatprep.subr.bf16.mxu0 %v2604
        %3623 = vmatpush2.bf16.msra.mxu0 %v2603
        %3624 = vmatprep.mubr.bf16.mxu0 %v859
        %3625 = vmatmul.mubr.bf16.gmra.mxu0 %v857
        %v3626 = vpop.f32.mrf.mxu0
        %v3627 = vadd.f32 %v3586, %v3626
        %v3628 = vpop.f32.mrf.mxu0
        %v3629 = vadd.f32 %v3588, %v3628
        %v3630 = vpop.f32.mrf.mxu0
        %v3631 = vpop.f32.mrf.mxu0
        %3632 = vdwg.mxu0
        %3633 = vmatprep.subr.bf16.mxu0 %v2634
        %3634 = vmatpush1.bf16.msra.mxu0 %v2633
        %3635 = vmatprep.subr.bf16.mxu0 %v2632
        %3636 = vmatpush1.bf16.msra.mxu0 %v2631
        %3637 = vmatprep.subr.bf16.mxu0 %v2630
        %3638 = vmatpush1.bf16.msra.mxu0 %v2629
        %3639 = vmatprep.subr.bf16.mxu0 %v2628
        %3640 = vmatpush1.bf16.msra.mxu0 %v2627
        %3641 = vmatprep.subr.bf16.mxu0 %v2626
        %3642 = vmatpush1.bf16.msra.mxu0 %v2625
        %3643 = vmatprep.subr.bf16.mxu0 %v2624
        %3644 = vmatpush1.bf16.msra.mxu0 %v2623
        %3645 = vmatprep.subr.bf16.mxu0 %v2622
        %3646 = vmatpush1.bf16.msra.mxu0 %v2621
        %3647 = vmatprep.subr.bf16.mxu0 %v2620
        %3648 = vmatpush1.bf16.msra.mxu0 %v2619
        %3649 = vmatprep.subr.bf16.mxu0 %v2650
        %3650 = vmatpush2.bf16.msra.mxu0 %v2649
        %3651 = vmatprep.subr.bf16.mxu0 %v2648
        %3652 = vmatpush2.bf16.msra.mxu0 %v2647
        %3653 = vmatprep.subr.bf16.mxu0 %v2646
        %3654 = vmatpush2.bf16.msra.mxu0 %v2645
        %3655 = vmatprep.subr.bf16.mxu0 %v2644
        %3656 = vmatpush2.bf16.msra.mxu0 %v2643
        %3657 = vmatprep.subr.bf16.mxu0 %v2642
        %3658 = vmatpush2.bf16.msra.mxu0 %v2641
        %3659 = vmatprep.subr.bf16.mxu0 %v2640
        %3660 = vmatpush2.bf16.msra.mxu0 %v2639
        %3661 = vmatprep.subr.bf16.mxu0 %v2638
        %3662 = vmatpush2.bf16.msra.mxu0 %v2637
        %3663 = vmatprep.subr.bf16.mxu0 %v2636
        %3664 = vmatpush2.bf16.msra.mxu0 %v2635
        %3665 = vmatprep.mubr.bf16.mxu0 %v856
        %3666 = vmatmul.mubr.bf16.gmra.mxu0 %v842
        %v3667 = vpop.f32.mrf.mxu0
        %v3668 = vadd.f32 %v3627, %v3667
        %v3669 = vpop.f32.mrf.mxu0
        %v3670 = vadd.f32 %v3629, %v3669
        %v3671 = vpop.f32.mrf.mxu0
        %v3672 = vpop.f32.mrf.mxu0
        %3673 = vdwg.mxu0
        %3674 = vmatprep.subr.bf16.mxu0 %v2666
        %3675 = vmatpush1.bf16.msra.mxu0 %v2665
        %3676 = vmatprep.subr.bf16.mxu0 %v2664
        %3677 = vmatpush1.bf16.msra.mxu0 %v2663
        %3678 = vmatprep.subr.bf16.mxu0 %v2662
        %3679 = vmatpush1.bf16.msra.mxu0 %v2661
        %3680 = vmatprep.subr.bf16.mxu0 %v2660
        %3681 = vmatpush1.bf16.msra.mxu0 %v2659
        %3682 = vmatprep.subr.bf16.mxu0 %v2658
        %3683 = vmatpush1.bf16.msra.mxu0 %v2657
        %3684 = vmatprep.subr.bf16.mxu0 %v2656
        %3685 = vmatpush1.bf16.msra.mxu0 %v2655
        %3686 = vmatprep.subr.bf16.mxu0 %v2654
        %3687 = vmatpush1.bf16.msra.mxu0 %v2653
        %3688 = vmatprep.subr.bf16.mxu0 %v2652
        %3689 = vmatpush1.bf16.msra.mxu0 %v2651
        %3690 = vmatprep.subr.bf16.mxu0 %v2682
        %3691 = vmatpush2.bf16.msra.mxu0 %v2681
        %3692 = vmatprep.subr.bf16.mxu0 %v2680
        %3693 = vmatpush2.bf16.msra.mxu0 %v2679
        %3694 = vmatprep.subr.bf16.mxu0 %v2678
        %3695 = vmatpush2.bf16.msra.mxu0 %v2677
        %3696 = vmatprep.subr.bf16.mxu0 %v2676
        %3697 = vmatpush2.bf16.msra.mxu0 %v2675
        %3698 = vmatprep.subr.bf16.mxu0 %v2674
        %3699 = vmatpush2.bf16.msra.mxu0 %v2673
        %3700 = vmatprep.subr.bf16.mxu0 %v2672
        %3701 = vmatpush2.bf16.msra.mxu0 %v2671
        %3702 = vmatprep.subr.bf16.mxu0 %v2670
        %3703 = vmatpush2.bf16.msra.mxu0 %v2669
        %3704 = vmatprep.subr.bf16.mxu0 %v2668
        %3705 = vmatpush2.bf16.msra.mxu0 %v2667
        %3706 = vmatprep.mubr.bf16.mxu0 %v860
        %3707 = vmatmul.mubr.bf16.gmra.mxu0 %v858
        %v3708 = vpop.f32.mrf.mxu0
        %v3709 = vadd.f32 %v3668, %v3708
        %v3710 = vpop.f32.mrf.mxu0
        %v3711 = vadd.f32 %v3670, %v3710
        %v3712 = vpop.f32.mrf.mxu0
        %v3713 = vpop.f32.mrf.mxu0
        %3714 = vdwg.mxu0
        %3715 = vmatprep.subr.bf16.mxu0 %v2698
        %3716 = vmatpush1.bf16.msra.mxu0 %v2697
        %3717 = vmatprep.subr.bf16.mxu0 %v2696
        %3718 = vmatpush1.bf16.msra.mxu0 %v2695
        %3719 = vmatprep.subr.bf16.mxu0 %v2694
        %3720 = vmatpush1.bf16.msra.mxu0 %v2693
        %3721 = vmatprep.subr.bf16.mxu0 %v2692
        %3722 = vmatpush1.bf16.msra.mxu0 %v2691
        %3723 = vmatprep.subr.bf16.mxu0 %v2690
        %3724 = vmatpush1.bf16.msra.mxu0 %v2689
        %3725 = vmatprep.subr.bf16.mxu0 %v2688
        %3726 = vmatpush1.bf16.msra.mxu0 %v2687
        %3727 = vmatprep.subr.bf16.mxu0 %v2686
        %3728 = vmatpush1.bf16.msra.mxu0 %v2685
        %3729 = vmatprep.subr.bf16.mxu0 %v2684
        %3730 = vmatpush1.bf16.msra.mxu0 %v2683
        %3731 = vmatprep.subr.bf16.mxu0 %v2714
        %3732 = vmatpush2.bf16.msra.mxu0 %v2713
        %3733 = vmatprep.subr.bf16.mxu0 %v2712
        %3734 = vmatpush2.bf16.msra.mxu0 %v2711
        %3735 = vmatprep.subr.bf16.mxu0 %v2710
        %3736 = vmatpush2.bf16.msra.mxu0 %v2709
        %3737 = vmatprep.subr.bf16.mxu0 %v2708
        %3738 = vmatpush2.bf16.msra.mxu0 %v2707
        %3739 = vmatprep.subr.bf16.mxu0 %v2706
        %3740 = vmatpush2.bf16.msra.mxu0 %v2705
        %3741 = vmatprep.subr.bf16.mxu0 %v2704
        %3742 = vmatpush2.bf16.msra.mxu0 %v2703
        %3743 = vmatprep.subr.bf16.mxu0 %v2702
        %3744 = vmatpush2.bf16.msra.mxu0 %v2701
        %3745 = vmatprep.subr.bf16.mxu0 %v2700
        %3746 = vmatpush2.bf16.msra.mxu0 %v2699
        %3747 = vmatprep.mubr.bf16.mxu0 %v898
        %3748 = vmatmul.mubr.bf16.gmra.mxu0 %v884
        %v3749 = vpop.f32.mrf.mxu0
        %v3750 = vadd.f32 %v3709, %v3749
        %v3751 = vpop.f32.mrf.mxu0
        %v3752 = vadd.f32 %v3711, %v3751
        %v3753 = vpop.f32.mrf.mxu0
        %v3754 = vpop.f32.mrf.mxu0
        %3755 = vdwg.mxu0
        %3756 = vmatprep.subr.bf16.mxu0 %v2730
        %3757 = vmatpush1.bf16.msra.mxu0 %v2729
        %3758 = vmatprep.subr.bf16.mxu0 %v2728
        %3759 = vmatpush1.bf16.msra.mxu0 %v2727
        %3760 = vmatprep.subr.bf16.mxu0 %v2726
        %3761 = vmatpush1.bf16.msra.mxu0 %v2725
        %3762 = vmatprep.subr.bf16.mxu0 %v2724
        %3763 = vmatpush1.bf16.msra.mxu0 %v2723
        %3764 = vmatprep.subr.bf16.mxu0 %v2722
        %3765 = vmatpush1.bf16.msra.mxu0 %v2721
        %3766 = vmatprep.subr.bf16.mxu0 %v2720
        %3767 = vmatpush1.bf16.msra.mxu0 %v2719
        %3768 = vmatprep.subr.bf16.mxu0 %v2718
        %3769 = vmatpush1.bf16.msra.mxu0 %v2717
        %3770 = vmatprep.subr.bf16.mxu0 %v2716
        %3771 = vmatpush1.bf16.msra.mxu0 %v2715
        %3772 = vmatprep.subr.bf16.mxu0 %v2746
        %3773 = vmatpush2.bf16.msra.mxu0 %v2745
        %3774 = vmatprep.subr.bf16.mxu0 %v2744
        %3775 = vmatpush2.bf16.msra.mxu0 %v2743
        %3776 = vmatprep.subr.bf16.mxu0 %v2742
        %3777 = vmatpush2.bf16.msra.mxu0 %v2741
        %3778 = vmatprep.subr.bf16.mxu0 %v2740
        %3779 = vmatpush2.bf16.msra.mxu0 %v2739
        %3780 = vmatprep.subr.bf16.mxu0 %v2738
        %3781 = vmatpush2.bf16.msra.mxu0 %v2737
        %3782 = vmatprep.subr.bf16.mxu0 %v2736
        %3783 = vmatpush2.bf16.msra.mxu0 %v2735
        %3784 = vmatprep.subr.bf16.mxu0 %v2734
        %3785 = vmatpush2.bf16.msra.mxu0 %v2733
        %3786 = vmatprep.subr.bf16.mxu0 %v2732
        %3787 = vmatpush2.bf16.msra.mxu0 %v2731
        %3788 = vmatprep.mubr.bf16.mxu0 %v908
        %3789 = vmatmul.mubr.bf16.gmra.mxu0 %v906
        %v3790 = vpop.f32.mrf.mxu0
        %v3791 = vadd.f32 %v3750, %v3790
        %v3792 = vpop.f32.mrf.mxu0
        %v3793 = vadd.f32 %v3752, %v3792
        %v3794 = vpop.f32.mrf.mxu0
        %v3795 = vpop.f32.mrf.mxu0
        %3796 = vdwg.mxu0
        %3797 = vmatprep.subr.bf16.mxu0 %v2762
        %3798 = vmatpush1.bf16.msra.mxu0 %v2761
        %3799 = vmatprep.subr.bf16.mxu0 %v2760
        %3800 = vmatpush1.bf16.msra.mxu0 %v2759
        %3801 = vmatprep.subr.bf16.mxu0 %v2758
        %3802 = vmatpush1.bf16.msra.mxu0 %v2757
        %3803 = vmatprep.subr.bf16.mxu0 %v2756
        %3804 = vmatpush1.bf16.msra.mxu0 %v2755
        %3805 = vmatprep.subr.bf16.mxu0 %v2754
        %3806 = vmatpush1.bf16.msra.mxu0 %v2753
        %3807 = vmatprep.subr.bf16.mxu0 %v2752
        %3808 = vmatpush1.bf16.msra.mxu0 %v2751
        %3809 = vmatprep.subr.bf16.mxu0 %v2750
        %3810 = vmatpush1.bf16.msra.mxu0 %v2749
        %3811 = vmatprep.subr.bf16.mxu0 %v2748
        %3812 = vmatpush1.bf16.msra.mxu0 %v2747
        %3813 = vmatprep.subr.bf16.mxu0 %v2778
        %3814 = vmatpush2.bf16.msra.mxu0 %v2777
        %3815 = vmatprep.subr.bf16.mxu0 %v2776
        %3816 = vmatpush2.bf16.msra.mxu0 %v2775
        %3817 = vmatprep.subr.bf16.mxu0 %v2774
        %3818 = vmatpush2.bf16.msra.mxu0 %v2773
        %3819 = vmatprep.subr.bf16.mxu0 %v2772
        %3820 = vmatpush2.bf16.msra.mxu0 %v2771
        %3821 = vmatprep.subr.bf16.mxu0 %v2770
        %3822 = vmatpush2.bf16.msra.mxu0 %v2769
        %3823 = vmatprep.subr.bf16.mxu0 %v2768
        %3824 = vmatpush2.bf16.msra.mxu0 %v2767
        %3825 = vmatprep.subr.bf16.mxu0 %v2766
        %3826 = vmatpush2.bf16.msra.mxu0 %v2765
        %3827 = vmatprep.subr.bf16.mxu0 %v2764
        %3828 = vmatpush2.bf16.msra.mxu0 %v2763
        %3829 = vmatprep.mubr.bf16.mxu0 %v905
        %3830 = vmatmul.mubr.bf16.gmra.mxu0 %v891
        %v3831 = vpop.f32.mrf.mxu0
        %v3832 = vadd.f32 %v3791, %v3831
        %v3833 = vpop.f32.mrf.mxu0
        %v3834 = vadd.f32 %v3793, %v3833
        %v3835 = vpop.f32.mrf.mxu0
        %v3836 = vpop.f32.mrf.mxu0
        %3837 = vdwg.mxu0
        %3838 = vmatprep.subr.bf16.mxu0 %v2794
        %3839 = vmatpush1.bf16.msra.mxu0 %v2793
        %3840 = vmatprep.subr.bf16.mxu0 %v2792
        %3841 = vmatpush1.bf16.msra.mxu0 %v2791
        %3842 = vmatprep.subr.bf16.mxu0 %v2790
        %3843 = vmatpush1.bf16.msra.mxu0 %v2789
        %3844 = vmatprep.subr.bf16.mxu0 %v2788
        %3845 = vmatpush1.bf16.msra.mxu0 %v2787
        %3846 = vmatprep.subr.bf16.mxu0 %v2786
        %3847 = vmatpush1.bf16.msra.mxu0 %v2785
        %3848 = vmatprep.subr.bf16.mxu0 %v2784
        %3849 = vmatpush1.bf16.msra.mxu0 %v2783
        %3850 = vmatprep.subr.bf16.mxu0 %v2782
        %3851 = vmatpush1.bf16.msra.mxu0 %v2781
        %3852 = vmatprep.subr.bf16.mxu0 %v2780
        %3853 = vmatpush1.bf16.msra.mxu0 %v2779
        %3854 = vmatprep.subr.bf16.mxu0 %v2810
        %3855 = vmatpush2.bf16.msra.mxu0 %v2809
        %3856 = vmatprep.subr.bf16.mxu0 %v2808
        %3857 = vmatpush2.bf16.msra.mxu0 %v2807
        %3858 = vmatprep.subr.bf16.mxu0 %v2806
        %3859 = vmatpush2.bf16.msra.mxu0 %v2805
        %3860 = vmatprep.subr.bf16.mxu0 %v2804
        %3861 = vmatpush2.bf16.msra.mxu0 %v2803
        %3862 = vmatprep.subr.bf16.mxu0 %v2802
        %3863 = vmatpush2.bf16.msra.mxu0 %v2801
        %3864 = vmatprep.subr.bf16.mxu0 %v2800
        %3865 = vmatpush2.bf16.msra.mxu0 %v2799
        %3866 = vmatprep.subr.bf16.mxu0 %v2798
        %3867 = vmatpush2.bf16.msra.mxu0 %v2797
        %3868 = vmatprep.subr.bf16.mxu0 %v2796
        %3869 = vmatpush2.bf16.msra.mxu0 %v2795
        %3870 = vmatprep.mubr.bf16.mxu0 %v909
        %3871 = vmatmul.mubr.bf16.gmra.mxu0 %v907
        %v3872 = vpop.f32.mrf.mxu0
        %v3873 = vadd.f32 %v3832, %v3872
        %v3874 = vpop.f32.mrf.mxu0
        %v3875 = vadd.f32 %v3834, %v3874
        %v3876 = vpop.f32.mrf.mxu0
        %v3877 = vpop.f32.mrf.mxu0
        %3878 = vdwg.mxu0
        %3879 = vmatprep.subr.bf16.mxu0 %v2826
        %3880 = vmatpush1.bf16.msra.mxu0 %v2825
        %3881 = vmatprep.subr.bf16.mxu0 %v2824
        %3882 = vmatpush1.bf16.msra.mxu0 %v2823
        %3883 = vmatprep.subr.bf16.mxu0 %v2822
        %3884 = vmatpush1.bf16.msra.mxu0 %v2821
        %3885 = vmatprep.subr.bf16.mxu0 %v2820
        %3886 = vmatpush1.bf16.msra.mxu0 %v2819
        %3887 = vmatprep.subr.bf16.mxu0 %v2818
        %3888 = vmatpush1.bf16.msra.mxu0 %v2817
        %3889 = vmatprep.subr.bf16.mxu0 %v2816
        %3890 = vmatpush1.bf16.msra.mxu0 %v2815
        %3891 = vmatprep.subr.bf16.mxu0 %v2814
        %3892 = vmatpush1.bf16.msra.mxu0 %v2813
        %3893 = vmatprep.subr.bf16.mxu0 %v2812
        %3894 = vmatpush1.bf16.msra.mxu0 %v2811
        %3895 = vmatprep.subr.bf16.mxu0 %v2842
        %3896 = vmatpush2.bf16.msra.mxu0 %v2841
        %3897 = vmatprep.subr.bf16.mxu0 %v2840
        %3898 = vmatpush2.bf16.msra.mxu0 %v2839
        %3899 = vmatprep.subr.bf16.mxu0 %v2838
        %3900 = vmatpush2.bf16.msra.mxu0 %v2837
        %3901 = vmatprep.subr.bf16.mxu0 %v2836
        %3902 = vmatpush2.bf16.msra.mxu0 %v2835
        %3903 = vmatprep.subr.bf16.mxu0 %v2834
        %3904 = vmatpush2.bf16.msra.mxu0 %v2833
        %3905 = vmatprep.subr.bf16.mxu0 %v2832
        %3906 = vmatpush2.bf16.msra.mxu0 %v2831
        %3907 = vmatprep.subr.bf16.mxu0 %v2830
        %3908 = vmatpush2.bf16.msra.mxu0 %v2829
        %3909 = vmatprep.subr.bf16.mxu0 %v2828
        %3910 = vmatpush2.bf16.msra.mxu0 %v2827
        %3911 = vmatprep.mubr.bf16.mxu0 %v947
        %3912 = vmatmul.mubr.bf16.gmra.mxu0 %v933
        %v3913 = vpop.f32.mrf.mxu0
        %v3914 = vadd.f32 %v3873, %v3913
        %v3915 = vpop.f32.mrf.mxu0
        %v3916 = vadd.f32 %v3875, %v3915
        %v3917 = vpop.f32.mrf.mxu0
        %v3918 = vpop.f32.mrf.mxu0
        %3919 = vdwg.mxu0
        %3920 = vmatprep.subr.bf16.mxu0 %v2858
        %3921 = vmatpush1.bf16.msra.mxu0 %v2857
        %3922 = vmatprep.subr.bf16.mxu0 %v2856
        %3923 = vmatpush1.bf16.msra.mxu0 %v2855
        %3924 = vmatprep.subr.bf16.mxu0 %v2854
        %3925 = vmatpush1.bf16.msra.mxu0 %v2853
        %3926 = vmatprep.subr.bf16.mxu0 %v2852
        %3927 = vmatpush1.bf16.msra.mxu0 %v2851
        %3928 = vmatprep.subr.bf16.mxu0 %v2850
        %3929 = vmatpush1.bf16.msra.mxu0 %v2849
        %3930 = vmatprep.subr.bf16.mxu0 %v2848
        %3931 = vmatpush1.bf16.msra.mxu0 %v2847
        %3932 = vmatprep.subr.bf16.mxu0 %v2846
        %3933 = vmatpush1.bf16.msra.mxu0 %v2845
        %3934 = vmatprep.subr.bf16.mxu0 %v2844
        %3935 = vmatpush1.bf16.msra.mxu0 %v2843
        %3936 = vmatprep.subr.bf16.mxu0 %v2874
        %3937 = vmatpush2.bf16.msra.mxu0 %v2873
        %3938 = vmatprep.subr.bf16.mxu0 %v2872
        %3939 = vmatpush2.bf16.msra.mxu0 %v2871
        %3940 = vmatprep.subr.bf16.mxu0 %v2870
        %3941 = vmatpush2.bf16.msra.mxu0 %v2869
        %3942 = vmatprep.subr.bf16.mxu0 %v2868
        %3943 = vmatpush2.bf16.msra.mxu0 %v2867
        %3944 = vmatprep.subr.bf16.mxu0 %v2866
        %3945 = vmatpush2.bf16.msra.mxu0 %v2865
        %3946 = vmatprep.subr.bf16.mxu0 %v2864
        %3947 = vmatpush2.bf16.msra.mxu0 %v2863
        %3948 = vmatprep.subr.bf16.mxu0 %v2862
        %3949 = vmatpush2.bf16.msra.mxu0 %v2861
        %3950 = vmatprep.subr.bf16.mxu0 %v2860
        %3951 = vmatpush2.bf16.msra.mxu0 %v2859
        %3952 = vmatprep.mubr.bf16.mxu0 %v956
        %3953 = vmatmul.mubr.bf16.gmra.mxu0 %v955
        %v3954 = vpop.f32.mrf.mxu0
        %v3955 = vadd.f32 %v3914, %v3954
        %v3956 = vpop.f32.mrf.mxu0
        %v3957 = vadd.f32 %v3916, %v3956
        %v3958 = vpop.f32.mrf.mxu0
        %v3959 = vpop.f32.mrf.mxu0
        %3960 = vdwg.mxu0
        %3961 = vmatprep.subr.bf16.mxu0 %v2890
        %3962 = vmatpush1.bf16.msra.mxu0 %v2889
        %3963 = vmatprep.subr.bf16.mxu0 %v2888
        %3964 = vmatpush1.bf16.msra.mxu0 %v2887
        %3965 = vmatprep.subr.bf16.mxu0 %v2886
        %3966 = vmatpush1.bf16.msra.mxu0 %v2885
        %3967 = vmatprep.subr.bf16.mxu0 %v2884
        %3968 = vmatpush1.bf16.msra.mxu0 %v2883
        %3969 = vmatprep.subr.bf16.mxu0 %v2882
        %3970 = vmatpush1.bf16.msra.mxu0 %v2881
        %3971 = vmatprep.subr.bf16.mxu0 %v2880
        %3972 = vmatpush1.bf16.msra.mxu0 %v2879
        %3973 = vmatprep.subr.bf16.mxu0 %v2878
        %3974 = vmatpush1.bf16.msra.mxu0 %v2877
        %3975 = vmatprep.subr.bf16.mxu0 %v2876
        %3976 = vmatpush1.bf16.msra.mxu0 %v2875
        %3977 = vmatprep.subr.bf16.mxu0 %v2906
        %3978 = vmatpush2.bf16.msra.mxu0 %v2905
        %3979 = vmatprep.subr.bf16.mxu0 %v2904
        %3980 = vmatpush2.bf16.msra.mxu0 %v2903
        %3981 = vmatprep.subr.bf16.mxu0 %v2902
        %3982 = vmatpush2.bf16.msra.mxu0 %v2901
        %3983 = vmatprep.subr.bf16.mxu0 %v2900
        %3984 = vmatpush2.bf16.msra.mxu0 %v2899
        %3985 = vmatprep.subr.bf16.mxu0 %v2898
        %3986 = vmatpush2.bf16.msra.mxu0 %v2897
        %3987 = vmatprep.subr.bf16.mxu0 %v2896
        %3988 = vmatpush2.bf16.msra.mxu0 %v2895
        %3989 = vmatprep.subr.bf16.mxu0 %v2894
        %3990 = vmatpush2.bf16.msra.mxu0 %v2893
        %3991 = vmatprep.subr.bf16.mxu0 %v2892
        %3992 = vmatpush2.bf16.msra.mxu0 %v2891
        %3993 = vmatprep.mubr.bf16.mxu0 %v954
        %3994 = vmatmul.mubr.bf16.gmra.mxu0 %v940
        %v3995 = vpop.f32.mrf.mxu0
        %v3996 = vadd.f32 %v3955, %v3995
        %v3997 = vpop.f32.mrf.mxu0
        %v3998 = vadd.f32 %v3957, %v3997
        %v3999 = vpop.f32.mrf.mxu0
        %v4000 = vpop.f32.mrf.mxu0
        %4001 = vdwg.mxu0
        %v4004 = vcombine.low %v3996, %v3998
        %v4006 = vunpack.c.l.s4 1983009808
        %v4007 = vunpack.c.0.s8 %v4006
        %v4008 = vlaneseq
        %v4009 = vshrl.u32 %v4008, 7
        %v4010 = vsub.s32 %v4007, %v4009
        %v4011 = vrot.slane %v4004, %v4010
        %v4013 = vadd.f32 %v274, %v4011
        %4014 = vst [vmem:[#allocation2] sm:$0xf] %v4013
        %p4015 = scmp.eq.s32.totalorder %s25, 2
        // Predicated region
        $region45: #{cnn_forward.2} parent=31 // pred_check
          %p4016 = pneg %p4015
        $region46: #{cnn_forward.2} parent=31 // pred_check_branch
          %4018 = sbr.rel (%p4016) target = $region48
        $region47: #{cnn_forward.2} parent=31 // pred_region
          %v4019 = vld [vmem:[#allocation2] sm:$0xf]
          %v4020 = vld [vmem:[%s223] sm:$0x3]
          %v4022 = vlaneseq
          %v4023 = vshrl.u32 %v4022, 7
          %v4024 = vsub.s32 0, %v4023
          %v4025 = vrot.slane %v4020, %v4024
          %v4026 = vlaneseq
          %v4027 = vshrl.u32 %v4026, 7
          %v4028 = vsub.s32 1, %v4027
          %v4029 = vrot.slane %v4020, %v4028
          %v4030 = vcombine.low %v4025, %v4029
          %v4032 = vunpack.c.l.s4 1983009808
          %v4033 = vunpack.c.0.s8 %v4032
          %v4034 = vlaneseq
          %v4035 = vshrl.u32 %v4034, 7
          %v4036 = vsub.s32 %v4033, %v4035
          %v4037 = vrot.slane %v4030, %v4036
          %v4039 = vadd.f32 %v4019, %v4037
          %v4040 = vmax.f32 %v4039, 0.0
          %4041 = vst [vmem:[%s267] sm:$0xf] %v4040
        $region48: #{cnn_forward.2} parent=31 // pred_fallthru
          _
        %s4042 = smul.u32 2, %s24
        %p4043 = scmp.lt.s32.totalorder %s4042, 3
        %s4044 = scalar_select %p4043, %s4042, 3
        %s4045 = smul.addr %s4044, 2
        %s4046 = scalar_lea.vmem %s3, %s4045
        // Predicated region
        $region49: #{cnn_forward.2} parent=31 // pred_check
          %p4047 = pneg %p130
        $region50: #{cnn_forward.2} parent=31 // pred_check_branch
          %4049 = sbr.rel (%p4047) target = $region52
        $region51: #{cnn_forward.2} parent=31 // pred_region
          %s4050 = smul.u32 2, %s24
        $region52: #{cnn_forward.2} parent=31 // pred_fallthru
          _
      $region32: #{cnn_forward.2} parent=5 // pred_fallthru
        _
      %p4051 = scmp.le.s32.totalorder 2, %s15
      // Predicated region
      $region53: #{cnn_forward.2} parent=5 // pred_check
        %p4052 = pneg %p4051
      $region54: #{cnn_forward.2} parent=5 // pred_check_branch
        %4054 = sbr.rel (%p4052) target = $region56
      $region55: #{cnn_forward.2} parent=5 // pred_region
        %s4055 = ssub.s32 %s15, 2
        // Predicated region
        $region57: #{cnn_forward.2} parent=55 // pred_check
          %p4056 = pneg %p136
        $region58: #{cnn_forward.2} parent=55 // pred_check_branch
          %4058 = sbr.rel (%p4056) target = $region60
        $region59: #{cnn_forward.2} parent=55 // pred_region
          %s4059 = smul.u32 2, %s26
          %p4060 = scmp.lt.s32.totalorder %s4059, 3
          %s4061 = scalar_select %p4060, %s4059, 3
          %s4062 = smul.addr %s4061, 2
          %s4063 = scalar_lea.vmem %s3, %s4062
        $region60: #{cnn_forward.2} parent=55 // pred_fallthru
          _
      $region56: #{cnn_forward.2} parent=5 // pred_fallthru
        _
    $region6: #{cnn_forward.2} parent=1 // loop_footer
      %s19 = sadd.s32 1, %s15
    $region7: #{cnn_forward.2} parent=1 // loop_footer_branch
      %14 = sbr.rel target = $region3
    $region8: #{cnn_forward.2} parent=1 // loop_exit
      _
    %4064 = vsyncpa [#allocation4], 1
    %s4065 = scalar_lea.sflag [#allocation4], 1
    %4066 = vsyncpa %s4065, 1
    %4067 = vsyncpa [#allocation6], 1
    %s4068 = scalar_lea.sflag [#allocation6], 1
    %4069 = vsyncpa %s4068, 1

</llo_original>
